<compile_context>
chip_gen: v7x
topology: tpu7x:2x2x1
jax: 0.10.0
libtpu: 0.0.40
codegen_flags: <defaults>
</compile_context>

<pallas_src>
import jax
import jax.numpy as jnp
from jax.experimental import pallas as pl
from jax.experimental.pallas import tpu as pltpu

# ----------------------------- mini-Hiera config -----------------------------
IMG = 32                       # input spatial size (NCHW: [B, 3, 32, 32])
IN_CH = 3
PATCH_K = 7
PATCH_DIM = IN_CH * PATCH_K * PATCH_K   # 147
EMBED_DIM = 32                 # stage-0 dim (hiera_base_224 uses 96)
DIM1 = 64                      # stage-1 dim
HEADS1 = 2
HEAD_DIM = 32
TOK_H = TOK_W = IMG // 4       # 8x8 tokens after 7x7 / stride-4 patch embed
N_TOK = TOK_H * TOK_W          # 64
NQ1 = (TOK_H // 2) * (TOK_W // 2)   # 16 pooled query tokens in stage 1
SELECTED_LAYERS = (1,)         # layers=[1] in the PyTorch module
LN_EPS = 1e-6                  # Hiera uses nn.LayerNorm(eps=1e-6)
ATTN_SCALE = HEAD_DIM ** -0.5
BF16 = jnp.bfloat16

# packed bias/LN slab layout: name -> (row, valid width)
VEC_COLS = 256
VEC_ROWS = 24                  # 17 used rows, padded to a multiple of 8
_VROWS = {
    'patch_b': (0, EMBED_DIM),
    'n1g0': (1, EMBED_DIM), 'n1b0': (2, EMBED_DIM),
    'qkvb0': (3, 3 * EMBED_DIM),
    'prb0': (4, EMBED_DIM),
    'n2g0': (5, EMBED_DIM), 'n2b0': (6, EMBED_DIM),
    'f1b0': (7, 4 * EMBED_DIM),
    'f2b0': (8, EMBED_DIM),
    'n1g1': (9, EMBED_DIM), 'n1b1': (10, EMBED_DIM),
    'bqs1': (11, 4 * DIM1),
    'prb1': (12, DIM1),
    'n2g1': (13, DIM1), 'n2b1': (14, DIM1),
    'f1b1': (15, 4 * DIM1),
    'f2b1': (16, DIM1),
}

_WEIGHT_KEYS = ('patch_w', 'qkv_w0', 'proj_w0', 'fc1_w0', 'fc2_w0',
                'wqs1', 'proj_w1', 'fc1_w1', 'fc2_w1')


# --------------------------- in-kernel helper ops -----------------------------
def _mm(x, w):
    """bf16-operand MXU matmul with f32 accumulation (weights pre-cast)."""
    return jnp.dot(x.astype(BF16), w.astype(BF16),
                   preferred_element_type=jnp.float32)


def _ln(x, g, b):
    mu = jnp.mean(x, axis=-1, keepdims=True)
    xc = x - mu
    var = jnp.mean(xc * xc, axis=-1, keepdims=True)
    return xc * jax.lax.rsqrt(var + LN_EPS) * g + b


def _attn(q, k, v):
    """Batched softmax attention.  q: [B, Nq, D], k/v: [B, Nk, D] (f32)."""
    s = jnp.einsum('bqd,bkd->bqk', q.astype(BF16), k.astype(BF16),
                   preferred_element_type=jnp.float32) * ATTN_SCALE
    s = s - jnp.max(s, axis=-1, keepdims=True)
    p = jnp.exp(s)
    p = p * pl.reciprocal(jnp.sum(p, axis=-1, keepdims=True), approx=True)
    return jnp.einsum('bqk,bkd->bqd', p.astype(BF16), v.astype(BF16),
                      preferred_element_type=jnp.float32)


def _gelu(x):
    # TODO(synk): PyTorch nn.GELU() is the exact erf form; the tanh
    # approximation is used for a Mosaic-safe in-kernel lowering.
    return jax.nn.gelu(x, approximate=True)


# ------------------------- the single fused kernel ----------------------------
def _hiera_pair_kernel(patches_ref, pos_ref, vec_ref,
                       pw_ref, qkvw0_ref, prw0_ref, f1w0_ref, f2w0_ref,
                       wqs1_ref, prw1_ref, f1w1_ref, f2w1_ref,
                       out_ref):
    """One (sr, hr) image pair per grid step.

    patches_ref: [1, 2*N_TOK, 147]  rows 0:64 = sr tokens, 64:128 = hr tokens
                                    (window-major token order)
    out_ref:     [1, 8, 128]        per-pair sum(|sr_feat - hr_feat|), broadcast
    """
    patches = patches_ref[0]                       # [128, 147] f32
    vec = vec_ref[...]                             # [24, 256]  f32

    def vget(name):
        row, n = _VROWS[name]
        return vec[row:row + 1, 0:n]               # [1, n] -> broadcasts over rows

    # ---- patch embed + positional embedding ----
    x = _mm(patches, pw_ref[...]) + vget('patch_b')           # [128, 32]
    x = x + pos_ref[...]

    # ---- block 0 (dim 32 -> 32, 1 head, no q-pool) ----
    xn = _ln(x, vget('n1g0'), vget('n1b0'))
    qkv = _mm(xn, qkvw0_ref[...]) + vget('qkvb0')             # [128, 96]
    qkv3 = qkv.reshape(2, N_TOK, 3 * EMBED_DIM)               # [img, tok, 96]
    o = _attn(qkv3[..., 0:EMBED_DIM],
              qkv3[..., EMBED_DIM:2 * EMBED_DIM],
              qkv3[..., 2 * EMBED_DIM:3 * EMBED_DIM])         # [2, 64, 32]
    o = o.reshape(2 * N_TOK, EMBED_DIM)
    x = x + _mm(o, prw0_ref[...]) + vget('prb0')              # residual (dim==dim_out)
    xn2 = _ln(x, vget('n2g0'), vget('n2b0'))
    h = _gelu(_mm(xn2, f1w0_ref[...]) + vget('f1b0'))         # [128, 128]
    x = x + _mm(h, f2w0_ref[...]) + vget('f2b0')              # [128, 32]
    # stage-0 intermediate intentionally never materialized (only layer 1 used)

    # ---- block 1 (dim 32 -> 64, 2 heads, 2x2 q/skip max-pool) ----
    xn = _ln(x, vget('n1g1'), vget('n1b1'))
    qkvs = _mm(xn, wqs1_ref[...]) + vget('bqs1')              # [128, 256] = q|k|v|skip
    full3 = qkvs.reshape(2, N_TOK, 4 * DIM1)
    kk = full3[..., DIM1:2 * DIM1]                            # [2, 64, 64]
    vv = full3[..., 2 * DIM1:3 * DIM1]                        # [2, 64, 64]

    # window-major token order -> 2x2 pooling == max over 4 consecutive rows.
    # TODO(synk): equivalent to Hiera's unroll/mask-unit pooling only because
    # one mask unit covers the whole 8x8 grid at this toy size.
    pooled = jnp.max(qkvs.reshape(2 * NQ1, 4, 4 * DIM1), axis=1)   # [32, 256]
    qp = pooled[:, 0:DIM1]                                    # [32, 64]
    skip = pooled[:, 3 * DIM1:4 * DIM1]                       # [32, 64]

    # head-batched attention: stack the 2 heads along the batch axis so the
    # whole stage-1 attention is a single batched einsum.
    q_pool = qp.reshape(2, NQ1, DIM1)
    qh = jnp.concatenate([q_pool[..., 0:HEAD_DIM],
                          q_pool[..., HEAD_DIM:DIM1]], axis=0)     # [4, 16, 32]
    kh = jnp.concatenate([kk[..., 0:HEAD_DIM],
                          kk[..., HEAD_DIM:DIM1]], axis=0)         # [4, 64, 32]
    vh = jnp.concatenate([vv[..., 0:HEAD_DIM],
                          vv[..., HEAD_DIM:DIM1]], axis=0)         # [4, 64, 32]
    oh = _attn(qh, kh, vh)                                    # [4, 16, 32]

    # merge heads through the output projection (avoids a lane concat):
    #   concat(o_h0, o_h1) @ W == o_h0 @ W[h0] + o_h1 @ W[h1]
    attn = vget('prb1')
    attn = attn + jnp.dot(oh[0:2].reshape(2 * NQ1, HEAD_DIM).astype(BF16),
                          prw1_ref[0], preferred_element_type=jnp.float32)
    attn = attn + jnp.dot(oh[2:4].reshape(2 * NQ1, HEAD_DIM).astype(BF16),
                          prw1_ref[1], preferred_element_type=jnp.float32)

    x1 = skip + attn                                          # [32, 64]
    xn = _ln(x1, vget('n2g1'), vget('n2b1'))
    h = _gelu(_mm(xn, f1w1_ref[...]) + vget('f1b1'))          # [32, 256]
    x1 = x1 + _mm(h, f2w1_ref[...]) + vget('f2b1')            # [32, 64] stage-1 features

    # per-pair L1 partial: rows 0:16 = sr tokens, 16:32 = hr tokens
    diff = jnp.abs(x1[0:NQ1, :] - x1[NQ1:2 * NQ1, :])
    out_ref[...] = jnp.full(out_ref.shape, jnp.sum(diff), jnp.float32)


# ------------------------------- JAX glue -------------------------------------
def hiera_perceptual_loss(packed, sr_image, hr_image):
    """== HieraNoFreqPercepNoMSE.forward(sr_image, hr_image) (scalar loss)."""
    B = sr_image.shape[0]
    img = jnp.concatenate([sr_image, hr_image], axis=0).astype(jnp.float32)

    # im2col patches directly in NHWC, then window-major ("mask-unit") token
    # order so the in-kernel 2x2 q/skip pooling is a contiguous 4-row max.
    p = jax.lax.conv_general_dilated_patches(
        img, filter_shape=(PATCH_K, PATCH_K), window_strides=(4, 4),
        padding=((3, 3), (3, 3)),
        dimension_numbers=('NCHW', 'OIHW', 'NHWC'))                 # [2B, 8, 8, 147]
    p = p.reshape(2 * B, TOK_H // 2, 2, TOK_W // 2, 2, PATCH_DIM)
    p = p.transpose(0, 1, 3, 2, 4, 5).reshape(2 * B, N_TOK, PATCH_DIM)
    pairs = jnp.concatenate([p[:B], p[B:]], axis=1)                 # [B, 128, 147]

    weights = [packed[k] for k in _WEIGHT_KEYS]

    def full_spec(a):
        nd = a.ndim
        return pl.BlockSpec(a.shape, lambda b: (0,) * nd)

    partials = pl.pallas_call(
        _hiera_pair_kernel,
        out_shape=jax.ShapeDtypeStruct((B, 8, 128), jnp.float32),
        grid=(B,),
        in_specs=[pl.BlockSpec((1, 2 * N_TOK, PATCH_DIM), lambda b: (b, 0, 0)),
                  full_spec(packed['pos']),
                  full_spec(packed['vec'])] + [full_spec(w) for w in weights],
        out_specs=pl.BlockSpec((1, 8, 128), lambda b: (b, 0, 0)),
        compiler_params=pltpu.CompilerParams(
            dimension_semantics=("parallel",)),
    )(pairs, packed['pos'], packed['vec'], *weights)

    loss = jnp.sum(partials[:, 0, 0]) / float(B * NQ1 * DIM1)
    return loss / len(SELECTED_LAYERS)


# ------------------- frozen-weight pre-packing (outside jit) -------------------
def pack_params(params):
    """Pre-pack / pre-cast the frozen backbone params ONCE (outside jit)."""
    b0, b1 = params['blk0'], params['blk1']

    vec = jnp.zeros((VEC_ROWS, VEC_COLS), jnp.float32)

    def put(v, name, val):
        row, n = _VROWS[name]
        return v.at[row, 0:n].set(val.reshape(n))

    vec = put(vec, 'patch_b', params['patch_b'])
    vec = put(vec, 'n1g0', b0['norm1_g']); vec = put(vec, 'n1b0', b0['norm1_b'])
    vec = put(vec, 'qkvb0', b0['qkv_b'])
    vec = put(vec, 'prb0', b0['proj_b'])
    vec = put(vec, 'n2g0', b0['norm2_g']); vec = put(vec, 'n2b0', b0['norm2_b'])
    vec = put(vec, 'f1b0', b0['fc1_b']); vec = put(vec, 'f2b0', b0['fc2_b'])
    vec = put(vec, 'n1g1', b1['norm1_g']); vec = put(vec, 'n1b1', b1['norm1_b'])
    vec = put(vec, 'bqs1', jnp.concatenate([b1['qkv_b'], b1['skip_b']]))
    vec = put(vec, 'prb1', b1['proj_b'])
    vec = put(vec, 'n2g1', b1['norm2_g']); vec = put(vec, 'n2b1', b1['norm2_b'])
    vec = put(vec, 'f1b1', b1['fc1_b']); vec = put(vec, 'f2b1', b1['fc2_b'])

    # pos embed: reorder to window-major token order, pre-tiled for (sr, hr)
    pos = params['pos_embed'].reshape(TOK_H, TOK_W, EMBED_DIM)
    pos = pos.reshape(TOK_H // 2, 2, TOK_W // 2, 2, EMBED_DIM)
    pos = pos.transpose(0, 2, 1, 3, 4).reshape(N_TOK, EMBED_DIM)
    pos2 = jnp.concatenate([pos, pos], axis=0)                      # [128, 32]

    # block-1 fused (qkv | skip-projection) weight; q/k/v head-major columns.
    # TODO(synk): loading a real Hiera checkpoint would need the (3, heads, d)
    # column permutation here.
    wqs = jnp.concatenate([b1['qkv_w'], b1['skip_w']], axis=1)      # [32, 256]

    cast = lambda a: a.astype(BF16)
    return {
        'vec': vec,
        'pos': pos2,
        'patch_w': cast(params['patch_w']),
        'qkv_w0': cast(b0['qkv_w']),
        'proj_w0': cast(b0['proj_w']),
        'fc1_w0': cast(b0['fc1_w']),
        'fc2_w0': cast(b0['fc2_w']),
        'wqs1': cast(wqs),
        'proj_w1': cast(b1['proj_w']).reshape(HEADS1, HEAD_DIM, DIM1),
        'fc1_w1': cast(b1['fc1_w']),
        'fc2_w1': cast(b1['fc2_w']),
    }


# ---------------------------- deterministic params ----------------------------
def init_params(key):
    keys = iter(jax.random.split(key, 16))
    w = lambda s: 0.02 * jax.random.normal(next(keys), s, jnp.float32)
    z = lambda s: jnp.zeros(s, jnp.float32)
    o = lambda s: jnp.ones(s, jnp.float32)

    def block_params(dim, dim_out, proj_skip):
        p = {
            'norm1_g': o((dim,)), 'norm1_b': z((dim,)),
            'qkv_w': w((dim, 3 * dim_out)), 'qkv_b': z((3 * dim_out,)),
            'proj_w': w((dim_out, dim_out)), 'proj_b': z((dim_out,)),
            'norm2_g': o((dim_out,)), 'norm2_b': z((dim_out,)),
            'fc1_w': w((dim_out, 4 * dim_out)), 'fc1_b': z((4 * dim_out,)),
            'fc2_w': w((4 * dim_out, dim_out)), 'fc2_b': z((dim_out,)),
        }
        if proj_skip:
            p['skip_w'] = w((dim, dim_out))
            p['skip_b'] = z((dim_out,))
        return p

    return {
        'patch_w': w((PATCH_DIM, EMBED_DIM)), 'patch_b': z((EMBED_DIM,)),
        'pos_embed': w((1, N_TOK, EMBED_DIM)),
        'blk0': block_params(EMBED_DIM, EMBED_DIM, proj_skip=False),
        'blk1': block_params(EMBED_DIM, DIM1, proj_skip=True),
    }


# ----------------------------------- main --------------------------------------
if __name__ == "__main__":
    key = jax.random.PRNGKey(0)
    k_sr, k_hr, k_p = jax.random.split(key, 3)
    B = 2
    sr_image = jax.random.normal(k_sr, (B, IN_CH, IMG, IMG), jnp.float32)
    hr_image = jax.random.normal(k_hr, (B, IN_CH, IMG, IMG), jnp.float32)

    params = init_params(k_p)
    packed = pack_params(params)          # frozen backbone: pack / cast ONCE

    loss_fn = jax.jit(hiera_perceptual_loss)
    loss = loss_fn(packed, sr_image, hr_image)
    jax.block_until_ready(loss)
    assert loss.shape == () and bool(jnp.isfinite(loss))
    print("KERNEL_OK")
</pallas_src>

<mosaic_0001>
module attributes {stable_mosaic.version = 11 : i64} {
  func.func @_hiera_pair_kernel(%arg0: i32, %arg1: memref<1x128x147xf32, #tpu.memory_space<vmem>>, %arg2: memref<128x32xf32, #tpu.memory_space<vmem>>, %arg3: memref<24x256xf32, #tpu.memory_space<vmem>>, %arg4: memref<147x32xbf16, #tpu.memory_space<vmem>>, %arg5: memref<32x96xbf16, #tpu.memory_space<vmem>>, %arg6: memref<32x32xbf16, #tpu.memory_space<vmem>>, %arg7: memref<32x128xbf16, #tpu.memory_space<vmem>>, %arg8: memref<128x32xbf16, #tpu.memory_space<vmem>>, %arg9: memref<32x256xbf16, #tpu.memory_space<vmem>>, %arg10: memref<2x32x64xbf16, #tpu.memory_space<vmem>>, %arg11: memref<64x256xbf16, #tpu.memory_space<vmem>>, %arg12: memref<256x64xbf16, #tpu.memory_space<vmem>>, %arg13: memref<1x8x128xf32, #tpu.memory_space<vmem>>) attributes {dimension_semantics = [#tpu.dimension_semantics<parallel>], iteration_bounds = array<i64: 2>, scalar_prefetch = 0 : i64, scratch_operands = 0 : i64, tpu.core_type = #tpu.core_type<tc>, window_params = [{transform_indices = @transform_0, window_bounds = array<i64: 1, 128, 147>}, {pipeline_mode = #tpu.pipeline_mode<synchronous>, transform_indices = @transform_1, window_bounds = array<i64: 128, 32>}, {pipeline_mode = #tpu.pipeline_mode<synchronous>, transform_indices = @transform_2, window_bounds = array<i64: 24, 256>}, {pipeline_mode = #tpu.pipeline_mode<synchronous>, transform_indices = @transform_3, window_bounds = array<i64: 147, 32>}, {pipeline_mode = #tpu.pipeline_mode<synchronous>, transform_indices = @transform_4, window_bounds = array<i64: 32, 96>}, {pipeline_mode = #tpu.pipeline_mode<synchronous>, transform_indices = @transform_5, window_bounds = array<i64: 32, 32>}, {pipeline_mode = #tpu.pipeline_mode<synchronous>, transform_indices = @transform_6, window_bounds = array<i64: 32, 128>}, {pipeline_mode = #tpu.pipeline_mode<synchronous>, transform_indices = @transform_7, window_bounds = array<i64: 128, 32>}, {pipeline_mode = #tpu.pipeline_mode<synchronous>, transform_indices = @transform_8, window_bounds = array<i64: 32, 256>}, {pipeline_mode = #tpu.pipeline_mode<synchronous>, transform_indices = @transform_9, window_bounds = array<i64: 2, 32, 64>}, {pipeline_mode = #tpu.pipeline_mode<synchronous>, transform_indices = @transform_10, window_bounds = array<i64: 64, 256>}, {pipeline_mode = #tpu.pipeline_mode<synchronous>, transform_indices = @transform_11, window_bounds = array<i64: 256, 64>}, {transform_indices = @transform_12, window_bounds = array<i64: 1, 8, 128>}]} {
    %c0 = arith.constant 0 : index
    %c0_0 = arith.constant 0 : index
    %c0_1 = arith.constant 0 : index
    %0 = vector.load %arg1[%c0, %c0_0, %c0_1] : memref<1x128x147xf32, #tpu.memory_space<vmem>>, vector<1x128x147xf32>
    %1 = vector.shape_cast %0 : vector<1x128x147xf32> to vector<128x147xf32>
    %c0_2 = arith.constant 0 : index
    %c0_3 = arith.constant 0 : index
    %2 = vector.load %arg3[%c0_2, %c0_3] : memref<24x256xf32, #tpu.memory_space<vmem>>, vector<24x256xf32>
    %c0_4 = arith.constant 0 : index
    %c0_5 = arith.constant 0 : index
    %3 = vector.load %arg4[%c0_4, %c0_5] : memref<147x32xbf16, #tpu.memory_space<vmem>>, vector<147x32xbf16>
    %4 = arith.truncf %1 : vector<128x147xf32> to vector<128x147xbf16>
    %cst = arith.constant dense<0.000000e+00> : vector<128x32xf32>
    %5 = tpu.matmul %4, %3, %cst {dimension_numbers = #tpu.dot_dimension_numbers<[1], [0], [0], [1], [0, 0, 1, 1], [], []>} : vector<128x147xbf16>, vector<147x32xbf16>, vector<128x32xf32> -> vector<128x32xf32>
    %6 = vector.extract_strided_slice %2 {offsets = [0, 0], sizes = [1, 32], strides = [1, 1]} : vector<24x256xf32> to vector<1x32xf32>
    %7 = vector.broadcast %6 : vector<1x32xf32> to vector<128x32xf32>
    %8 = arith.addf %5, %7 : vector<128x32xf32>
    %c0_6 = arith.constant 0 : index
    %c0_7 = arith.constant 0 : index
    %9 = vector.load %arg2[%c0_6, %c0_7] : memref<128x32xf32, #tpu.memory_space<vmem>>, vector<128x32xf32>
    %10 = arith.addf %8, %9 : vector<128x32xf32>
    %11 = vector.extract_strided_slice %2 {offsets = [1, 0], sizes = [1, 32], strides = [1, 1]} : vector<24x256xf32> to vector<1x32xf32>
    %12 = vector.extract_strided_slice %2 {offsets = [2, 0], sizes = [1, 32], strides = [1, 1]} : vector<24x256xf32> to vector<1x32xf32>
    %cst_8 = arith.constant dense<0.000000e+00> : vector<128xf32>
    %13 = vector.multi_reduction <add>, %10, %cst_8 [1] : vector<128x32xf32> to vector<128xf32>
    %14 = vector.shape_cast %13 : vector<128xf32> to vector<128x1xf32>
    %cst_9 = arith.constant 3.200000e+01 : f32
    %15 = vector.broadcast %cst_9 : f32 to vector<128x1xf32>
    %16 = arith.divf %14, %15 : vector<128x1xf32>
    %17 = vector.broadcast %16 : vector<128x1xf32> to vector<128x32xf32>
    %18 = arith.subf %10, %17 : vector<128x32xf32>
    %19 = arith.mulf %18, %18 : vector<128x32xf32>
    %cst_10 = arith.constant dense<0.000000e+00> : vector<128xf32>
    %20 = vector.multi_reduction <add>, %19, %cst_10 [1] : vector<128x32xf32> to vector<128xf32>
    %21 = vector.shape_cast %20 : vector<128xf32> to vector<128x1xf32>
    %cst_11 = arith.constant 3.200000e+01 : f32
    %22 = vector.broadcast %cst_11 : f32 to vector<128x1xf32>
    %23 = arith.divf %21, %22 : vector<128x1xf32>
    %cst_12 = arith.constant 9.99999997E-7 : f32
    %24 = vector.broadcast %cst_12 : f32 to vector<128x1xf32>
    %25 = arith.addf %23, %24 : vector<128x1xf32>
    %26 = math.rsqrt %25 : vector<128x1xf32>
    %27 = vector.broadcast %26 : vector<128x1xf32> to vector<128x32xf32>
    %28 = arith.mulf %18, %27 : vector<128x32xf32>
    %29 = vector.broadcast %11 : vector<1x32xf32> to vector<128x32xf32>
    %30 = arith.mulf %28, %29 : vector<128x32xf32>
    %31 = vector.broadcast %12 : vector<1x32xf32> to vector<128x32xf32>
    %32 = arith.addf %30, %31 : vector<128x32xf32>
    %c0_13 = arith.constant 0 : index
    %c0_14 = arith.constant 0 : index
    %33 = vector.load %arg5[%c0_13, %c0_14] : memref<32x96xbf16, #tpu.memory_space<vmem>>, vector<32x96xbf16>
    %34 = arith.truncf %32 : vector<128x32xf32> to vector<128x32xbf16>
    %cst_15 = arith.constant dense<0.000000e+00> : vector<128x96xf32>
    %35 = tpu.matmul %34, %33, %cst_15 {dimension_numbers = #tpu.dot_dimension_numbers<[1], [0], [0], [1], [0, 0, 1, 1], [], []>} : vector<128x32xbf16>, vector<32x96xbf16>, vector<128x96xf32> -> vector<128x96xf32>
    %36 = vector.extract_strided_slice %2 {offsets = [3, 0], sizes = [1, 96], strides = [1, 1]} : vector<24x256xf32> to vector<1x96xf32>
    %37 = vector.broadcast %36 : vector<1x96xf32> to vector<128x96xf32>
    %38 = arith.addf %35, %37 : vector<128x96xf32>
    %39 = vector.shape_cast %38 : vector<128x96xf32> to vector<2x64x96xf32>
    %40 = vector.extract_strided_slice %39 {offsets = [0, 0, 0], sizes = [2, 64, 32], strides = [1, 1, 1]} : vector<2x64x96xf32> to vector<2x64x32xf32>
    %41 = vector.extract_strided_slice %39 {offsets = [0, 0, 32], sizes = [2, 64, 32], strides = [1, 1, 1]} : vector<2x64x96xf32> to vector<2x64x32xf32>
    %42 = vector.extract_strided_slice %39 {offsets = [0, 0, 64], sizes = [2, 64, 32], strides = [1, 1, 1]} : vector<2x64x96xf32> to vector<2x64x32xf32>
    %43 = arith.truncf %40 : vector<2x64x32xf32> to vector<2x64x32xbf16>
    %44 = arith.truncf %41 : vector<2x64x32xf32> to vector<2x64x32xbf16>
    "tpu.trace_start"() <{level = 10 : i32, message = "bqd,bkd->bqk"}> : () -> ()
    %cst_16 = arith.constant dense<0.000000e+00> : vector<2x64x64xf32>
    %45 = tpu.matmul %43, %44, %cst_16 {dimension_numbers = #tpu.dot_dimension_numbers<[2], [2], [1], [1], [0, 0, 0, 1, 1, 1], [0], [0]>} : vector<2x64x32xbf16>, vector<2x64x32xbf16>, vector<2x64x64xf32> -> vector<2x64x64xf32>
    "tpu.trace_stop"() : () -> ()
    %cst_17 = arith.constant 0.176776692 : f32
    %46 = vector.broadcast %cst_17 : f32 to vector<2x64x64xf32>
    %47 = arith.mulf %45, %46 : vector<2x64x64xf32>
    %cst_18 = arith.constant dense<0xFF800000> : vector<2x64xf32>
    %48 = vector.multi_reduction <maximumf>, %47, %cst_18 [2] : vector<2x64x64xf32> to vector<2x64xf32>
    %49 = vector.shape_cast %48 : vector<2x64xf32> to vector<2x64x1xf32>
    %50 = vector.broadcast %49 : vector<2x64x1xf32> to vector<2x64x64xf32>
    %51 = arith.subf %47, %50 : vector<2x64x64xf32>
    %52 = math.exp %51 : vector<2x64x64xf32>
    %cst_19 = arith.constant dense<0.000000e+00> : vector<2x64xf32>
    %53 = vector.multi_reduction <add>, %52, %cst_19 [2] : vector<2x64x64xf32> to vector<2x64xf32>
    %54 = vector.shape_cast %53 : vector<2x64xf32> to vector<2x64x1xf32>
    %55 = tpu.reciprocal %54 {approx = true} : vector<2x64x1xf32> -> vector<2x64x1xf32>
    %56 = vector.broadcast %55 : vector<2x64x1xf32> to vector<2x64x64xf32>
    %57 = arith.mulf %52, %56 : vector<2x64x64xf32>
    %58 = arith.truncf %57 : vector<2x64x64xf32> to vector<2x64x64xbf16>
    %59 = arith.truncf %42 : vector<2x64x32xf32> to vector<2x64x32xbf16>
    "tpu.trace_start"() <{level = 10 : i32, message = "bqk,bkd->bqd"}> : () -> ()
    %cst_20 = arith.constant dense<0.000000e+00> : vector<2x64x32xf32>
    %60 = tpu.matmul %58, %59, %cst_20 {dimension_numbers = #tpu.dot_dimension_numbers<[2], [1], [1], [2], [0, 0, 0, 1, 1, 2], [0], [0]>} : vector<2x64x64xbf16>, vector<2x64x32xbf16>, vector<2x64x32xf32> -> vector<2x64x32xf32>
    "tpu.trace_stop"() : () -> ()
    %61 = vector.shape_cast %60 : vector<2x64x32xf32> to vector<128x32xf32>
    %c0_21 = arith.constant 0 : index
    %c0_22 = arith.constant 0 : index
    %62 = vector.load %arg6[%c0_21, %c0_22] : memref<32x32xbf16, #tpu.memory_space<vmem>>, vector<32x32xbf16>
    %63 = arith.truncf %61 : vector<128x32xf32> to vector<128x32xbf16>
    %cst_23 = arith.constant dense<0.000000e+00> : vector<128x32xf32>
    %64 = tpu.matmul %63, %62, %cst_23 {dimension_numbers = #tpu.dot_dimension_numbers<[1], [0], [0], [1], [0, 0, 1, 1], [], []>} : vector<128x32xbf16>, vector<32x32xbf16>, vector<128x32xf32> -> vector<128x32xf32>
    %65 = arith.addf %10, %64 : vector<128x32xf32>
    %66 = vector.extract_strided_slice %2 {offsets = [4, 0], sizes = [1, 32], strides = [1, 1]} : vector<24x256xf32> to vector<1x32xf32>
    %67 = vector.broadcast %66 : vector<1x32xf32> to vector<128x32xf32>
    %68 = arith.addf %65, %67 : vector<128x32xf32>
    %69 = vector.extract_strided_slice %2 {offsets = [5, 0], sizes = [1, 32], strides = [1, 1]} : vector<24x256xf32> to vector<1x32xf32>
    %70 = vector.extract_strided_slice %2 {offsets = [6, 0], sizes = [1, 32], strides = [1, 1]} : vector<24x256xf32> to vector<1x32xf32>
    %cst_24 = arith.constant dense<0.000000e+00> : vector<128xf32>
    %71 = vector.multi_reduction <add>, %68, %cst_24 [1] : vector<128x32xf32> to vector<128xf32>
    %72 = vector.shape_cast %71 : vector<128xf32> to vector<128x1xf32>
    %cst_25 = arith.constant 3.200000e+01 : f32
    %73 = vector.broadcast %cst_25 : f32 to vector<128x1xf32>
    %74 = arith.divf %72, %73 : vector<128x1xf32>
    %75 = vector.broadcast %74 : vector<128x1xf32> to vector<128x32xf32>
    %76 = arith.subf %68, %75 : vector<128x32xf32>
    %77 = arith.mulf %76, %76 : vector<128x32xf32>
    %cst_26 = arith.constant dense<0.000000e+00> : vector<128xf32>
    %78 = vector.multi_reduction <add>, %77, %cst_26 [1] : vector<128x32xf32> to vector<128xf32>
    %79 = vector.shape_cast %78 : vector<128xf32> to vector<128x1xf32>
    %cst_27 = arith.constant 3.200000e+01 : f32
    %80 = vector.broadcast %cst_27 : f32 to vector<128x1xf32>
    %81 = arith.divf %79, %80 : vector<128x1xf32>
    %cst_28 = arith.constant 9.99999997E-7 : f32
    %82 = vector.broadcast %cst_28 : f32 to vector<128x1xf32>
    %83 = arith.addf %81, %82 : vector<128x1xf32>
    %84 = math.rsqrt %83 : vector<128x1xf32>
    %85 = vector.broadcast %84 : vector<128x1xf32> to vector<128x32xf32>
    %86 = arith.mulf %76, %85 : vector<128x32xf32>
    %87 = vector.broadcast %69 : vector<1x32xf32> to vector<128x32xf32>
    %88 = arith.mulf %86, %87 : vector<128x32xf32>
    %89 = vector.broadcast %70 : vector<1x32xf32> to vector<128x32xf32>
    %90 = arith.addf %88, %89 : vector<128x32xf32>
    %c0_29 = arith.constant 0 : index
    %c0_30 = arith.constant 0 : index
    %91 = vector.load %arg7[%c0_29, %c0_30] : memref<32x128xbf16, #tpu.memory_space<vmem>>, vector<32x128xbf16>
    %92 = arith.truncf %90 : vector<128x32xf32> to vector<128x32xbf16>
    %cst_31 = arith.constant dense<0.000000e+00> : vector<128x128xf32>
    %93 = tpu.matmul %92, %91, %cst_31 {dimension_numbers = #tpu.dot_dimension_numbers<[1], [0], [0], [1], [0, 0, 1, 1], [], []>} : vector<128x32xbf16>, vector<32x128xbf16>, vector<128x128xf32> -> vector<128x128xf32>
    %94 = vector.extract_strided_slice %2 {offsets = [7, 0], sizes = [1, 128], strides = [1, 1]} : vector<24x256xf32> to vector<1x128xf32>
    %95 = vector.broadcast %94 : vector<1x128xf32> to vector<128x128xf32>
    %96 = arith.addf %93, %95 : vector<128x128xf32>
    %97 = arith.mulf %96, %96 : vector<128x128xf32>
    %98 = arith.mulf %96, %97 : vector<128x128xf32>
    %cst_32 = arith.constant 4.471500e-02 : f32
    %99 = vector.broadcast %cst_32 : f32 to vector<128x128xf32>
    %100 = arith.mulf %99, %98 : vector<128x128xf32>
    %101 = arith.addf %96, %100 : vector<128x128xf32>
    %cst_33 = arith.constant 0.797884583 : f32
    %102 = vector.broadcast %cst_33 : f32 to vector<128x128xf32>
    %103 = arith.mulf %102, %101 : vector<128x128xf32>
    %104 = math.tanh %103 : vector<128x128xf32>
    %cst_34 = arith.constant 1.000000e+00 : f32
    %105 = vector.broadcast %cst_34 : f32 to vector<128x128xf32>
    %106 = arith.addf %105, %104 : vector<128x128xf32>
    %cst_35 = arith.constant 5.000000e-01 : f32
    %107 = vector.broadcast %cst_35 : f32 to vector<128x128xf32>
    %108 = arith.mulf %107, %106 : vector<128x128xf32>
    %109 = arith.mulf %96, %108 : vector<128x128xf32>
    %c0_36 = arith.constant 0 : index
    %c0_37 = arith.constant 0 : index
    %110 = vector.load %arg8[%c0_36, %c0_37] : memref<128x32xbf16, #tpu.memory_space<vmem>>, vector<128x32xbf16>
    %111 = arith.truncf %109 : vector<128x128xf32> to vector<128x128xbf16>
    %cst_38 = arith.constant dense<0.000000e+00> : vector<128x32xf32>
    %112 = tpu.matmul %111, %110, %cst_38 {dimension_numbers = #tpu.dot_dimension_numbers<[1], [0], [0], [1], [0, 0, 1, 1], [], []>} : vector<128x128xbf16>, vector<128x32xbf16>, vector<128x32xf32> -> vector<128x32xf32>
    %113 = arith.addf %68, %112 : vector<128x32xf32>
    %114 = vector.extract_strided_slice %2 {offsets = [8, 0], sizes = [1, 32], strides = [1, 1]} : vector<24x256xf32> to vector<1x32xf32>
    %115 = vector.broadcast %114 : vector<1x32xf32> to vector<128x32xf32>
    %116 = arith.addf %113, %115 : vector<128x32xf32>
    %117 = vector.extract_strided_slice %2 {offsets = [9, 0], sizes = [1, 32], strides = [1, 1]} : vector<24x256xf32> to vector<1x32xf32>
    %118 = vector.extract_strided_slice %2 {offsets = [10, 0], sizes = [1, 32], strides = [1, 1]} : vector<24x256xf32> to vector<1x32xf32>
    %cst_39 = arith.constant dense<0.000000e+00> : vector<128xf32>
    %119 = vector.multi_reduction <add>, %116, %cst_39 [1] : vector<128x32xf32> to vector<128xf32>
    %120 = vector.shape_cast %119 : vector<128xf32> to vector<128x1xf32>
    %cst_40 = arith.constant 3.200000e+01 : f32
    %121 = vector.broadcast %cst_40 : f32 to vector<128x1xf32>
    %122 = arith.divf %120, %121 : vector<128x1xf32>
    %123 = vector.broadcast %122 : vector<128x1xf32> to vector<128x32xf32>
    %124 = arith.subf %116, %123 : vector<128x32xf32>
    %125 = arith.mulf %124, %124 : vector<128x32xf32>
    %cst_41 = arith.constant dense<0.000000e+00> : vector<128xf32>
    %126 = vector.multi_reduction <add>, %125, %cst_41 [1] : vector<128x32xf32> to vector<128xf32>
    %127 = vector.shape_cast %126 : vector<128xf32> to vector<128x1xf32>
    %cst_42 = arith.constant 3.200000e+01 : f32
    %128 = vector.broadcast %cst_42 : f32 to vector<128x1xf32>
    %129 = arith.divf %127, %128 : vector<128x1xf32>
    %cst_43 = arith.constant 9.99999997E-7 : f32
    %130 = vector.broadcast %cst_43 : f32 to vector<128x1xf32>
    %131 = arith.addf %129, %130 : vector<128x1xf32>
    %132 = math.rsqrt %131 : vector<128x1xf32>
    %133 = vector.broadcast %132 : vector<128x1xf32> to vector<128x32xf32>
    %134 = arith.mulf %124, %133 : vector<128x32xf32>
    %135 = vector.broadcast %117 : vector<1x32xf32> to vector<128x32xf32>
    %136 = arith.mulf %134, %135 : vector<128x32xf32>
    %137 = vector.broadcast %118 : vector<1x32xf32> to vector<128x32xf32>
    %138 = arith.addf %136, %137 : vector<128x32xf32>
    %c0_44 = arith.constant 0 : index
    %c0_45 = arith.constant 0 : index
    %139 = vector.load %arg9[%c0_44, %c0_45] : memref<32x256xbf16, #tpu.memory_space<vmem>>, vector<32x256xbf16>
    %140 = arith.truncf %138 : vector<128x32xf32> to vector<128x32xbf16>
    %cst_46 = arith.constant dense<0.000000e+00> : vector<128x256xf32>
    %141 = tpu.matmul %140, %139, %cst_46 {dimension_numbers = #tpu.dot_dimension_numbers<[1], [0], [0], [1], [0, 0, 1, 1], [], []>} : vector<128x32xbf16>, vector<32x256xbf16>, vector<128x256xf32> -> vector<128x256xf32>
    %142 = vector.extract_strided_slice %2 {offsets = [11, 0], sizes = [1, 256], strides = [1, 1]} : vector<24x256xf32> to vector<1x256xf32>
    %143 = vector.broadcast %142 : vector<1x256xf32> to vector<128x256xf32>
    %144 = arith.addf %141, %143 : vector<128x256xf32>
    %145 = vector.shape_cast %144 : vector<128x256xf32> to vector<2x64x256xf32>
    %146 = vector.extract_strided_slice %145 {offsets = [0, 0, 64], sizes = [2, 64, 64], strides = [1, 1, 1]} : vector<2x64x256xf32> to vector<2x64x64xf32>
    %147 = vector.extract_strided_slice %145 {offsets = [0, 0, 128], sizes = [2, 64, 64], strides = [1, 1, 1]} : vector<2x64x256xf32> to vector<2x64x64xf32>
    %148 = vector.shape_cast %144 : vector<128x256xf32> to vector<32x4x256xf32>
    %cst_47 = arith.constant dense<0xFF800000> : vector<32x256xf32>
    %149 = vector.multi_reduction <maximumf>, %148, %cst_47 [1] : vector<32x4x256xf32> to vector<32x256xf32>
    %150 = vector.extract_strided_slice %149 {offsets = [0, 0], sizes = [32, 64], strides = [1, 1]} : vector<32x256xf32> to vector<32x64xf32>
    %151 = vector.extract_strided_slice %149 {offsets = [0, 192], sizes = [32, 64], strides = [1, 1]} : vector<32x256xf32> to vector<32x64xf32>
    %152 = vector.shape_cast %150 : vector<32x64xf32> to vector<2x16x64xf32>
    %153 = vector.extract_strided_slice %152 {offsets = [0, 0, 0], sizes = [2, 16, 32], strides = [1, 1, 1]} : vector<2x16x64xf32> to vector<2x16x32xf32>
    %154 = vector.extract_strided_slice %152 {offsets = [0, 0, 32], sizes = [2, 16, 32], strides = [1, 1, 1]} : vector<2x16x64xf32> to vector<2x16x32xf32>
    %155 = tpu.concatenate %153, %154 in 0 : vector<2x16x32xf32>, vector<2x16x32xf32> -> vector<4x16x32xf32>
    %156 = vector.extract_strided_slice %146 {offsets = [0, 0, 0], sizes = [2, 64, 32], strides = [1, 1, 1]} : vector<2x64x64xf32> to vector<2x64x32xf32>
    %157 = vector.extract_strided_slice %146 {offsets = [0, 0, 32], sizes = [2, 64, 32], strides = [1, 1, 1]} : vector<2x64x64xf32> to vector<2x64x32xf32>
    %158 = tpu.concatenate %156, %157 in 0 : vector<2x64x32xf32>, vector<2x64x32xf32> -> vector<4x64x32xf32>
    %159 = vector.extract_strided_slice %147 {offsets = [0, 0, 0], sizes = [2, 64, 32], strides = [1, 1, 1]} : vector<2x64x64xf32> to vector<2x64x32xf32>
    %160 = vector.extract_strided_slice %147 {offsets = [0, 0, 32], sizes = [2, 64, 32], strides = [1, 1, 1]} : vector<2x64x64xf32> to vector<2x64x32xf32>
    %161 = tpu.concatenate %159, %160 in 0 : vector<2x64x32xf32>, vector<2x64x32xf32> -> vector<4x64x32xf32>
    %162 = arith.truncf %155 : vector<4x16x32xf32> to vector<4x16x32xbf16>
    %163 = arith.truncf %158 : vector<4x64x32xf32> to vector<4x64x32xbf16>
    "tpu.trace_start"() <{level = 10 : i32, message = "bqd,bkd->bqk"}> : () -> ()
    %cst_48 = arith.constant dense<0.000000e+00> : vector<4x16x64xf32>
    %164 = tpu.matmul %162, %163, %cst_48 {dimension_numbers = #tpu.dot_dimension_numbers<[2], [2], [1], [1], [0, 0, 0, 1, 1, 1], [0], [0]>} : vector<4x16x32xbf16>, vector<4x64x32xbf16>, vector<4x16x64xf32> -> vector<4x16x64xf32>
    "tpu.trace_stop"() : () -> ()
    %cst_49 = arith.constant 0.176776692 : f32
    %165 = vector.broadcast %cst_49 : f32 to vector<4x16x64xf32>
    %166 = arith.mulf %164, %165 : vector<4x16x64xf32>
    %cst_50 = arith.constant dense<0xFF800000> : vector<4x16xf32>
    %167 = vector.multi_reduction <maximumf>, %166, %cst_50 [2] : vector<4x16x64xf32> to vector<4x16xf32>
    %168 = vector.shape_cast %167 : vector<4x16xf32> to vector<4x16x1xf32>
    %169 = vector.broadcast %168 : vector<4x16x1xf32> to vector<4x16x64xf32>
    %170 = arith.subf %166, %169 : vector<4x16x64xf32>
    %171 = math.exp %170 : vector<4x16x64xf32>
    %cst_51 = arith.constant dense<0.000000e+00> : vector<4x16xf32>
    %172 = vector.multi_reduction <add>, %171, %cst_51 [2] : vector<4x16x64xf32> to vector<4x16xf32>
    %173 = vector.shape_cast %172 : vector<4x16xf32> to vector<4x16x1xf32>
    %174 = tpu.reciprocal %173 {approx = true} : vector<4x16x1xf32> -> vector<4x16x1xf32>
    %175 = vector.broadcast %174 : vector<4x16x1xf32> to vector<4x16x64xf32>
    %176 = arith.mulf %171, %175 : vector<4x16x64xf32>
    %177 = arith.truncf %176 : vector<4x16x64xf32> to vector<4x16x64xbf16>
    %178 = arith.truncf %161 : vector<4x64x32xf32> to vector<4x64x32xbf16>
    "tpu.trace_start"() <{level = 10 : i32, message = "bqk,bkd->bqd"}> : () -> ()
    %cst_52 = arith.constant dense<0.000000e+00> : vector<4x16x32xf32>
    %179 = tpu.matmul %177, %178, %cst_52 {dimension_numbers = #tpu.dot_dimension_numbers<[2], [1], [1], [2], [0, 0, 0, 1, 1, 2], [0], [0]>} : vector<4x16x64xbf16>, vector<4x64x32xbf16>, vector<4x16x32xf32> -> vector<4x16x32xf32>
    "tpu.trace_stop"() : () -> ()
    %180 = vector.extract_strided_slice %2 {offsets = [12, 0], sizes = [1, 64], strides = [1, 1]} : vector<24x256xf32> to vector<1x64xf32>
    %181 = vector.extract_strided_slice %179 {offsets = [0, 0, 0], sizes = [2, 16, 32], strides = [1, 1, 1]} : vector<4x16x32xf32> to vector<2x16x32xf32>
    %182 = vector.shape_cast %181 : vector<2x16x32xf32> to vector<32x32xf32>
    %183 = arith.truncf %182 : vector<32x32xf32> to vector<32x32xbf16>
    %c0_53 = arith.constant 0 : index
    %c0_54 = arith.constant 0 : index
    %c0_55 = arith.constant 0 : index
    %184 = vector.load %arg10[%c0_53, %c0_54, %c0_55] : memref<2x32x64xbf16, #tpu.memory_space<vmem>>, vector<1x32x64xbf16>
    %185 = vector.shape_cast %184 : vector<1x32x64xbf16> to vector<32x64xbf16>
    %cst_56 = arith.constant dense<0.000000e+00> : vector<32x64xf32>
    %186 = tpu.matmul %183, %185, %cst_56 {dimension_numbers = #tpu.dot_dimension_numbers<[1], [0], [0], [1], [0, 0, 1, 1], [], []>} : vector<32x32xbf16>, vector<32x64xbf16>, vector<32x64xf32> -> vector<32x64xf32>
    %187 = vector.broadcast %180 : vector<1x64xf32> to vector<32x64xf32>
    %188 = arith.addf %187, %186 : vector<32x64xf32>
    %189 = vector.extract_strided_slice %179 {offsets = [2, 0, 0], sizes = [2, 16, 32], strides = [1, 1, 1]} : vector<4x16x32xf32> to vector<2x16x32xf32>
    %190 = vector.shape_cast %189 : vector<2x16x32xf32> to vector<32x32xf32>
    %191 = arith.truncf %190 : vector<32x32xf32> to vector<32x32xbf16>
    %c1 = arith.constant 1 : index
    %c0_57 = arith.constant 0 : index
    %c0_58 = arith.constant 0 : index
    %192 = vector.load %arg10[%c1, %c0_57, %c0_58] : memref<2x32x64xbf16, #tpu.memory_space<vmem>>, vector<1x32x64xbf16>
    %193 = vector.shape_cast %192 : vector<1x32x64xbf16> to vector<32x64xbf16>
    %cst_59 = arith.constant dense<0.000000e+00> : vector<32x64xf32>
    %194 = tpu.matmul %191, %193, %cst_59 {dimension_numbers = #tpu.dot_dimension_numbers<[1], [0], [0], [1], [0, 0, 1, 1], [], []>} : vector<32x32xbf16>, vector<32x64xbf16>, vector<32x64xf32> -> vector<32x64xf32>
    %195 = arith.addf %188, %194 : vector<32x64xf32>
    %196 = arith.addf %151, %195 : vector<32x64xf32>
    %197 = vector.extract_strided_slice %2 {offsets = [13, 0], sizes = [1, 64], strides = [1, 1]} : vector<24x256xf32> to vector<1x64xf32>
    %198 = vector.extract_strided_slice %2 {offsets = [14, 0], sizes = [1, 64], strides = [1, 1]} : vector<24x256xf32> to vector<1x64xf32>
    %cst_60 = arith.constant dense<0.000000e+00> : vector<32xf32>
    %199 = vector.multi_reduction <add>, %196, %cst_60 [1] : vector<32x64xf32> to vector<32xf32>
    %200 = vector.shape_cast %199 : vector<32xf32> to vector<32x1xf32>
    %cst_61 = arith.constant 6.400000e+01 : f32
    %201 = vector.broadcast %cst_61 : f32 to vector<32x1xf32>
    %202 = arith.divf %200, %201 : vector<32x1xf32>
    %203 = vector.broadcast %202 : vector<32x1xf32> to vector<32x64xf32>
    %204 = arith.subf %196, %203 : vector<32x64xf32>
    %205 = arith.mulf %204, %204 : vector<32x64xf32>
    %cst_62 = arith.constant dense<0.000000e+00> : vector<32xf32>
    %206 = vector.multi_reduction <add>, %205, %cst_62 [1] : vector<32x64xf32> to vector<32xf32>
    %207 = vector.shape_cast %206 : vector<32xf32> to vector<32x1xf32>
    %cst_63 = arith.constant 6.400000e+01 : f32
    %208 = vector.broadcast %cst_63 : f32 to vector<32x1xf32>
    %209 = arith.divf %207, %208 : vector<32x1xf32>
    %cst_64 = arith.constant 9.99999997E-7 : f32
    %210 = vector.broadcast %cst_64 : f32 to vector<32x1xf32>
    %211 = arith.addf %209, %210 : vector<32x1xf32>
    %212 = math.rsqrt %211 : vector<32x1xf32>
    %213 = vector.broadcast %212 : vector<32x1xf32> to vector<32x64xf32>
    %214 = arith.mulf %204, %213 : vector<32x64xf32>
    %215 = vector.broadcast %197 : vector<1x64xf32> to vector<32x64xf32>
    %216 = arith.mulf %214, %215 : vector<32x64xf32>
    %217 = vector.broadcast %198 : vector<1x64xf32> to vector<32x64xf32>
    %218 = arith.addf %216, %217 : vector<32x64xf32>
    %c0_65 = arith.constant 0 : index
    %c0_66 = arith.constant 0 : index
    %219 = vector.load %arg11[%c0_65, %c0_66] : memref<64x256xbf16, #tpu.memory_space<vmem>>, vector<64x256xbf16>
    %220 = arith.truncf %218 : vector<32x64xf32> to vector<32x64xbf16>
    %cst_67 = arith.constant dense<0.000000e+00> : vector<32x256xf32>
    %221 = tpu.matmul %220, %219, %cst_67 {dimension_numbers = #tpu.dot_dimension_numbers<[1], [0], [0], [1], [0, 0, 1, 1], [], []>} : vector<32x64xbf16>, vector<64x256xbf16>, vector<32x256xf32> -> vector<32x256xf32>
    %222 = vector.extract_strided_slice %2 {offsets = [15, 0], sizes = [1, 256], strides = [1, 1]} : vector<24x256xf32> to vector<1x256xf32>
    %223 = vector.broadcast %222 : vector<1x256xf32> to vector<32x256xf32>
    %224 = arith.addf %221, %223 : vector<32x256xf32>
    %225 = arith.mulf %224, %224 : vector<32x256xf32>
    %226 = arith.mulf %224, %225 : vector<32x256xf32>
    %cst_68 = arith.constant 4.471500e-02 : f32
    %227 = vector.broadcast %cst_68 : f32 to vector<32x256xf32>
    %228 = arith.mulf %227, %226 : vector<32x256xf32>
    %229 = arith.addf %224, %228 : vector<32x256xf32>
    %cst_69 = arith.constant 0.797884583 : f32
    %230 = vector.broadcast %cst_69 : f32 to vector<32x256xf32>
    %231 = arith.mulf %230, %229 : vector<32x256xf32>
    %232 = math.tanh %231 : vector<32x256xf32>
    %cst_70 = arith.constant 1.000000e+00 : f32
    %233 = vector.broadcast %cst_70 : f32 to vector<32x256xf32>
    %234 = arith.addf %233, %232 : vector<32x256xf32>
    %cst_71 = arith.constant 5.000000e-01 : f32
    %235 = vector.broadcast %cst_71 : f32 to vector<32x256xf32>
    %236 = arith.mulf %235, %234 : vector<32x256xf32>
    %237 = arith.mulf %224, %236 : vector<32x256xf32>
    %c0_72 = arith.constant 0 : index
    %c0_73 = arith.constant 0 : index
    %238 = vector.load %arg12[%c0_72, %c0_73] : memref<256x64xbf16, #tpu.memory_space<vmem>>, vector<256x64xbf16>
    %239 = arith.truncf %237 : vector<32x256xf32> to vector<32x256xbf16>
    %cst_74 = arith.constant dense<0.000000e+00> : vector<32x64xf32>
    %240 = tpu.matmul %239, %238, %cst_74 {dimension_numbers = #tpu.dot_dimension_numbers<[1], [0], [0], [1], [0, 0, 1, 1], [], []>} : vector<32x256xbf16>, vector<256x64xbf16>, vector<32x64xf32> -> vector<32x64xf32>
    %241 = arith.addf %196, %240 : vector<32x64xf32>
    %242 = vector.extract_strided_slice %2 {offsets = [16, 0], sizes = [1, 64], strides = [1, 1]} : vector<24x256xf32> to vector<1x64xf32>
    %243 = vector.broadcast %242 : vector<1x64xf32> to vector<32x64xf32>
    %244 = arith.addf %241, %243 : vector<32x64xf32>
    %245 = vector.extract_strided_slice %244 {offsets = [0, 0], sizes = [16, 64], strides = [1, 1]} : vector<32x64xf32> to vector<16x64xf32>
    %246 = vector.extract_strided_slice %244 {offsets = [16, 0], sizes = [16, 64], strides = [1, 1]} : vector<32x64xf32> to vector<16x64xf32>
    %247 = arith.subf %245, %246 : vector<16x64xf32>
    %248 = math.absf %247 : vector<16x64xf32>
    %249 = vector.shape_cast %248 : vector<16x64xf32> to vector<1x16x64xf32>
    %cst_75 = arith.constant dense<0.000000e+00> : vector<1xf32>
    %250 = vector.multi_reduction <add>, %249, %cst_75 [1, 2] : vector<1x16x64xf32> to vector<1xf32>
    %251 = vector.shape_cast %250 : vector<1xf32> to vector<1x1x1xf32>
    %252 = vector.extract %251[0, 0, 0] : f32 from vector<1x1x1xf32>
    %253 = vector.broadcast %252 : f32 to vector<1x8x128xf32>
    %c0_76 = arith.constant 0 : index
    %c0_77 = arith.constant 0 : index
    %c0_78 = arith.constant 0 : index
    %254 = vector.load %arg13[%c0_76, %c0_77, %c0_78] : memref<1x8x128xf32, #tpu.memory_space<vmem>>, vector<1x8x128xf32>
    tpu.vector_store %arg13[%c0_76, %c0_77, %c0_78], %253 {strides = array<i32>} : memref<1x8x128xf32, #tpu.memory_space<vmem>>, vector<1x8x128xf32>,
    return
  }
  func.func @transform_0(%arg0: i32) -> (i32, i32, i32) {
    %c0_i32 = arith.constant 0 : i32
    %c0_i32_0 = arith.constant 0 : i32
    %c0_i32_1 = arith.constant 0 : i32
    return %arg0, %c0_i32, %c0_i32_0 : i32, i32, i32
  }
  func.func @transform_1(%arg0: i32) -> (i32, i32) {
    %c0_i32 = arith.constant 0 : i32
    %c0_i32_0 = arith.constant 0 : i32
    %c0_i32_1 = arith.constant 0 : i32
    return %c0_i32, %c0_i32_0 : i32, i32
  }
  func.func @transform_2(%arg0: i32) -> (i32, i32) {
    %c0_i32 = arith.constant 0 : i32
    %c0_i32_0 = arith.constant 0 : i32
    %c0_i32_1 = arith.constant 0 : i32
    return %c0_i32, %c0_i32_0 : i32, i32
  }
  func.func @transform_3(%arg0: i32) -> (i32, i32) {
    %c0_i32 = arith.constant 0 : i32
    %c0_i32_0 = arith.constant 0 : i32
    %c0_i32_1 = arith.constant 0 : i32
    return %c0_i32, %c0_i32_0 : i32, i32
  }
  func.func @transform_4(%arg0: i32) -> (i32, i32) {
    %c0_i32 = arith.constant 0 : i32
    %c0_i32_0 = arith.constant 0 : i32
    %c0_i32_1 = arith.constant 0 : i32
    return %c0_i32, %c0_i32_0 : i32, i32
  }
  func.func @transform_5(%arg0: i32) -> (i32, i32) {
    %c0_i32 = arith.constant 0 : i32
    %c0_i32_0 = arith.constant 0 : i32
    %c0_i32_1 = arith.constant 0 : i32
    return %c0_i32, %c0_i32_0 : i32, i32
  }
  func.func @transform_6(%arg0: i32) -> (i32, i32) {
    %c0_i32 = arith.constant 0 : i32
    %c0_i32_0 = arith.constant 0 : i32
    %c0_i32_1 = arith.constant 0 : i32
    return %c0_i32, %c0_i32_0 : i32, i32
  }
  func.func @transform_7(%arg0: i32) -> (i32, i32) {
    %c0_i32 = arith.constant 0 : i32
    %c0_i32_0 = arith.constant 0 : i32
    %c0_i32_1 = arith.constant 0 : i32
    return %c0_i32, %c0_i32_0 : i32, i32
  }
  func.func @transform_8(%arg0: i32) -> (i32, i32) {
    %c0_i32 = arith.constant 0 : i32
    %c0_i32_0 = arith.constant 0 : i32
    %c0_i32_1 = arith.constant 0 : i32
    return %c0_i32, %c0_i32_0 : i32, i32
  }
  func.func @transform_9(%arg0: i32) -> (i32, i32, i32) {
    %c0_i32 = arith.constant 0 : i32
    %c0_i32_0 = arith.constant 0 : i32
    %c0_i32_1 = arith.constant 0 : i32
    %c0_i32_2 = arith.constant 0 : i32
    return %c0_i32, %c0_i32_0, %c0_i32_1 : i32, i32, i32
  }
  func.func @transform_10(%arg0: i32) -> (i32, i32) {
    %c0_i32 = arith.constant 0 : i32
    %c0_i32_0 = arith.constant 0 : i32
    %c0_i32_1 = arith.constant 0 : i32
    return %c0_i32, %c0_i32_0 : i32, i32
  }
  func.func @transform_11(%arg0: i32) -> (i32, i32) {
    %c0_i32 = arith.constant 0 : i32
    %c0_i32_0 = arith.constant 0 : i32
    %c0_i32_1 = arith.constant 0 : i32
    return %c0_i32, %c0_i32_0 : i32, i32
  }
  func.func @transform_12(%arg0: i32) -> (i32, i32, i32) {
    %c0_i32 = arith.constant 0 : i32
    %c0_i32_0 = arith.constant 0 : i32
    %c0_i32_1 = arith.constant 0 : i32
    return %arg0, %c0_i32, %c0_i32_0 : i32, i32, i32
  }
}

</mosaic_0001>

<llo_original>
// kernel: hiera_perceptual_loss.1
$region0: #{hiera_perceptual_loss.1}
  #allocation0 [shape = 'u32[]', space=smem, size = 0x4, offset = 0x4, fixed_abs, tag = 'smem constant byte address 0x4 - core index']
  #allocation1 [shape = 'u32[144,128]{1,0:T(1,128)}', space=vmem, size = 0x12000, scoped, tag = 'internal scratch']
  %s0 = inlined_call_operand.vmem [shape: f32[2,128,147], index: 0, kind: input, shape index: {}]
  %s1 = inlined_call_operand.vmem [shape: f32[128,32], index: 1, kind: input, shape index: {}]
  %s2 = inlined_call_operand.vmem [shape: f32[24,256], index: 2, kind: input, shape index: {}]
  %s3 = inlined_call_operand.vmem [shape: bf16[147,32], index: 3, kind: input, shape index: {}]
  %s4 = inlined_call_operand.vmem [shape: bf16[32,96], index: 4, kind: input, shape index: {}]
  %s5 = inlined_call_operand.vmem [shape: bf16[32,32], index: 5, kind: input, shape index: {}]
  %s6 = inlined_call_operand.vmem [shape: bf16[32,128], index: 6, kind: input, shape index: {}]
  %s7 = inlined_call_operand.vmem [shape: bf16[128,32], index: 7, kind: input, shape index: {}]
  %s8 = inlined_call_operand.vmem [shape: bf16[32,256], index: 8, kind: input, shape index: {}]
  %s9 = inlined_call_operand.vmem [shape: bf16[2,32,64], index: 9, kind: input, shape index: {}]
  %s10 = inlined_call_operand.vmem [shape: bf16[64,256], index: 10, kind: input, shape index: {}]
  %s11 = inlined_call_operand.vmem [shape: bf16[256,64], index: 11, kind: input, shape index: {}]
  %s12 = inlined_call_operand.vmem [shape: f32[2,8,128], index: 12, kind: output, shape index: {}]
  %s13 = sld [smem:[#allocation0]]
  $region81: #{hiera_perceptual_loss.1} parent=0
    _
  %s15 = ssub.s32 1, %s13
  %s16 = scalar_select 0, %s15, %s13
  loop: start=0, step=1, limit=4
  $region2: #{hiera_perceptual_loss.1} parent=0 // loop_pre_header
    _
  $region3: #{hiera_perceptual_loss.1} parent=0 // loop_header
    %s18 = sphi 0, %s22
    %p19 = scmp.ge.s32.totalorder %s18, 4
    %s28 = sphi 0, %s30
    %s31 = sphi 0, %s28
    %s32 = sphi 0, %s31
    %s48 = sphi 0, %s32
    %s52 = sphi 0, %s52
    %s54 = sphi 0, %s52
    %s55 = sphi 0, %s54
    %s69 = sphi 0, %s55
    %s73 = sphi 0, %s73
    %s75 = sphi 0, %s73
    %s76 = sphi 0, %s75
    %s90 = sphi 0, %s76
    %s94 = sphi 0, %s94
    %s96 = sphi 0, %s94
    %s97 = sphi 0, %s96
    %s111 = sphi 0, %s97
    %s115 = sphi 0, %s115
    %s117 = sphi 0, %s115
    %s118 = sphi 0, %s117
    %s132 = sphi 0, %s118
    %s136 = sphi 0, %s136
    %s138 = sphi 0, %s136
    %s139 = sphi 0, %s138
    %s153 = sphi 0, %s139
    %s157 = sphi 0, %s157
    %s159 = sphi 0, %s157
    %s160 = sphi 0, %s159
    %s174 = sphi 0, %s160
    %s178 = sphi 0, %s178
    %s180 = sphi 0, %s178
    %s181 = sphi 0, %s180
    %s195 = sphi 0, %s181
    %s199 = sphi 0, %s199
    %s201 = sphi 0, %s199
    %s202 = sphi 0, %s201
    %s216 = sphi 0, %s202
    %s220 = sphi 0, %s220
    %s222 = sphi 0, %s220
    %s223 = sphi 0, %s222
    %s237 = sphi 0, %s223
    %s241 = sphi 0, %s241
    %s243 = sphi 0, %s241
    %s244 = sphi 0, %s243
    %s258 = sphi 0, %s244
    %s262 = sphi 0, %s262
    %s264 = sphi 0, %s262
    %s265 = sphi 0, %s264
    %s279 = sphi 0, %s265
    %s285 = sphi 0, %s287
    %s288 = sphi 0, %s285
    %s289 = sphi 0, %s288
    %s305 = sphi 0, %s289
  $region4: #{hiera_perceptual_loss.1} parent=0 // loop_header_branch
    %21 = sbr.rel (%p19) target = $region8
  $region5: #{hiera_perceptual_loss.1} parent=0 // loop_body
    %s23 = ssub.s32 %s18, 1
    %s24 = ssub.s32 %s18, 2
    %s25 = sadd.s32 %s18, 1
    %s26 = ssub.s32 %s18, %s25
    %p27 = scmp.eq.s32.totalorder %s26, 0
    %s29 = sadd.s32 %s28, 1
    %s30 = scalar_select %p27, %s28, %s29
    %p33 = pneg %p27
    %p34 = scmp.eq.s32.totalorder %s18, 1
    %p35 = por %p33, %p34
    %p36 = scmp.ne.s32.totalorder %s28, %s31
    %p37 = scmp.eq.s32.totalorder %s18, 0
    %p38 = por %p36, %p37
    %p39 = scmp.ne.s32.totalorder %s28, %s31
    %p40 = scmp.eq.s32.totalorder %s23, 1
    %p41 = por %p39, %p40
    %p42 = scmp.ne.s32.totalorder %s31, %s32
    %p43 = scmp.eq.s32.totalorder %s23, 0
    %p44 = por %p42, %p43
    %p45 = scmp.ne.s32.totalorder %s31, %s32
    %p46 = scmp.eq.s32.totalorder %s24, 1
    %p47 = por %p45, %p46
    %p49 = scmp.ne.s32.totalorder %s32, %s48
    %p50 = scmp.eq.s32.totalorder %s24, 0
    %p51 = por %p49, %p50
    %s53 = sadd.s32 %s52, 1
    %p56 = scmp.eq.s32.totalorder %s18, 1
    %p57 = scmp.ne.s32.totalorder %s52, %s54
    %p58 = scmp.eq.s32.totalorder %s18, 0
    %p59 = por %p57, %p58
    %p60 = scmp.ne.s32.totalorder %s52, %s54
    %p61 = scmp.eq.s32.totalorder %s23, 1
    %p62 = por %p60, %p61
    %p63 = scmp.ne.s32.totalorder %s54, %s55
    %p64 = scmp.eq.s32.totalorder %s23, 0
    %p65 = por %p63, %p64
    %p66 = scmp.ne.s32.totalorder %s54, %s55
    %p67 = scmp.eq.s32.totalorder %s24, 1
    %p68 = por %p66, %p67
    %p70 = scmp.ne.s32.totalorder %s55, %s69
    %p71 = scmp.eq.s32.totalorder %s24, 0
    %p72 = por %p70, %p71
    %s74 = sadd.s32 %s73, 1
    %p77 = scmp.eq.s32.totalorder %s18, 1
    %p78 = scmp.ne.s32.totalorder %s73, %s75
    %p79 = scmp.eq.s32.totalorder %s18, 0
    %p80 = por %p78, %p79
    %p81 = scmp.ne.s32.totalorder %s73, %s75
    %p82 = scmp.eq.s32.totalorder %s23, 1
    %p83 = por %p81, %p82
    %p84 = scmp.ne.s32.totalorder %s75, %s76
    %p85 = scmp.eq.s32.totalorder %s23, 0
    %p86 = por %p84, %p85
    %p87 = scmp.ne.s32.totalorder %s75, %s76
    %p88 = scmp.eq.s32.totalorder %s24, 1
    %p89 = por %p87, %p88
    %p91 = scmp.ne.s32.totalorder %s76, %s90
    %p92 = scmp.eq.s32.totalorder %s24, 0
    %p93 = por %p91, %p92
    %s95 = sadd.s32 %s94, 1
    %p98 = scmp.eq.s32.totalorder %s18, 1
    %p99 = scmp.ne.s32.totalorder %s94, %s96
    %p100 = scmp.eq.s32.totalorder %s18, 0
    %p101 = por %p99, %p100
    %p102 = scmp.ne.s32.totalorder %s94, %s96
    %p103 = scmp.eq.s32.totalorder %s23, 1
    %p104 = por %p102, %p103
    %p105 = scmp.ne.s32.totalorder %s96, %s97
    %p106 = scmp.eq.s32.totalorder %s23, 0
    %p107 = por %p105, %p106
    %p108 = scmp.ne.s32.totalorder %s96, %s97
    %p109 = scmp.eq.s32.totalorder %s24, 1
    %p110 = por %p108, %p109
    %p112 = scmp.ne.s32.totalorder %s97, %s111
    %p113 = scmp.eq.s32.totalorder %s24, 0
    %p114 = por %p112, %p113
    %s116 = sadd.s32 %s115, 1
    %p119 = scmp.eq.s32.totalorder %s18, 1
    %p120 = scmp.ne.s32.totalorder %s115, %s117
    %p121 = scmp.eq.s32.totalorder %s18, 0
    %p122 = por %p120, %p121
    %p123 = scmp.ne.s32.totalorder %s115, %s117
    %p124 = scmp.eq.s32.totalorder %s23, 1
    %p125 = por %p123, %p124
    %p126 = scmp.ne.s32.totalorder %s117, %s118
    %p127 = scmp.eq.s32.totalorder %s23, 0
    %p128 = por %p126, %p127
    %p129 = scmp.ne.s32.totalorder %s117, %s118
    %p130 = scmp.eq.s32.totalorder %s24, 1
    %p131 = por %p129, %p130
    %p133 = scmp.ne.s32.totalorder %s118, %s132
    %p134 = scmp.eq.s32.totalorder %s24, 0
    %p135 = por %p133, %p134
    %s137 = sadd.s32 %s136, 1
    %p140 = scmp.eq.s32.totalorder %s18, 1
    %p141 = scmp.ne.s32.totalorder %s136, %s138
    %p142 = scmp.eq.s32.totalorder %s18, 0
    %p143 = por %p141, %p142
    %p144 = scmp.ne.s32.totalorder %s136, %s138
    %p145 = scmp.eq.s32.totalorder %s23, 1
    %p146 = por %p144, %p145
    %p147 = scmp.ne.s32.totalorder %s138, %s139
    %p148 = scmp.eq.s32.totalorder %s23, 0
    %p149 = por %p147, %p148
    %p150 = scmp.ne.s32.totalorder %s138, %s139
    %p151 = scmp.eq.s32.totalorder %s24, 1
    %p152 = por %p150, %p151
    %p154 = scmp.ne.s32.totalorder %s139, %s153
    %p155 = scmp.eq.s32.totalorder %s24, 0
    %p156 = por %p154, %p155
    %s158 = sadd.s32 %s157, 1
    %p161 = scmp.eq.s32.totalorder %s18, 1
    %p162 = scmp.ne.s32.totalorder %s157, %s159
    %p163 = scmp.eq.s32.totalorder %s18, 0
    %p164 = por %p162, %p163
    %p165 = scmp.ne.s32.totalorder %s157, %s159
    %p166 = scmp.eq.s32.totalorder %s23, 1
    %p167 = por %p165, %p166
    %p168 = scmp.ne.s32.totalorder %s159, %s160
    %p169 = scmp.eq.s32.totalorder %s23, 0
    %p170 = por %p168, %p169
    %p171 = scmp.ne.s32.totalorder %s159, %s160
    %p172 = scmp.eq.s32.totalorder %s24, 1
    %p173 = por %p171, %p172
    %p175 = scmp.ne.s32.totalorder %s160, %s174
    %p176 = scmp.eq.s32.totalorder %s24, 0
    %p177 = por %p175, %p176
    %s179 = sadd.s32 %s178, 1
    %p182 = scmp.eq.s32.totalorder %s18, 1
    %p183 = scmp.ne.s32.totalorder %s178, %s180
    %p184 = scmp.eq.s32.totalorder %s18, 0
    %p185 = por %p183, %p184
    %p186 = scmp.ne.s32.totalorder %s178, %s180
    %p187 = scmp.eq.s32.totalorder %s23, 1
    %p188 = por %p186, %p187
    %p189 = scmp.ne.s32.totalorder %s180, %s181
    %p190 = scmp.eq.s32.totalorder %s23, 0
    %p191 = por %p189, %p190
    %p192 = scmp.ne.s32.totalorder %s180, %s181
    %p193 = scmp.eq.s32.totalorder %s24, 1
    %p194 = por %p192, %p193
    %p196 = scmp.ne.s32.totalorder %s181, %s195
    %p197 = scmp.eq.s32.totalorder %s24, 0
    %p198 = por %p196, %p197
    %s200 = sadd.s32 %s199, 1
    %p203 = scmp.eq.s32.totalorder %s18, 1
    %p204 = scmp.ne.s32.totalorder %s199, %s201
    %p205 = scmp.eq.s32.totalorder %s18, 0
    %p206 = por %p204, %p205
    %p207 = scmp.ne.s32.totalorder %s199, %s201
    %p208 = scmp.eq.s32.totalorder %s23, 1
    %p209 = por %p207, %p208
    %p210 = scmp.ne.s32.totalorder %s201, %s202
    %p211 = scmp.eq.s32.totalorder %s23, 0
    %p212 = por %p210, %p211
    %p213 = scmp.ne.s32.totalorder %s201, %s202
    %p214 = scmp.eq.s32.totalorder %s24, 1
    %p215 = por %p213, %p214
    %p217 = scmp.ne.s32.totalorder %s202, %s216
    %p218 = scmp.eq.s32.totalorder %s24, 0
    %p219 = por %p217, %p218
    %s221 = sadd.s32 %s220, 1
    %p224 = scmp.eq.s32.totalorder %s18, 1
    %p225 = scmp.ne.s32.totalorder %s220, %s222
    %p226 = scmp.eq.s32.totalorder %s18, 0
    %p227 = por %p225, %p226
    %p228 = scmp.ne.s32.totalorder %s220, %s222
    %p229 = scmp.eq.s32.totalorder %s23, 1
    %p230 = por %p228, %p229
    %p231 = scmp.ne.s32.totalorder %s222, %s223
    %p232 = scmp.eq.s32.totalorder %s23, 0
    %p233 = por %p231, %p232
    %p234 = scmp.ne.s32.totalorder %s222, %s223
    %p235 = scmp.eq.s32.totalorder %s24, 1
    %p236 = por %p234, %p235
    %p238 = scmp.ne.s32.totalorder %s223, %s237
    %p239 = scmp.eq.s32.totalorder %s24, 0
    %p240 = por %p238, %p239
    %s242 = sadd.s32 %s241, 1
    %p245 = scmp.eq.s32.totalorder %s18, 1
    %p246 = scmp.ne.s32.totalorder %s241, %s243
    %p247 = scmp.eq.s32.totalorder %s18, 0
    %p248 = por %p246, %p247
    %p249 = scmp.ne.s32.totalorder %s241, %s243
    %p250 = scmp.eq.s32.totalorder %s23, 1
    %p251 = por %p249, %p250
    %p252 = scmp.ne.s32.totalorder %s243, %s244
    %p253 = scmp.eq.s32.totalorder %s23, 0
    %p254 = por %p252, %p253
    %p255 = scmp.ne.s32.totalorder %s243, %s244
    %p256 = scmp.eq.s32.totalorder %s24, 1
    %p257 = por %p255, %p256
    %p259 = scmp.ne.s32.totalorder %s244, %s258
    %p260 = scmp.eq.s32.totalorder %s24, 0
    %p261 = por %p259, %p260
    %s263 = sadd.s32 %s262, 1
    %p266 = scmp.eq.s32.totalorder %s18, 1
    %p267 = scmp.ne.s32.totalorder %s262, %s264
    %p268 = scmp.eq.s32.totalorder %s18, 0
    %p269 = por %p267, %p268
    %p270 = scmp.ne.s32.totalorder %s262, %s264
    %p271 = scmp.eq.s32.totalorder %s23, 1
    %p272 = por %p270, %p271
    %p273 = scmp.ne.s32.totalorder %s264, %s265
    %p274 = scmp.eq.s32.totalorder %s23, 0
    %p275 = por %p273, %p274
    %p276 = scmp.ne.s32.totalorder %s264, %s265
    %p277 = scmp.eq.s32.totalorder %s24, 1
    %p278 = por %p276, %p277
    %p280 = scmp.ne.s32.totalorder %s265, %s279
    %p281 = scmp.eq.s32.totalorder %s24, 0
    %p282 = por %p280, %p281
    %s283 = ssub.s32 %s18, %s25
    %p284 = scmp.eq.s32.totalorder %s283, 0
    %s286 = sadd.s32 %s285, 1
    %s287 = scalar_select %p284, %s285, %s286
    %p290 = pneg %p284
    %p291 = scmp.eq.s32.totalorder %s18, 1
    %p292 = por %p290, %p291
    %p293 = scmp.ne.s32.totalorder %s285, %s288
    %p294 = scmp.eq.s32.totalorder %s18, 0
    %p295 = por %p293, %p294
    %p296 = scmp.ne.s32.totalorder %s285, %s288
    %p297 = scmp.eq.s32.totalorder %s23, 1
    %p298 = por %p296, %p297
    %p299 = scmp.ne.s32.totalorder %s288, %s289
    %p300 = scmp.eq.s32.totalorder %s23, 0
    %p301 = por %p299, %p300
    %p302 = scmp.ne.s32.totalorder %s288, %s289
    %p303 = scmp.eq.s32.totalorder %s24, 1
    %p304 = por %p302, %p303
    %p306 = scmp.ne.s32.totalorder %s289, %s305
    %p307 = scmp.eq.s32.totalorder %s24, 0
    %p308 = por %p306, %p307
    %p309 = scmp.le.s32.totalorder 1, %s18
    %p310 = scmp.lt.s32.totalorder %s18, 3
    %p311 = pnand %p309, %p310
    %p312 = pneg %p311
    // Predicated region
    $region9: #{hiera_perceptual_loss.1} parent=5 // pred_check
      _
    $region10: #{hiera_perceptual_loss.1} parent=5 // pred_check_branch
      %314 = sbr.rel (%p311) target = $region12
    $region11: #{hiera_perceptual_loss.1} parent=5 // pred_region
      %s315 = ssub.s32 %s18, 1
      // Predicated region
      $region13: #{hiera_perceptual_loss.1} parent=11 // pred_check
        %p316 = pneg %p65
      $region14: #{hiera_perceptual_loss.1} parent=11 // pred_check_branch
        %318 = sbr.rel (%p316) target = $region16
      $region15: #{hiera_perceptual_loss.1} parent=11 // pred_region
        _
      $region16: #{hiera_perceptual_loss.1} parent=11 // pred_fallthru
        _
      // Predicated region
      $region17: #{hiera_perceptual_loss.1} parent=11 // pred_check
        %p319 = pneg %p86
      $region18: #{hiera_perceptual_loss.1} parent=11 // pred_check_branch
        %321 = sbr.rel (%p319) target = $region20
      $region19: #{hiera_perceptual_loss.1} parent=11 // pred_region
        _
      $region20: #{hiera_perceptual_loss.1} parent=11 // pred_fallthru
        _
      // Predicated region
      $region21: #{hiera_perceptual_loss.1} parent=11 // pred_check
        %p322 = pneg %p107
      $region22: #{hiera_perceptual_loss.1} parent=11 // pred_check_branch
        %324 = sbr.rel (%p322) target = $region24
      $region23: #{hiera_perceptual_loss.1} parent=11 // pred_region
        _
      $region24: #{hiera_perceptual_loss.1} parent=11 // pred_fallthru
        _
      // Predicated region
      $region25: #{hiera_perceptual_loss.1} parent=11 // pred_check
        %p325 = pneg %p128
      $region26: #{hiera_perceptual_loss.1} parent=11 // pred_check_branch
        %327 = sbr.rel (%p325) target = $region28
      $region27: #{hiera_perceptual_loss.1} parent=11 // pred_region
        _
      $region28: #{hiera_perceptual_loss.1} parent=11 // pred_fallthru
        _
      // Predicated region
      $region29: #{hiera_perceptual_loss.1} parent=11 // pred_check
        %p328 = pneg %p149
      $region30: #{hiera_perceptual_loss.1} parent=11 // pred_check_branch
        %330 = sbr.rel (%p328) target = $region32
      $region31: #{hiera_perceptual_loss.1} parent=11 // pred_region
        _
      $region32: #{hiera_perceptual_loss.1} parent=11 // pred_fallthru
        _
      // Predicated region
      $region33: #{hiera_perceptual_loss.1} parent=11 // pred_check
        %p331 = pneg %p170
      $region34: #{hiera_perceptual_loss.1} parent=11 // pred_check_branch
        %333 = sbr.rel (%p331) target = $region36
      $region35: #{hiera_perceptual_loss.1} parent=11 // pred_region
        _
      $region36: #{hiera_perceptual_loss.1} parent=11 // pred_fallthru
        _
      // Predicated region
      $region37: #{hiera_perceptual_loss.1} parent=11 // pred_check
        %p334 = pneg %p191
      $region38: #{hiera_perceptual_loss.1} parent=11 // pred_check_branch
        %336 = sbr.rel (%p334) target = $region40
      $region39: #{hiera_perceptual_loss.1} parent=11 // pred_region
        _
      $region40: #{hiera_perceptual_loss.1} parent=11 // pred_fallthru
        _
      // Predicated region
      $region41: #{hiera_perceptual_loss.1} parent=11 // pred_check
        %p337 = pneg %p212
      $region42: #{hiera_perceptual_loss.1} parent=11 // pred_check_branch
        %339 = sbr.rel (%p337) target = $region44
      $region43: #{hiera_perceptual_loss.1} parent=11 // pred_region
        _
      $region44: #{hiera_perceptual_loss.1} parent=11 // pred_fallthru
        _
      // Predicated region
      $region45: #{hiera_perceptual_loss.1} parent=11 // pred_check
        %p340 = pneg %p233
      $region46: #{hiera_perceptual_loss.1} parent=11 // pred_check_branch
        %342 = sbr.rel (%p340) target = $region48
      $region47: #{hiera_perceptual_loss.1} parent=11 // pred_region
        _
      $region48: #{hiera_perceptual_loss.1} parent=11 // pred_fallthru
        _
      // Predicated region
      $region49: #{hiera_perceptual_loss.1} parent=11 // pred_check
        %p343 = pneg %p254
      $region50: #{hiera_perceptual_loss.1} parent=11 // pred_check_branch
        %345 = sbr.rel (%p343) target = $region52
      $region51: #{hiera_perceptual_loss.1} parent=11 // pred_region
        _
      $region52: #{hiera_perceptual_loss.1} parent=11 // pred_fallthru
        _
      // Predicated region
      $region53: #{hiera_perceptual_loss.1} parent=11 // pred_check
        %p346 = pneg %p275
      $region54: #{hiera_perceptual_loss.1} parent=11 // pred_check_branch
        %348 = sbr.rel (%p346) target = $region56
      $region55: #{hiera_perceptual_loss.1} parent=11 // pred_region
        _
      $region56: #{hiera_perceptual_loss.1} parent=11 // pred_fallthru
        _
    $region12: #{hiera_perceptual_loss.1} parent=5 // pred_fallthru
      _
    %p349 = scmp.lt.s32.totalorder %s18, 2
    // Predicated region
    $region57: #{hiera_perceptual_loss.1} parent=5 // pred_check
      %p350 = pneg %p349
    $region58: #{hiera_perceptual_loss.1} parent=5 // pred_check_branch
      %352 = sbr.rel (%p350) target = $region60
    $region59: #{hiera_perceptual_loss.1} parent=5 // pred_region
      // Predicated region
      $region61: #{hiera_perceptual_loss.1} parent=59 // pred_check
        %p353 = pneg %p38
      $region62: #{hiera_perceptual_loss.1} parent=59 // pred_check_branch
        %355 = sbr.rel (%p353) target = $region64
      $region63: #{hiera_perceptual_loss.1} parent=59 // pred_region
        %p356 = scmp.lt.s32.totalorder %s18, 1
        %s357 = scalar_select %p356, %s18, 1
        %s358 = smul.addr %s357, 32
        %s359 = smul.addr %s358, 8
        %s360 = scalar_lea.vmem %s0, %s359
      $region64: #{hiera_perceptual_loss.1} parent=59 // pred_fallthru
        _
    $region60: #{hiera_perceptual_loss.1} parent=5 // pred_fallthru
      _
    %p361 = scmp.le.s32.totalorder 1, %s18
    %p362 = scmp.lt.s32.totalorder %s18, 3
    %p363 = pnand %p361, %p362
    %p364 = pneg %p363
    // Predicated region
    $region65: #{hiera_perceptual_loss.1} parent=5 // pred_check
      _
    $region66: #{hiera_perceptual_loss.1} parent=5 // pred_check_branch
      %366 = sbr.rel (%p363) target = $region68
    $region67: #{hiera_perceptual_loss.1} parent=5 // pred_region
      %s367 = ssub.s32 %s18, 1
      %p368 = scmp.lt.s32.totalorder %s23, 1
      %s369 = scalar_select %p368, %s23, 1
      %s370 = smul.addr %s369, 32
      %s371 = smul.addr %s370, 8
      %s372 = scalar_lea.vmem %s0, %s371
      %p373 = pneg %p44
      %p374 = pneg %p41
      %p375 = pneg %p65
      %p376 = pneg %p62
      %p377 = pneg %p86
      %p378 = pneg %p83
      %p379 = pneg %p107
      %p380 = pneg %p104
      %p381 = pneg %p128
      %p382 = pneg %p125
      %p383 = pneg %p149
      %p384 = pneg %p146
      %p385 = pneg %p170
      %p386 = pneg %p167
      %p387 = pneg %p191
      %p388 = pneg %p188
      %p389 = pneg %p212
      %p390 = pneg %p209
      %p391 = pneg %p233
      %p392 = pneg %p230
      %p393 = pneg %p254
      %p394 = pneg %p251
      %p395 = pneg %p275
      %p396 = pneg %p272
      %p397 = pneg %p301
      %p398 = pneg %p298
      %p399 = scmp.lt.s32.totalorder %s23, 1
      %s400 = scalar_select %p399, %s23, 1
      %s401 = smul.addr %s400, 8
      %s402 = scalar_lea.vmem %s12, %s401
      %p403 = scmp.lt.s32.totalorder %s23, 1
      %s404 = scalar_select %p403, %s23, 1
      %s405 = smul.addr %s404, 32
      %s406 = smul.addr %s405, 8
      %s407 = scalar_lea.vmem %s0, %s406
      %p408 = scmp.lt.s32.totalorder %s23, 1
      %s409 = scalar_select %p408, %s23, 1
      %s410 = smul.addr %s409, 8
      %s411 = scalar_lea.vmem %s12, %s410
      %v413 = vld [vmem:[%s407] sm:$0xff]
      %v414 = vld [vmem:[%s407 + $0x8] sm:$0xff]
      %v415 = vld [vmem:[%s407 + $0x10] sm:$0xff]
      %v416 = vld [vmem:[%s407 + $0x18] sm:$0xff]
      %v417 = vld [vmem:[%s407 + $0x20] sm:$0xff]
      %v418 = vld [vmem:[%s407 + $0x28] sm:$0xff]
      %v419 = vld [vmem:[%s407 + $0x30] sm:$0xff]
      %v420 = vld [vmem:[%s407 + $0x38] sm:$0xff]
      %v421 = vld [vmem:[%s407 + $0x40] sm:$0xff]
      %v422 = vld [vmem:[%s407 + $0x48] sm:$0xff]
      %v423 = vld [vmem:[%s407 + $0x50] sm:$0xff]
      %v424 = vld [vmem:[%s407 + $0x58] sm:$0xff]
      %v425 = vld [vmem:[%s407 + $0x60] sm:$0xff]
      %v426 = vld [vmem:[%s407 + $0x68] sm:$0xff]
      %v427 = vld [vmem:[%s407 + $0x70] sm:$0xff]
      %v428 = vld [vmem:[%s407 + $0x78] sm:$0xff]
      %v429 = vld [vmem:[%s407 + $0x80] sm:$0xff]
      %v430 = vld [vmem:[%s407 + $0x88] sm:$0xff]
      %v431 = vld [vmem:[%s407 + $0x90] sm:$0xff]
      %v432 = vld [vmem:[%s407 + $0x98] sm:$0xff]
      %v433 = vld [vmem:[%s407 + $0xa0] sm:$0xff]
      %v434 = vld [vmem:[%s407 + $0xa8] sm:$0xff]
      %v435 = vld [vmem:[%s407 + $0xb0] sm:$0xff]
      %v436 = vld [vmem:[%s407 + $0xb8] sm:$0xff]
      %v437 = vld [vmem:[%s407 + $0xc0] sm:$0xff]
      %v438 = vld [vmem:[%s407 + $0xc8] sm:$0xff]
      %v439 = vld [vmem:[%s407 + $0xd0] sm:$0xff]
      %v440 = vld [vmem:[%s407 + $0xd8] sm:$0xff]
      %v441 = vld [vmem:[%s407 + $0xe0] sm:$0xff]
      %v442 = vld [vmem:[%s407 + $0xe8] sm:$0xff]
      %v443 = vld [vmem:[%s407 + $0xf0] sm:$0xff]
      %v444 = vld [vmem:[%s407 + $0xf8] sm:$0xff]
      %v445 = vld [vmem:[%s2] sm:$0xff]
      %v446 = vld [vmem:[%s2 + $0x10] sm:$0xff]
      %v447 = vld [vmem:[%s2 + $0x18] sm:$0xff]
      %v448 = vld [vmem:[%s2 + $0x20] sm:$0xff]
      %v449 = vld [vmem:[%s3] sm:$0xf]
      %v450 = vld [vmem:[%s3 + $0x4] sm:$0xf]
      %v451 = vld [vmem:[%s3 + $0x8] sm:$0xf]
      %v452 = vld [vmem:[%s3 + $0xc] sm:$0xf]
      %v453 = vld [vmem:[%s3 + $0x10] sm:$0xf]
      %v454 = vld [vmem:[%s3 + $0x14] sm:$0xf]
      %v455 = vld [vmem:[%s3 + $0x18] sm:$0xf]
      %v456 = vld [vmem:[%s3 + $0x1c] sm:$0xf]
      %v457 = vld [vmem:[%s3 + $0x20] sm:$0xf]
      %v458 = vld [vmem:[%s3 + $0x24] sm:$0xf]
      %v459 = vld [vmem:[%s3 + $0x28] sm:$0xf]
      %v460 = vld [vmem:[%s3 + $0x2c] sm:$0xf]
      %v461 = vld [vmem:[%s3 + $0x30] sm:$0xf]
      %v462 = vld [vmem:[%s3 + $0x34] sm:$0xf]
      %v463 = vld [vmem:[%s3 + $0x38] sm:$0xf]
      %v464 = vld [vmem:[%s3 + $0x3c] sm:$0xf]
      %v465 = vld [vmem:[%s3 + $0x40] sm:$0xf]
      %v466 = vld [vmem:[%s3 + $0x44] sm:$0xf]
      %v467 = vld [vmem:[%s3 + $0x48] sm:$0x3]
      %v468 = vpack.c.bf16 %v415, %v413
      %v469 = vpack.c.bf16 %v416, %v414
      %v470 = vpack.c.bf16 %v419, %v417
      %v471 = vpack.c.bf16 %v420, %v418
      %v472 = vpack.c.bf16 %v423, %v421
      %v473 = vpack.c.bf16 %v424, %v422
      %v474 = vpack.c.bf16 %v427, %v425
      %v475 = vpack.c.bf16 %v428, %v426
      %v476 = vpack.c.bf16 %v431, %v429
      %v477 = vpack.c.bf16 %v432, %v430
      %v478 = vpack.c.bf16 %v435, %v433
      %v479 = vpack.c.bf16 %v436, %v434
      %v480 = vpack.c.bf16 %v439, %v437
      %v481 = vpack.c.bf16 %v440, %v438
      %v482 = vpack.c.bf16 %v443, %v441
      %v483 = vpack.c.bf16 %v444, %v442
      %v484 = vlaneseq
      %v485 = vshrl.u32 %v484, 7
      %v486 = vsub.s32 0, %v485
      %v487 = vrot.slane %v445, %v486
      %v507 = vunpack.c.l.b16 %v449
      %v508 = vunpack.c.l.b16 %v450
      %v509 = vunpack.c.l.b16 %v451
      %v510 = vunpack.c.l.b16 %v452
      %v511 = vunpack.c.l.b16 %v453
      %v512 = vunpack.c.l.b16 %v454
      %v513 = vunpack.c.l.b16 %v455
      %v514 = vunpack.c.l.b16 %v456
      %v515 = vunpack.c.l.b16 %v457
      %v516 = vunpack.c.l.b16 %v458
      %v517 = vunpack.c.l.b16 %v459
      %v518 = vunpack.c.l.b16 %v460
      %v519 = vunpack.c.l.b16 %v461
      %v520 = vunpack.c.l.b16 %v462
      %v521 = vunpack.c.l.b16 %v463
      %v522 = vunpack.c.l.b16 %v464
      %v523 = vunpack.c.l.b16 %v465
      %v524 = vunpack.c.l.b16 %v466
      %v525 = vunpack.c.l.b16 %v467
      %v526 = vpack.c.b16 %v508, %v507
      %v527 = vpack.c.b16 %v510, %v509
      %v528 = vpack.c.b16 %v512, %v511
      %v529 = vpack.c.b16 %v514, %v513
      %v530 = vpack.c.b16 %v516, %v515
      %v531 = vpack.c.b16 %v518, %v517
      %v532 = vpack.c.b16 %v520, %v519
      %v533 = vpack.c.b16 %v522, %v521
      %v534 = vpack.c.b16 %v524, %v523
      %v535 = vpack.c.b16 %v525, %v525
      %vm545 = vcmask 154624
      %v547 = vsel %vm545, %v469, 0
      %v550 = vsel %vm545, %v471, 0
      %v553 = vsel %vm545, %v473, 0
      %v556 = vsel %vm545, %v475, 0
      %v559 = vsel %vm545, %v477, 0
      %v562 = vsel %vm545, %v479, 0
      %v565 = vsel %vm545, %v481, 0
      %v568 = vsel %vm545, %v483, 0
      %vm570 = vcmask 1040384
      %vm571 = vcmask 1041408
      %v572 = vsel %vm570, 4294967295, 65535
      %v573 = vsel %vm571, %v572, 0
      %v575 = vand.u32 %v535, %v573
      %577 = vmatprep.subr.bf16.mxu0 0
      %578 = vmatpush1.bf16.msra.mxu0 %v526
      %579 = vmatprep.subr.bf16.mxu0 0
      %580 = vmatpush1.bf16.msra.mxu0 %v527
      %581 = vmatprep.subr.bf16.mxu0 0
      %582 = vmatpush1.bf16.msra.mxu0 %v528
      %583 = vmatprep.subr.bf16.mxu0 0
      %584 = vmatpush1.bf16.msra.mxu0 %v529
      %585 = vmatprep.subr.bf16.mxu0 0
      %586 = vmatpush1.bf16.msra.mxu0 %v530
      %587 = vmatprep.subr.bf16.mxu0 0
      %588 = vmatpush1.bf16.msra.mxu0 %v531
      %589 = vmatprep.subr.bf16.mxu0 0
      %590 = vmatpush1.bf16.msra.mxu0 %v532
      %591 = vmatprep.subr.bf16.mxu0 0
      %592 = vmatpush1.bf16.msra.mxu0 %v533
      %593 = vmatprep.subr.bf16.mxu0 0
      %594 = vmatpush1.bf16.msra.mxu0 %v534
      %595 = vmatprep.subr.bf16.mxu0 0
      %596 = vmatpush1.bf16.msra.mxu0 %v575
      %597 = vmatprep.subr.bf16.mxu0 0
      %598 = vmatpush1.bf16.msra.mxu0 0
      %599 = vmatprep.subr.bf16.mxu0 0
      %600 = vmatpush1.bf16.msra.mxu0 0
      %601 = vmatprep.subr.bf16.mxu0 0
      %602 = vmatpush1.bf16.msra.mxu0 0
      %603 = vmatprep.subr.bf16.mxu0 0
      %604 = vmatpush1.bf16.msra.mxu0 0
      %605 = vmatprep.subr.bf16.mxu0 0
      %606 = vmatpush1.bf16.msra.mxu0 0
      %607 = vmatprep.subr.bf16.mxu0 0
      %608 = vmatpush1.bf16.msra.mxu0 0
      %609 = vmatprep.mubr.bf16.mxu0 %v547
      %610 = vmatmul.mubr.bf16.gmra.mrb[0].mxu0 %v468
      %v611 = vpop.f32.mrb[0].mxu0
      %v612 = vadd.f32 %v487, %v611
      %v613 = vpop.f32.mrb[0].mxu0
      %v614 = vpop.f32.mrb[0].mxu0
      %v615 = vadd.f32 %v487, %v614
      %v616 = vpop.f32.mrb[0].mxu0
      %617 = vmatprep.mubr.bf16.mxu0 %v550
      %618 = vmatmul.mubr.bf16.gmra.mrb[0].mxu0 %v470
      %v619 = vpop.f32.mrb[0].mxu0
      %v620 = vadd.f32 %v487, %v619
      %v621 = vpop.f32.mrb[0].mxu0
      %v622 = vpop.f32.mrb[0].mxu0
      %v623 = vadd.f32 %v487, %v622
      %v624 = vpop.f32.mrb[0].mxu0
      %625 = vmatprep.mubr.bf16.mxu0 %v553
      %626 = vmatmul.mubr.bf16.gmra.mrb[0].mxu0 %v472
      %v627 = vpop.f32.mrb[0].mxu0
      %v628 = vadd.f32 %v487, %v627
      %v629 = vpop.f32.mrb[0].mxu0
      %v630 = vpop.f32.mrb[0].mxu0
      %v631 = vadd.f32 %v487, %v630
      %v632 = vpop.f32.mrb[0].mxu0
      %633 = vmatprep.mubr.bf16.mxu0 %v556
      %634 = vmatmul.mubr.bf16.gmra.mrb[0].mxu0 %v474
      %v635 = vpop.f32.mrb[0].mxu0
      %v636 = vadd.f32 %v487, %v635
      %v637 = vpop.f32.mrb[0].mxu0
      %v638 = vpop.f32.mrb[0].mxu0
      %v639 = vadd.f32 %v487, %v638
      %v640 = vpop.f32.mrb[0].mxu0
      %641 = vmatprep.mubr.bf16.mxu0 %v559
      %642 = vmatmul.mubr.bf16.gmra.mrb[0].mxu0 %v476
      %v643 = vpop.f32.mrb[0].mxu0
      %v644 = vadd.f32 %v487, %v643
      %v645 = vpop.f32.mrb[0].mxu0
      %v646 = vpop.f32.mrb[0].mxu0
      %v647 = vadd.f32 %v487, %v646
      %v648 = vpop.f32.mrb[0].mxu0
      %649 = vmatprep.mubr.bf16.mxu0 %v562
      %650 = vmatmul.mubr.bf16.gmra.mrb[0].mxu0 %v478
      %v651 = vpop.f32.mrb[0].mxu0
      %v652 = vadd.f32 %v487, %v651
      %v653 = vpop.f32.mrb[0].mxu0
      %v654 = vpop.f32.mrb[0].mxu0
      %v655 = vadd.f32 %v487, %v654
      %v656 = vpop.f32.mrb[0].mxu0
      %657 = vmatprep.mubr.bf16.mxu0 %v565
      %658 = vmatmul.mubr.bf16.gmra.mrb[0].mxu0 %v480
      %v659 = vpop.f32.mrb[0].mxu0
      %v660 = vadd.f32 %v487, %v659
      %v661 = vpop.f32.mrb[0].mxu0
      %v662 = vpop.f32.mrb[0].mxu0
      %v663 = vadd.f32 %v487, %v662
      %v664 = vpop.f32.mrb[0].mxu0
      %665 = vmatprep.mubr.bf16.mxu0 %v568
      %666 = vmatmul.mubr.bf16.gmra.mrb[0].mxu0 %v482
      %v667 = vpop.f32.mrb[0].mxu0
      %v668 = vadd.f32 %v487, %v667
      %v669 = vpop.f32.mrb[0].mxu0
      %v670 = vpop.f32.mrb[0].mxu0
      %v671 = vadd.f32 %v487, %v670
      %v672 = vpop.f32.mrb[0].mxu0
      %673 = vdwg.mxu0
      %v674 = vld [vmem:[%s1] sm:$0xff]
      %v675 = vld [vmem:[%s1 + $0x8] sm:$0xff]
      %v676 = vld [vmem:[%s1 + $0x10] sm:$0xff]
      %v677 = vld [vmem:[%s1 + $0x18] sm:$0xff]
      %v678 = vld [vmem:[%s1 + $0x20] sm:$0xff]
      %v679 = vld [vmem:[%s1 + $0x28] sm:$0xff]
      %v680 = vld [vmem:[%s1 + $0x30] sm:$0xff]
      %v681 = vld [vmem:[%s1 + $0x38] sm:$0xff]
      %v682 = vld [vmem:[%s1 + $0x40] sm:$0xff]
      %v683 = vld [vmem:[%s1 + $0x48] sm:$0xff]
      %v684 = vld [vmem:[%s1 + $0x50] sm:$0xff]
      %v685 = vld [vmem:[%s1 + $0x58] sm:$0xff]
      %v686 = vld [vmem:[%s1 + $0x60] sm:$0xff]
      %v687 = vld [vmem:[%s1 + $0x68] sm:$0xff]
      %v688 = vld [vmem:[%s1 + $0x70] sm:$0xff]
      %v689 = vld [vmem:[%s1 + $0x78] sm:$0xff]
      %v690 = vadd.f32 %v612, %v674
      %v691 = vadd.f32 %v615, %v675
      %v692 = vadd.f32 %v620, %v676
      %v693 = vadd.f32 %v623, %v677
      %v694 = vadd.f32 %v628, %v678
      %v695 = vadd.f32 %v631, %v679
      %v696 = vadd.f32 %v636, %v680
      %v697 = vadd.f32 %v639, %v681
      %v698 = vadd.f32 %v644, %v682
      %v699 = vadd.f32 %v647, %v683
      %v700 = vadd.f32 %v652, %v684
      %v701 = vadd.f32 %v655, %v685
      %v702 = vadd.f32 %v660, %v686
      %v703 = vadd.f32 %v663, %v687
      %v704 = vadd.f32 %v668, %v688
      %v705 = vadd.f32 %v671, %v689
      %vm706 = vcmask 261120
      %v707 = vsel %vm706, %v690, 0.0
      %708 = vadd.xlane.f32.xlu0 %v707
      %v709 = vpop.xlane.xlu0 %708
      %v710 = vsel %vm706, %v691, 0.0
      %711 = vadd.xlane.f32.xlu0 %v710
      %v712 = vpop.xlane.xlu0 %711
      %v713 = vsel %vm706, %v692, 0.0
      %714 = vadd.xlane.f32.xlu0 %v713
      %v715 = vpop.xlane.xlu0 %714
      %v716 = vsel %vm706, %v693, 0.0
      %717 = vadd.xlane.f32.xlu0 %v716
      %v718 = vpop.xlane.xlu0 %717
      %v719 = vsel %vm706, %v694, 0.0
      %720 = vadd.xlane.f32.xlu0 %v719
      %v721 = vpop.xlane.xlu0 %720
      %v722 = vsel %vm706, %v695, 0.0
      %723 = vadd.xlane.f32.xlu0 %v722
      %v724 = vpop.xlane.xlu0 %723
      %v725 = vsel %vm706, %v696, 0.0
      %726 = vadd.xlane.f32.xlu0 %v725
      %v727 = vpop.xlane.xlu0 %726
      %v728 = vsel %vm706, %v697, 0.0
      %729 = vadd.xlane.f32.xlu0 %v728
      %v730 = vpop.xlane.xlu0 %729
      %v731 = vsel %vm706, %v698, 0.0
      %732 = vadd.xlane.f32.xlu0 %v731
      %v733 = vpop.xlane.xlu0 %732
      %v734 = vsel %vm706, %v699, 0.0
      %735 = vadd.xlane.f32.xlu0 %v734
      %v736 = vpop.xlane.xlu0 %735
      %v737 = vsel %vm706, %v700, 0.0
      %738 = vadd.xlane.f32.xlu0 %v737
      %v739 = vpop.xlane.xlu0 %738
      %v740 = vsel %vm706, %v701, 0.0
      %741 = vadd.xlane.f32.xlu0 %v740
      %v742 = vpop.xlane.xlu0 %741
      %v743 = vsel %vm706, %v702, 0.0
      %744 = vadd.xlane.f32.xlu0 %v743
      %v745 = vpop.xlane.xlu0 %744
      %v746 = vsel %vm706, %v703, 0.0
      %747 = vadd.xlane.f32.xlu0 %v746
      %v748 = vpop.xlane.xlu0 %747
      %v749 = vsel %vm706, %v704, 0.0
      %750 = vadd.xlane.f32.xlu0 %v749
      %v751 = vpop.xlane.xlu0 %750
      %v752 = vsel %vm706, %v705, 0.0
      %753 = vadd.xlane.f32.xlu0 %v752
      %v754 = vpop.xlane.xlu0 %753
      %v755 = vrcp.pop 32.0
      %v756 = vmul.f32 %v709, %v755
      %v757 = vmul.f32 %v712, %v755
      %v758 = vmul.f32 %v715, %v755
      %v759 = vmul.f32 %v718, %v755
      %v760 = vmul.f32 %v721, %v755
      %v761 = vmul.f32 %v724, %v755
      %v762 = vmul.f32 %v727, %v755
      %v763 = vmul.f32 %v730, %v755
      %v764 = vmul.f32 %v733, %v755
      %v765 = vmul.f32 %v736, %v755
      %v766 = vmul.f32 %v739, %v755
      %v767 = vmul.f32 %v742, %v755
      %v768 = vmul.f32 %v745, %v755
      %v769 = vmul.f32 %v748, %v755
      %v770 = vmul.f32 %v751, %v755
      %v771 = vmul.f32 %v754, %v755
      %v772 = vsub.f32 %v690, %v756
      %v773 = vsub.f32 %v691, %v757
      %v774 = vsub.f32 %v692, %v758
      %v775 = vsub.f32 %v693, %v759
      %v776 = vsub.f32 %v694, %v760
      %v777 = vsub.f32 %v695, %v761
      %v778 = vsub.f32 %v696, %v762
      %v779 = vsub.f32 %v697, %v763
      %v780 = vsub.f32 %v698, %v764
      %v781 = vsub.f32 %v699, %v765
      %v782 = vsub.f32 %v700, %v766
      %v783 = vsub.f32 %v701, %v767
      %v784 = vsub.f32 %v702, %v768
      %v785 = vsub.f32 %v703, %v769
      %v786 = vsub.f32 %v704, %v770
      %v787 = vsub.f32 %v705, %v771
      %v788 = vmul.f32 %v772, %v772
      %v789 = vmul.f32 %v773, %v773
      %v790 = vmul.f32 %v774, %v774
      %v791 = vmul.f32 %v775, %v775
      %v792 = vmul.f32 %v776, %v776
      %v793 = vmul.f32 %v777, %v777
      %v794 = vmul.f32 %v778, %v778
      %v795 = vmul.f32 %v779, %v779
      %v796 = vmul.f32 %v780, %v780
      %v797 = vmul.f32 %v781, %v781
      %v798 = vmul.f32 %v782, %v782
      %v799 = vmul.f32 %v783, %v783
      %v800 = vmul.f32 %v784, %v784
      %v801 = vmul.f32 %v785, %v785
      %v802 = vmul.f32 %v786, %v786
      %v803 = vmul.f32 %v787, %v787
      %v804 = vsel %vm706, %v788, 0.0
      %805 = vadd.xlane.f32.xlu0 %v804
      %v806 = vpop.xlane.xlu0 %805
      %v807 = vsel %vm706, %v789, 0.0
      %808 = vadd.xlane.f32.xlu0 %v807
      %v809 = vpop.xlane.xlu0 %808
      %v810 = vsel %vm706, %v790, 0.0
      %811 = vadd.xlane.f32.xlu0 %v810
      %v812 = vpop.xlane.xlu0 %811
      %v813 = vsel %vm706, %v791, 0.0
      %814 = vadd.xlane.f32.xlu0 %v813
      %v815 = vpop.xlane.xlu0 %814
      %v816 = vsel %vm706, %v792, 0.0
      %817 = vadd.xlane.f32.xlu0 %v816
      %v818 = vpop.xlane.xlu0 %817
      %v819 = vsel %vm706, %v793, 0.0
      %820 = vadd.xlane.f32.xlu0 %v819
      %v821 = vpop.xlane.xlu0 %820
      %v822 = vsel %vm706, %v794, 0.0
      %823 = vadd.xlane.f32.xlu0 %v822
      %v824 = vpop.xlane.xlu0 %823
      %v825 = vsel %vm706, %v795, 0.0
      %826 = vadd.xlane.f32.xlu0 %v825
      %v827 = vpop.xlane.xlu0 %826
      %v828 = vsel %vm706, %v796, 0.0
      %829 = vadd.xlane.f32.xlu0 %v828
      %v830 = vpop.xlane.xlu0 %829
      %v831 = vsel %vm706, %v797, 0.0
      %832 = vadd.xlane.f32.xlu0 %v831
      %v833 = vpop.xlane.xlu0 %832
      %v834 = vsel %vm706, %v798, 0.0
      %835 = vadd.xlane.f32.xlu0 %v834
      %v836 = vpop.xlane.xlu0 %835
      %v837 = vsel %vm706, %v799, 0.0
      %838 = vadd.xlane.f32.xlu0 %v837
      %v839 = vpop.xlane.xlu0 %838
      %v840 = vsel %vm706, %v800, 0.0
      %841 = vadd.xlane.f32.xlu0 %v840
      %v842 = vpop.xlane.xlu0 %841
      %v843 = vsel %vm706, %v801, 0.0
      %844 = vadd.xlane.f32.xlu0 %v843
      %v845 = vpop.xlane.xlu0 %844
      %v846 = vsel %vm706, %v802, 0.0
      %847 = vadd.xlane.f32.xlu0 %v846
      %v848 = vpop.xlane.xlu0 %847
      %v849 = vsel %vm706, %v803, 0.0
      %850 = vadd.xlane.f32.xlu0 %v849
      %v851 = vpop.xlane.xlu0 %850
      %v852 = vmul.f32 %v806, %v755
      %v853 = vmul.f32 %v809, %v755
      %v854 = vmul.f32 %v812, %v755
      %v855 = vmul.f32 %v815, %v755
      %v856 = vmul.f32 %v818, %v755
      %v857 = vmul.f32 %v821, %v755
      %v858 = vmul.f32 %v824, %v755
      %v859 = vmul.f32 %v827, %v755
      %v860 = vmul.f32 %v830, %v755
      %v861 = vmul.f32 %v833, %v755
      %v862 = vmul.f32 %v836, %v755
      %v863 = vmul.f32 %v839, %v755
      %v864 = vmul.f32 %v842, %v755
      %v865 = vmul.f32 %v845, %v755
      %v866 = vmul.f32 %v848, %v755
      %v867 = vmul.f32 %v851, %v755
      %v868 = vadd.f32 %v852, 1e-06
      %v869 = vadd.f32 %v853, 1e-06
      %v870 = vadd.f32 %v854, 1e-06
      %v871 = vadd.f32 %v855, 1e-06
      %v872 = vadd.f32 %v856, 1e-06
      %v873 = vadd.f32 %v857, 1e-06
      %v874 = vadd.f32 %v858, 1e-06
      %v875 = vadd.f32 %v859, 1e-06
      %v876 = vadd.f32 %v860, 1e-06
      %v877 = vadd.f32 %v861, 1e-06
      %v878 = vadd.f32 %v862, 1e-06
      %v879 = vadd.f32 %v863, 1e-06
      %v880 = vadd.f32 %v864, 1e-06
      %v881 = vadd.f32 %v865, 1e-06
      %v882 = vadd.f32 %v866, 1e-06
      %v883 = vadd.f32 %v867, 1e-06
      %v884 = vrsqrt.pop %v868
      %v885 = vrsqrt.pop %v869
      %v886 = vrsqrt.pop %v870
      %v887 = vrsqrt.pop %v871
      %v888 = vrsqrt.pop %v872
      %v889 = vrsqrt.pop %v873
      %v890 = vrsqrt.pop %v874
      %v891 = vrsqrt.pop %v875
      %v892 = vrsqrt.pop %v876
      %v893 = vrsqrt.pop %v877
      %v894 = vrsqrt.pop %v878
      %v895 = vrsqrt.pop %v879
      %v896 = vrsqrt.pop %v880
      %v897 = vrsqrt.pop %v881
      %v898 = vrsqrt.pop %v882
      %v899 = vrsqrt.pop %v883
      %v900 = vmul.f32 %v772, %v884
      %v901 = vmul.f32 %v773, %v885
      %v902 = vmul.f32 %v774, %v886
      %v903 = vmul.f32 %v775, %v887
      %v904 = vmul.f32 %v776, %v888
      %v905 = vmul.f32 %v777, %v889
      %v906 = vmul.f32 %v778, %v890
      %v907 = vmul.f32 %v779, %v891
      %v908 = vmul.f32 %v780, %v892
      %v909 = vmul.f32 %v781, %v893
      %v910 = vmul.f32 %v782, %v894
      %v911 = vmul.f32 %v783, %v895
      %v912 = vmul.f32 %v784, %v896
      %v913 = vmul.f32 %v785, %v897
      %v914 = vmul.f32 %v786, %v898
      %v915 = vmul.f32 %v787, %v899
      %v916 = vlaneseq
      %v917 = vshrl.u32 %v916, 7
      %v918 = vsub.s32 1, %v917
      %v919 = vrot.slane %v445, %v918
      %v920 = vmul.f32 %v900, %v919
      %v921 = vmul.f32 %v901, %v919
      %v922 = vmul.f32 %v902, %v919
      %v923 = vmul.f32 %v903, %v919
      %v924 = vmul.f32 %v904, %v919
      %v925 = vmul.f32 %v905, %v919
      %v926 = vmul.f32 %v906, %v919
      %v927 = vmul.f32 %v907, %v919
      %v928 = vmul.f32 %v908, %v919
      %v929 = vmul.f32 %v909, %v919
      %v930 = vmul.f32 %v910, %v919
      %v931 = vmul.f32 %v911, %v919
      %v932 = vmul.f32 %v912, %v919
      %v933 = vmul.f32 %v913, %v919
      %v934 = vmul.f32 %v914, %v919
      %v935 = vmul.f32 %v915, %v919
      %v936 = vlaneseq
      %v937 = vshrl.u32 %v936, 7
      %v938 = vsub.s32 2, %v937
      %v939 = vrot.slane %v445, %v938
      %v940 = vadd.f32 %v920, %v939
      %v941 = vadd.f32 %v921, %v939
      %v942 = vadd.f32 %v922, %v939
      %v943 = vadd.f32 %v923, %v939
      %v944 = vadd.f32 %v924, %v939
      %v945 = vadd.f32 %v925, %v939
      %v946 = vadd.f32 %v926, %v939
      %v947 = vadd.f32 %v927, %v939
      %v948 = vadd.f32 %v928, %v939
      %v949 = vadd.f32 %v929, %v939
      %v950 = vadd.f32 %v930, %v939
      %v951 = vadd.f32 %v931, %v939
      %v952 = vadd.f32 %v932, %v939
      %v953 = vadd.f32 %v933, %v939
      %v954 = vadd.f32 %v934, %v939
      %v955 = vadd.f32 %v935, %v939
      %v956 = vld [vmem:[%s4] sm:$0xf]
      %v957 = vld [vmem:[%s4 + $0x4] sm:$0xf]
      %v958 = vld [vmem:[%s4 + $0x8] sm:$0xf]
      %v959 = vld [vmem:[%s4 + $0xc] sm:$0xf]
      %v960 = vpack.c.bf16 %v941, %v940
      %v961 = vpack.c.bf16 %v943, %v942
      %v962 = vpack.c.bf16 %v945, %v944
      %v963 = vpack.c.bf16 %v947, %v946
      %v964 = vpack.c.bf16 %v949, %v948
      %v965 = vpack.c.bf16 %v951, %v950
      %v966 = vpack.c.bf16 %v953, %v952
      %v967 = vpack.c.bf16 %v955, %v954
      %v968 = vlaneseq
      %v969 = vshrl.u32 %v968, 7
      %v970 = vsub.s32 3, %v969
      %v971 = vrot.slane %v445, %v970
      %v976 = vunpack.c.l.b16 %v956
      %v977 = vunpack.c.l.b16 %v957
      %v978 = vunpack.c.l.b16 %v958
      %v979 = vunpack.c.l.b16 %v959
      %v980 = vpack.c.b16 %v977, %v976
      %v981 = vpack.c.b16 %v979, %v978
      %v985 = vsel %vm706, %v960, 0
      %v988 = vsel %vm706, %v961, 0
      %v991 = vsel %vm706, %v962, 0
      %v994 = vsel %vm706, %v963, 0
      %v997 = vsel %vm706, %v964, 0
      %v1000 = vsel %vm706, %v965, 0
      %v1003 = vsel %vm706, %v966, 0
      %v1006 = vsel %vm706, %v967, 0
      %1008 = vmatprep.subr.bf16.mxu0 0
      %1009 = vmatpush1.bf16.msra.mxu0 %v980
      %1010 = vmatprep.subr.bf16.mxu0 0
      %1011 = vmatpush1.bf16.msra.mxu0 %v981
      %1012 = vmatprep.subr.bf16.mxu0 0
      %1013 = vmatpush1.bf16.msra.mxu0 0
      %1014 = vmatprep.subr.bf16.mxu0 0
      %1015 = vmatpush1.bf16.msra.mxu0 0
      %1016 = vmatprep.subr.bf16.mxu0 0
      %1017 = vmatpush1.bf16.msra.mxu0 0
      %1018 = vmatprep.subr.bf16.mxu0 0
      %1019 = vmatpush1.bf16.msra.mxu0 0
      %1020 = vmatprep.subr.bf16.mxu0 0
      %1021 = vmatpush1.bf16.msra.mxu0 0
      %1022 = vmatprep.subr.bf16.mxu0 0
      %1023 = vmatpush1.bf16.msra.mxu0 0
      %1024 = vmatprep.subr.bf16.mxu0 0
      %1025 = vmatpush1.bf16.msra.mxu0 0
      %1026 = vmatprep.subr.bf16.mxu0 0
      %1027 = vmatpush1.bf16.msra.mxu0 0
      %1028 = vmatprep.subr.bf16.mxu0 0
      %1029 = vmatpush1.bf16.msra.mxu0 0
      %1030 = vmatprep.subr.bf16.mxu0 0
      %1031 = vmatpush1.bf16.msra.mxu0 0
      %1032 = vmatprep.subr.bf16.mxu0 0
      %1033 = vmatpush1.bf16.msra.mxu0 0
      %1034 = vmatprep.subr.bf16.mxu0 0
      %1035 = vmatpush1.bf16.msra.mxu0 0
      %1036 = vmatprep.subr.bf16.mxu0 0
      %1037 = vmatpush1.bf16.msra.mxu0 0
      %1038 = vmatprep.subr.bf16.mxu0 0
      %1039 = vmatpush1.bf16.msra.mxu0 0
      %1040 = vmatprep.mubr.bf16.mxu0 0
      %1041 = vmatmul.mubr.bf16.gmra.mrb[0].mxu0 %v985
      %v1042 = vpop.f32.mrb[0].mxu0
      %v1043 = vadd.f32 %v971, %v1042
      %v1044 = vpop.f32.mrb[0].mxu0
      %v1045 = vpop.f32.mrb[0].mxu0
      %v1046 = vadd.f32 %v971, %v1045
      %v1047 = vpop.f32.mrb[0].mxu0
      %1048 = vmatprep.mubr.bf16.mxu0 0
      %1049 = vmatmul.mubr.bf16.gmra.mrb[0].mxu0 %v988
      %v1050 = vpop.f32.mrb[0].mxu0
      %v1051 = vadd.f32 %v971, %v1050
      %v1052 = vpop.f32.mrb[0].mxu0
      %v1053 = vpop.f32.mrb[0].mxu0
      %v1054 = vadd.f32 %v971, %v1053
      %v1055 = vpop.f32.mrb[0].mxu0
      %1056 = vmatprep.mubr.bf16.mxu0 0
      %1057 = vmatmul.mubr.bf16.gmra.mrb[0].mxu0 %v991
      %v1058 = vpop.f32.mrb[0].mxu0
      %v1059 = vadd.f32 %v971, %v1058
      %v1060 = vpop.f32.mrb[0].mxu0
      %v1061 = vpop.f32.mrb[0].mxu0
      %v1062 = vadd.f32 %v971, %v1061
      %v1063 = vpop.f32.mrb[0].mxu0
      %1064 = vmatprep.mubr.bf16.mxu0 0
      %1065 = vmatmul.mubr.bf16.gmra.mrb[0].mxu0 %v994
      %v1066 = vpop.f32.mrb[0].mxu0
      %v1067 = vadd.f32 %v971, %v1066
      %v1068 = vpop.f32.mrb[0].mxu0
      %v1069 = vpop.f32.mrb[0].mxu0
      %v1070 = vadd.f32 %v971, %v1069
      %v1071 = vpop.f32.mrb[0].mxu0
      %1072 = vmatprep.mubr.bf16.mxu0 0
      %1073 = vmatmul.mubr.bf16.gmra.mrb[0].mxu0 %v997
      %v1074 = vpop.f32.mrb[0].mxu0
      %v1075 = vadd.f32 %v971, %v1074
      %v1076 = vpop.f32.mrb[0].mxu0
      %v1077 = vpop.f32.mrb[0].mxu0
      %v1078 = vadd.f32 %v971, %v1077
      %v1079 = vpop.f32.mrb[0].mxu0
      %1080 = vmatprep.mubr.bf16.mxu0 0
      %1081 = vmatmul.mubr.bf16.gmra.mrb[0].mxu0 %v1000
      %v1082 = vpop.f32.mrb[0].mxu0
      %v1083 = vadd.f32 %v971, %v1082
      %v1084 = vpop.f32.mrb[0].mxu0
      %v1085 = vpop.f32.mrb[0].mxu0
      %v1086 = vadd.f32 %v971, %v1085
      %v1087 = vpop.f32.mrb[0].mxu0
      %1088 = vmatprep.mubr.bf16.mxu0 0
      %1089 = vmatmul.mubr.bf16.gmra.mrb[0].mxu0 %v1003
      %v1090 = vpop.f32.mrb[0].mxu0
      %v1091 = vadd.f32 %v971, %v1090
      %v1092 = vpop.f32.mrb[0].mxu0
      %v1093 = vpop.f32.mrb[0].mxu0
      %v1094 = vadd.f32 %v971, %v1093
      %v1095 = vpop.f32.mrb[0].mxu0
      %1096 = vmatprep.mubr.bf16.mxu0 0
      %1097 = vmatmul.mubr.bf16.gmra.mrb[0].mxu0 %v1006
      %v1098 = vpop.f32.mrb[0].mxu0
      %v1099 = vadd.f32 %v971, %v1098
      %v1100 = vpop.f32.mrb[0].mxu0
      %v1101 = vpop.f32.mrb[0].mxu0
      %v1102 = vadd.f32 %v971, %v1101
      %v1103 = vpop.f32.mrb[0].mxu0
      %1104 = vdwg.mxu0
      %v1105 = vpack.c.bf16 %v1046, %v1043
      %v1106 = vpack.c.bf16 %v1054, %v1051
      %v1107 = vpack.c.bf16 %v1062, %v1059
      %v1108 = vpack.c.bf16 %v1070, %v1067
      %v1109 = vpack.c.bf16 %v1078, %v1075
      %v1110 = vpack.c.bf16 %v1086, %v1083
      %v1111 = vpack.c.bf16 %v1094, %v1091
      %v1112 = vpack.c.bf16 %v1102, %v1099
      %1117 = vrot.lane.b32.xlu0 %v1105, 96
      %v1118 = vpop.permute.xlu0 %1117
      %1119 = vrot.lane.b32.xlu0 %v1106, 96
      %v1120 = vpop.permute.xlu0 %1119
      %1121 = vrot.lane.b32.xlu0 %v1107, 96
      %v1122 = vpop.permute.xlu0 %1121
      %1123 = vrot.lane.b32.xlu0 %v1108, 96
      %v1124 = vpop.permute.xlu0 %1123
      %v1126 = vsel %vm706, %v1105, 0
      %v1129 = vsel %vm706, %v1106, 0
      %v1132 = vsel %vm706, %v1107, 0
      %v1135 = vsel %vm706, %v1108, 0
      %v1138 = vsel %vm706, %v1118, 0
      %v1141 = vsel %vm706, %v1120, 0
      %v1144 = vsel %vm706, %v1122, 0
      %v1147 = vsel %vm706, %v1124, 0
      %1149 = vmatprep.subr.bf16.mxu0 0
      %1150 = vmatpush1.bf16.xpose.msra.mxu0 %v1138
      %1151 = vmatprep.subr.bf16.mxu0 0
      %1152 = vmatpush1.bf16.xpose.msra.mxu0 %v1141
      %1153 = vmatprep.subr.bf16.mxu0 0
      %1154 = vmatpush1.bf16.xpose.msra.mxu0 %v1144
      %1155 = vmatprep.subr.bf16.mxu0 0
      %1156 = vmatpush1.bf16.xpose.msra.mxu0 %v1147
      %1157 = vmatprep.subr.bf16.mxu0 0
      %1158 = vmatpush1.bf16.xpose.msra.mxu0 0
      %1159 = vmatprep.subr.bf16.mxu0 0
      %1160 = vmatpush1.bf16.xpose.msra.mxu0 0
      %1161 = vmatprep.subr.bf16.mxu0 0
      %1162 = vmatpush1.bf16.xpose.msra.mxu0 0
      %1163 = vmatprep.subr.bf16.mxu0 0
      %1164 = vmatpush1.bf16.xpose.msra.mxu0 0
      %1165 = vmatprep.subr.bf16.mxu0 0
      %1166 = vmatpush1.bf16.xpose.msra.mxu0 0
      %1167 = vmatprep.subr.bf16.mxu0 0
      %1168 = vmatpush1.bf16.xpose.msra.mxu0 0
      %1169 = vmatprep.subr.bf16.mxu0 0
      %1170 = vmatpush1.bf16.xpose.msra.mxu0 0
      %1171 = vmatprep.subr.bf16.mxu0 0
      %1172 = vmatpush1.bf16.xpose.msra.mxu0 0
      %1173 = vmatprep.subr.bf16.mxu0 0
      %1174 = vmatpush1.bf16.xpose.msra.mxu0 0
      %1175 = vmatprep.subr.bf16.mxu0 0
      %1176 = vmatpush1.bf16.xpose.msra.mxu0 0
      %1177 = vmatprep.subr.bf16.mxu0 0
      %1178 = vmatpush1.bf16.xpose.msra.mxu0 0
      %1179 = vmatprep.subr.bf16.mxu0 0
      %1180 = vmatpush1.bf16.xpose.msra.mxu0 0
      %1181 = vmatprep.mubr.bf16.mxu0 0
      %1182 = vmatmul.mubr.bf16.gmra.mrb[0].mxu0 %v1126
      %v1183 = vpop.f32.mrb[0].mxu0
      %v1184 = vadd.f32 0.0, %v1183
      %v1185 = vpop.f32.mrb[0].mxu0
      %v1186 = vpop.f32.mrb[0].mxu0
      %v1187 = vadd.f32 0.0, %v1186
      %v1188 = vpop.f32.mrb[0].mxu0
      %1189 = vmatprep.mubr.bf16.mxu0 0
      %1190 = vmatmul.mubr.bf16.gmra.mrb[0].mxu0 %v1129
      %v1191 = vpop.f32.mrb[0].mxu0
      %v1192 = vadd.f32 0.0, %v1191
      %v1193 = vpop.f32.mrb[0].mxu0
      %v1194 = vpop.f32.mrb[0].mxu0
      %v1195 = vadd.f32 0.0, %v1194
      %v1196 = vpop.f32.mrb[0].mxu0
      %1197 = vmatprep.mubr.bf16.mxu0 0
      %1198 = vmatmul.mubr.bf16.gmra.mrb[0].mxu0 %v1132
      %v1199 = vpop.f32.mrb[0].mxu0
      %v1200 = vadd.f32 0.0, %v1199
      %v1201 = vpop.f32.mrb[0].mxu0
      %v1202 = vpop.f32.mrb[0].mxu0
      %v1203 = vadd.f32 0.0, %v1202
      %v1204 = vpop.f32.mrb[0].mxu0
      %1205 = vmatprep.mubr.bf16.mxu0 0
      %1206 = vmatmul.mubr.bf16.gmra.mrb[0].mxu0 %v1135
      %v1207 = vpop.f32.mrb[0].mxu0
      %v1208 = vadd.f32 0.0, %v1207
      %v1209 = vpop.f32.mrb[0].mxu0
      %v1210 = vpop.f32.mrb[0].mxu0
      %v1211 = vadd.f32 0.0, %v1210
      %v1212 = vpop.f32.mrb[0].mxu0
      %1213 = vdwg.mxu0
      %1218 = vrot.lane.b32.xlu0 %v1109, 96
      %v1219 = vpop.permute.xlu0 %1218
      %1220 = vrot.lane.b32.xlu0 %v1110, 96
      %v1221 = vpop.permute.xlu0 %1220
      %1222 = vrot.lane.b32.xlu0 %v1111, 96
      %v1223 = vpop.permute.xlu0 %1222
      %1224 = vrot.lane.b32.xlu0 %v1112, 96
      %v1225 = vpop.permute.xlu0 %1224
      %v1227 = vsel %vm706, %v1109, 0
      %v1230 = vsel %vm706, %v1110, 0
      %v1233 = vsel %vm706, %v1111, 0
      %v1236 = vsel %vm706, %v1112, 0
      %v1239 = vsel %vm706, %v1219, 0
      %v1242 = vsel %vm706, %v1221, 0
      %v1245 = vsel %vm706, %v1223, 0
      %v1248 = vsel %vm706, %v1225, 0
      %1250 = vmatprep.subr.bf16.mxu0 0
      %1251 = vmatpush1.bf16.xpose.msra.mxu0 %v1239
      %1252 = vmatprep.subr.bf16.mxu0 0
      %1253 = vmatpush1.bf16.xpose.msra.mxu0 %v1242
      %1254 = vmatprep.subr.bf16.mxu0 0
      %1255 = vmatpush1.bf16.xpose.msra.mxu0 %v1245
      %1256 = vmatprep.subr.bf16.mxu0 0
      %1257 = vmatpush1.bf16.xpose.msra.mxu0 %v1248
      %1258 = vmatprep.subr.bf16.mxu0 0
      %1259 = vmatpush1.bf16.xpose.msra.mxu0 0
      %1260 = vmatprep.subr.bf16.mxu0 0
      %1261 = vmatpush1.bf16.xpose.msra.mxu0 0
      %1262 = vmatprep.subr.bf16.mxu0 0
      %1263 = vmatpush1.bf16.xpose.msra.mxu0 0
      %1264 = vmatprep.subr.bf16.mxu0 0
      %1265 = vmatpush1.bf16.xpose.msra.mxu0 0
      %1266 = vmatprep.subr.bf16.mxu0 0
      %1267 = vmatpush1.bf16.xpose.msra.mxu0 0
      %1268 = vmatprep.subr.bf16.mxu0 0
      %1269 = vmatpush1.bf16.xpose.msra.mxu0 0
      %1270 = vmatprep.subr.bf16.mxu0 0
      %1271 = vmatpush1.bf16.xpose.msra.mxu0 0
      %1272 = vmatprep.subr.bf16.mxu0 0
      %1273 = vmatpush1.bf16.xpose.msra.mxu0 0
      %1274 = vmatprep.subr.bf16.mxu0 0
      %1275 = vmatpush1.bf16.xpose.msra.mxu0 0
      %1276 = vmatprep.subr.bf16.mxu0 0
      %1277 = vmatpush1.bf16.xpose.msra.mxu0 0
      %1278 = vmatprep.subr.bf16.mxu0 0
      %1279 = vmatpush1.bf16.xpose.msra.mxu0 0
      %1280 = vmatprep.subr.bf16.mxu0 0
      %1281 = vmatpush1.bf16.xpose.msra.mxu0 0
      %1282 = vmatprep.mubr.bf16.mxu0 0
      %1283 = vmatmul.mubr.bf16.gmra.mrb[0].mxu0 %v1227
      %v1284 = vpop.f32.mrb[0].mxu0
      %v1285 = vadd.f32 0.0, %v1284
      %v1286 = vpop.f32.mrb[0].mxu0
      %v1287 = vpop.f32.mrb[0].mxu0
      %v1288 = vadd.f32 0.0, %v1287
      %v1289 = vpop.f32.mrb[0].mxu0
      %1290 = vmatprep.mubr.bf16.mxu0 0
      %1291 = vmatmul.mubr.bf16.gmra.mrb[0].mxu0 %v1230
      %v1292 = vpop.f32.mrb[0].mxu0
      %v1293 = vadd.f32 0.0, %v1292
      %v1294 = vpop.f32.mrb[0].mxu0
      %v1295 = vpop.f32.mrb[0].mxu0
      %v1296 = vadd.f32 0.0, %v1295
      %v1297 = vpop.f32.mrb[0].mxu0
      %1298 = vmatprep.mubr.bf16.mxu0 0
      %1299 = vmatmul.mubr.bf16.gmra.mrb[0].mxu0 %v1233
      %v1300 = vpop.f32.mrb[0].mxu0
      %v1301 = vadd.f32 0.0, %v1300
      %v1302 = vpop.f32.mrb[0].mxu0
      %v1303 = vpop.f32.mrb[0].mxu0
      %v1304 = vadd.f32 0.0, %v1303
      %v1305 = vpop.f32.mrb[0].mxu0
      %1306 = vmatprep.mubr.bf16.mxu0 0
      %1307 = vmatmul.mubr.bf16.gmra.mrb[0].mxu0 %v1236
      %v1308 = vpop.f32.mrb[0].mxu0
      %v1309 = vadd.f32 0.0, %v1308
      %v1310 = vpop.f32.mrb[0].mxu0
      %v1311 = vpop.f32.mrb[0].mxu0
      %v1312 = vadd.f32 0.0, %v1311
      %v1313 = vpop.f32.mrb[0].mxu0
      %1314 = vdwg.mxu0
      %v1315 = vmul.f32 %v1184, 0.17677669
      %v1316 = vmul.f32 %v1187, 0.17677669
      %v1317 = vmul.f32 %v1192, 0.17677669
      %v1318 = vmul.f32 %v1195, 0.17677669
      %v1319 = vmul.f32 %v1200, 0.17677669
      %v1320 = vmul.f32 %v1203, 0.17677669
      %v1321 = vmul.f32 %v1208, 0.17677669
      %v1322 = vmul.f32 %v1211, 0.17677669
      %v1323 = vmul.f32 %v1285, 0.17677669
      %v1324 = vmul.f32 %v1288, 0.17677669
      %v1325 = vmul.f32 %v1293, 0.17677669
      %v1326 = vmul.f32 %v1296, 0.17677669
      %v1327 = vmul.f32 %v1301, 0.17677669
      %v1328 = vmul.f32 %v1304, 0.17677669
      %v1329 = vmul.f32 %v1309, 0.17677669
      %v1330 = vmul.f32 %v1312, 0.17677669
      %vm1331 = vcmask 523264
      %v1332 = vsel %vm1331, %v1315, -inf
      %1333 = vmax.xlane.f32.xlu0 %v1332
      %v1334 = vpop.xlane.xlu0 %1333
      %v1335 = vsel %vm1331, %v1316, -inf
      %1336 = vmax.xlane.f32.xlu0 %v1335
      %v1337 = vpop.xlane.xlu0 %1336
      %v1338 = vsel %vm1331, %v1317, -inf
      %1339 = vmax.xlane.f32.xlu0 %v1338
      %v1340 = vpop.xlane.xlu0 %1339
      %v1341 = vsel %vm1331, %v1318, -inf
      %1342 = vmax.xlane.f32.xlu0 %v1341
      %v1343 = vpop.xlane.xlu0 %1342
      %v1344 = vsel %vm1331, %v1319, -inf
      %1345 = vmax.xlane.f32.xlu0 %v1344
      %v1346 = vpop.xlane.xlu0 %1345
      %v1347 = vsel %vm1331, %v1320, -inf
      %1348 = vmax.xlane.f32.xlu0 %v1347
      %v1349 = vpop.xlane.xlu0 %1348
      %v1350 = vsel %vm1331, %v1321, -inf
      %1351 = vmax.xlane.f32.xlu0 %v1350
      %v1352 = vpop.xlane.xlu0 %1351
      %v1353 = vsel %vm1331, %v1322, -inf
      %1354 = vmax.xlane.f32.xlu0 %v1353
      %v1355 = vpop.xlane.xlu0 %1354
      %v1356 = vsel %vm1331, %v1323, -inf
      %1357 = vmax.xlane.f32.xlu0 %v1356
      %v1358 = vpop.xlane.xlu0 %1357
      %v1359 = vsel %vm1331, %v1324, -inf
      %1360 = vmax.xlane.f32.xlu0 %v1359
      %v1361 = vpop.xlane.xlu0 %1360
      %v1362 = vsel %vm1331, %v1325, -inf
      %1363 = vmax.xlane.f32.xlu0 %v1362
      %v1364 = vpop.xlane.xlu0 %1363
      %v1365 = vsel %vm1331, %v1326, -inf
      %1366 = vmax.xlane.f32.xlu0 %v1365
      %v1367 = vpop.xlane.xlu0 %1366
      %v1368 = vsel %vm1331, %v1327, -inf
      %1369 = vmax.xlane.f32.xlu0 %v1368
      %v1370 = vpop.xlane.xlu0 %1369
      %v1371 = vsel %vm1331, %v1328, -inf
      %1372 = vmax.xlane.f32.xlu0 %v1371
      %v1373 = vpop.xlane.xlu0 %1372
      %v1374 = vsel %vm1331, %v1329, -inf
      %1375 = vmax.xlane.f32.xlu0 %v1374
      %v1376 = vpop.xlane.xlu0 %1375
      %v1377 = vsel %vm1331, %v1330, -inf
      %1378 = vmax.xlane.f32.xlu0 %v1377
      %v1379 = vpop.xlane.xlu0 %1378
      %v1380 = vsub.f32 %v1315, %v1334
      %v1381 = vsub.f32 %v1316, %v1337
      %v1382 = vsub.f32 %v1317, %v1340
      %v1383 = vsub.f32 %v1318, %v1343
      %v1384 = vsub.f32 %v1319, %v1346
      %v1385 = vsub.f32 %v1320, %v1349
      %v1386 = vsub.f32 %v1321, %v1352
      %v1387 = vsub.f32 %v1322, %v1355
      %v1388 = vsub.f32 %v1323, %v1358
      %v1389 = vsub.f32 %v1324, %v1361
      %v1390 = vsub.f32 %v1325, %v1364
      %v1391 = vsub.f32 %v1326, %v1367
      %v1392 = vsub.f32 %v1327, %v1370
      %v1393 = vsub.f32 %v1328, %v1373
      %v1394 = vsub.f32 %v1329, %v1376
      %v1395 = vsub.f32 %v1330, %v1379
      %v1396 = vmul.f32 %v1380, 1.442695
      %v1397 = vpow.pop %v1396
      %v1398 = vmul.f32 %v1381, 1.442695
      %v1399 = vpow.pop %v1398
      %v1400 = vmul.f32 %v1382, 1.442695
      %v1401 = vpow.pop %v1400
      %v1402 = vmul.f32 %v1383, 1.442695
      %v1403 = vpow.pop %v1402
      %v1404 = vmul.f32 %v1384, 1.442695
      %v1405 = vpow.pop %v1404
      %v1406 = vmul.f32 %v1385, 1.442695
      %v1407 = vpow.pop %v1406
      %v1408 = vmul.f32 %v1386, 1.442695
      %v1409 = vpow.pop %v1408
      %v1410 = vmul.f32 %v1387, 1.442695
      %v1411 = vpow.pop %v1410
      %v1412 = vmul.f32 %v1388, 1.442695
      %v1413 = vpow.pop %v1412
      %v1414 = vmul.f32 %v1389, 1.442695
      %v1415 = vpow.pop %v1414
      %v1416 = vmul.f32 %v1390, 1.442695
      %v1417 = vpow.pop %v1416
      %v1418 = vmul.f32 %v1391, 1.442695
      %v1419 = vpow.pop %v1418
      %v1420 = vmul.f32 %v1392, 1.442695
      %v1421 = vpow.pop %v1420
      %v1422 = vmul.f32 %v1393, 1.442695
      %v1423 = vpow.pop %v1422
      %v1424 = vmul.f32 %v1394, 1.442695
      %v1425 = vpow.pop %v1424
      %v1426 = vmul.f32 %v1395, 1.442695
      %v1427 = vpow.pop %v1426
      %v1428 = vsel %vm1331, %v1397, 0.0
      %1429 = vadd.xlane.f32.xlu0 %v1428
      %v1430 = vpop.xlane.xlu0 %1429
      %v1431 = vsel %vm1331, %v1399, 0.0
      %1432 = vadd.xlane.f32.xlu0 %v1431
      %v1433 = vpop.xlane.xlu0 %1432
      %v1434 = vsel %vm1331, %v1401, 0.0
      %1435 = vadd.xlane.f32.xlu0 %v1434
      %v1436 = vpop.xlane.xlu0 %1435
      %v1437 = vsel %vm1331, %v1403, 0.0
      %1438 = vadd.xlane.f32.xlu0 %v1437
      %v1439 = vpop.xlane.xlu0 %1438
      %v1440 = vsel %vm1331, %v1405, 0.0
      %1441 = vadd.xlane.f32.xlu0 %v1440
      %v1442 = vpop.xlane.xlu0 %1441
      %v1443 = vsel %vm1331, %v1407, 0.0
      %1444 = vadd.xlane.f32.xlu0 %v1443
      %v1445 = vpop.xlane.xlu0 %1444
      %v1446 = vsel %vm1331, %v1409, 0.0
      %1447 = vadd.xlane.f32.xlu0 %v1446
      %v1448 = vpop.xlane.xlu0 %1447
      %v1449 = vsel %vm1331, %v1411, 0.0
      %1450 = vadd.xlane.f32.xlu0 %v1449
      %v1451 = vpop.xlane.xlu0 %1450
      %v1452 = vsel %vm1331, %v1413, 0.0
      %1453 = vadd.xlane.f32.xlu0 %v1452
      %v1454 = vpop.xlane.xlu0 %1453
      %v1455 = vsel %vm1331, %v1415, 0.0
      %1456 = vadd.xlane.f32.xlu0 %v1455
      %v1457 = vpop.xlane.xlu0 %1456
      %v1458 = vsel %vm1331, %v1417, 0.0
      %1459 = vadd.xlane.f32.xlu0 %v1458
      %v1460 = vpop.xlane.xlu0 %1459
      %v1461 = vsel %vm1331, %v1419, 0.0
      %1462 = vadd.xlane.f32.xlu0 %v1461
      %v1463 = vpop.xlane.xlu0 %1462
      %v1464 = vsel %vm1331, %v1421, 0.0
      %1465 = vadd.xlane.f32.xlu0 %v1464
      %v1466 = vpop.xlane.xlu0 %1465
      %v1467 = vsel %vm1331, %v1423, 0.0
      %1468 = vadd.xlane.f32.xlu0 %v1467
      %v1469 = vpop.xlane.xlu0 %1468
      %v1470 = vsel %vm1331, %v1425, 0.0
      %1471 = vadd.xlane.f32.xlu0 %v1470
      %v1472 = vpop.xlane.xlu0 %1471
      %v1473 = vsel %vm1331, %v1427, 0.0
      %1474 = vadd.xlane.f32.xlu0 %v1473
      %v1475 = vpop.xlane.xlu0 %1474
      %v1476 = vrcp.pop %v1430
      %v1477 = vrcp.pop %v1433
      %v1478 = vrcp.pop %v1436
      %v1479 = vrcp.pop %v1439
      %v1480 = vrcp.pop %v1442
      %v1481 = vrcp.pop %v1445
      %v1482 = vrcp.pop %v1448
      %v1483 = vrcp.pop %v1451
      %v1484 = vrcp.pop %v1454
      %v1485 = vrcp.pop %v1457
      %v1486 = vrcp.pop %v1460
      %v1487 = vrcp.pop %v1463
      %v1488 = vrcp.pop %v1466
      %v1489 = vrcp.pop %v1469
      %v1490 = vrcp.pop %v1472
      %v1491 = vrcp.pop %v1475
      %v1492 = vmul.f32 %v1397, %v1476
      %v1493 = vmul.f32 %v1399, %v1477
      %v1494 = vmul.f32 %v1401, %v1478
      %v1495 = vmul.f32 %v1403, %v1479
      %v1496 = vmul.f32 %v1405, %v1480
      %v1497 = vmul.f32 %v1407, %v1481
      %v1498 = vmul.f32 %v1409, %v1482
      %v1499 = vmul.f32 %v1411, %v1483
      %v1500 = vmul.f32 %v1413, %v1484
      %v1501 = vmul.f32 %v1415, %v1485
      %v1502 = vmul.f32 %v1417, %v1486
      %v1503 = vmul.f32 %v1419, %v1487
      %v1504 = vmul.f32 %v1421, %v1488
      %v1505 = vmul.f32 %v1423, %v1489
      %v1506 = vmul.f32 %v1425, %v1490
      %v1507 = vmul.f32 %v1427, %v1491
      %v1508 = vpack.c.bf16 %v1493, %v1492
      %v1509 = vpack.c.bf16 %v1495, %v1494
      %v1510 = vpack.c.bf16 %v1497, %v1496
      %v1511 = vpack.c.bf16 %v1499, %v1498
      %v1512 = vpack.c.bf16 %v1501, %v1500
      %v1513 = vpack.c.bf16 %v1503, %v1502
      %v1514 = vpack.c.bf16 %v1505, %v1504
      %v1515 = vpack.c.bf16 %v1507, %v1506
      %1516 = vrot.lane.b32.xlu0 %v1105, 64
      %v1517 = vpop.permute.xlu0 %1516
      %1518 = vrot.lane.b32.xlu0 %v1106, 64
      %v1519 = vpop.permute.xlu0 %1518
      %1520 = vrot.lane.b32.xlu0 %v1107, 64
      %v1521 = vpop.permute.xlu0 %1520
      %1522 = vrot.lane.b32.xlu0 %v1108, 64
      %v1523 = vpop.permute.xlu0 %1522
      %v1529 = vsel %vm1331, %v1508, 0
      %v1532 = vsel %vm1331, %v1509, 0
      %v1535 = vsel %vm1331, %v1510, 0
      %v1538 = vsel %vm1331, %v1511, 0
      %1540 = vmatprep.subr.bf16.mxu0 0
      %1541 = vmatpush1.bf16.msra.mxu0 %v1517
      %1542 = vmatprep.subr.bf16.mxu0 0
      %1543 = vmatpush1.bf16.msra.mxu0 %v1519
      %1544 = vmatprep.subr.bf16.mxu0 0
      %1545 = vmatpush1.bf16.msra.mxu0 %v1521
      %1546 = vmatprep.subr.bf16.mxu0 0
      %1547 = vmatpush1.bf16.msra.mxu0 %v1523
      %1548 = vmatprep.subr.bf16.mxu0 0
      %1549 = vmatpush1.bf16.msra.mxu0 0
      %1550 = vmatprep.subr.bf16.mxu0 0
      %1551 = vmatpush1.bf16.msra.mxu0 0
      %1552 = vmatprep.subr.bf16.mxu0 0
      %1553 = vmatpush1.bf16.msra.mxu0 0
      %1554 = vmatprep.subr.bf16.mxu0 0
      %1555 = vmatpush1.bf16.msra.mxu0 0
      %1556 = vmatprep.subr.bf16.mxu0 0
      %1557 = vmatpush1.bf16.msra.mxu0 0
      %1558 = vmatprep.subr.bf16.mxu0 0
      %1559 = vmatpush1.bf16.msra.mxu0 0
      %1560 = vmatprep.subr.bf16.mxu0 0
      %1561 = vmatpush1.bf16.msra.mxu0 0
      %1562 = vmatprep.subr.bf16.mxu0 0
      %1563 = vmatpush1.bf16.msra.mxu0 0
      %1564 = vmatprep.subr.bf16.mxu0 0
      %1565 = vmatpush1.bf16.msra.mxu0 0
      %1566 = vmatprep.subr.bf16.mxu0 0
      %1567 = vmatpush1.bf16.msra.mxu0 0
      %1568 = vmatprep.subr.bf16.mxu0 0
      %1569 = vmatpush1.bf16.msra.mxu0 0
      %1570 = vmatprep.subr.bf16.mxu0 0
      %1571 = vmatpush1.bf16.msra.mxu0 0
      %1572 = vmatprep.mubr.bf16.mxu0 0
      %1573 = vmatmul.mubr.bf16.gmra.mrb[0].mxu0 %v1529
      %v1574 = vpop.f32.mrb[0].mxu0
      %v1575 = vadd.f32 0.0, %v1574
      %v1576 = vpop.f32.mrb[0].mxu0
      %v1577 = vpop.f32.mrb[0].mxu0
      %v1578 = vadd.f32 0.0, %v1577
      %v1579 = vpop.f32.mrb[0].mxu0
      %1580 = vmatprep.mubr.bf16.mxu0 0
      %1581 = vmatmul.mubr.bf16.gmra.mrb[0].mxu0 %v1532
      %v1582 = vpop.f32.mrb[0].mxu0
      %v1583 = vadd.f32 0.0, %v1582
      %v1584 = vpop.f32.mrb[0].mxu0
      %v1585 = vpop.f32.mrb[0].mxu0
      %v1586 = vadd.f32 0.0, %v1585
      %v1587 = vpop.f32.mrb[0].mxu0
      %1588 = vmatprep.mubr.bf16.mxu0 0
      %1589 = vmatmul.mubr.bf16.gmra.mrb[0].mxu0 %v1535
      %v1590 = vpop.f32.mrb[0].mxu0
      %v1591 = vadd.f32 0.0, %v1590
      %v1592 = vpop.f32.mrb[0].mxu0
      %v1593 = vpop.f32.mrb[0].mxu0
      %v1594 = vadd.f32 0.0, %v1593
      %v1595 = vpop.f32.mrb[0].mxu0
      %1596 = vmatprep.mubr.bf16.mxu0 0
      %1597 = vmatmul.mubr.bf16.gmra.mrb[0].mxu0 %v1538
      %v1598 = vpop.f32.mrb[0].mxu0
      %v1599 = vadd.f32 0.0, %v1598
      %v1600 = vpop.f32.mrb[0].mxu0
      %v1601 = vpop.f32.mrb[0].mxu0
      %v1602 = vadd.f32 0.0, %v1601
      %v1603 = vpop.f32.mrb[0].mxu0
      %1604 = vdwg.mxu0
      %1605 = vrot.lane.b32.xlu0 %v1109, 64
      %v1606 = vpop.permute.xlu0 %1605
      %1607 = vrot.lane.b32.xlu0 %v1110, 64
      %v1608 = vpop.permute.xlu0 %1607
      %1609 = vrot.lane.b32.xlu0 %v1111, 64
      %v1610 = vpop.permute.xlu0 %1609
      %1611 = vrot.lane.b32.xlu0 %v1112, 64
      %v1612 = vpop.permute.xlu0 %1611
      %v1618 = vsel %vm1331, %v1512, 0
      %v1621 = vsel %vm1331, %v1513, 0
      %v1624 = vsel %vm1331, %v1514, 0
      %v1627 = vsel %vm1331, %v1515, 0
      %1629 = vmatprep.subr.bf16.mxu0 0
      %1630 = vmatpush1.bf16.msra.mxu0 %v1606
      %1631 = vmatprep.subr.bf16.mxu0 0
      %1632 = vmatpush1.bf16.msra.mxu0 %v1608
      %1633 = vmatprep.subr.bf16.mxu0 0
      %1634 = vmatpush1.bf16.msra.mxu0 %v1610
      %1635 = vmatprep.subr.bf16.mxu0 0
      %1636 = vmatpush1.bf16.msra.mxu0 %v1612
      %1637 = vmatprep.subr.bf16.mxu0 0
      %1638 = vmatpush1.bf16.msra.mxu0 0
      %1639 = vmatprep.subr.bf16.mxu0 0
      %1640 = vmatpush1.bf16.msra.mxu0 0
      %1641 = vmatprep.subr.bf16.mxu0 0
      %1642 = vmatpush1.bf16.msra.mxu0 0
      %1643 = vmatprep.subr.bf16.mxu0 0
      %1644 = vmatpush1.bf16.msra.mxu0 0
      %1645 = vmatprep.subr.bf16.mxu0 0
      %1646 = vmatpush1.bf16.msra.mxu0 0
      %1647 = vmatprep.subr.bf16.mxu0 0
      %1648 = vmatpush1.bf16.msra.mxu0 0
      %1649 = vmatprep.subr.bf16.mxu0 0
      %1650 = vmatpush1.bf16.msra.mxu0 0
      %1651 = vmatprep.subr.bf16.mxu0 0
      %1652 = vmatpush1.bf16.msra.mxu0 0
      %1653 = vmatprep.subr.bf16.mxu0 0
      %1654 = vmatpush1.bf16.msra.mxu0 0
      %1655 = vmatprep.subr.bf16.mxu0 0
      %1656 = vmatpush1.bf16.msra.mxu0 0
      %1657 = vmatprep.subr.bf16.mxu0 0
      %1658 = vmatpush1.bf16.msra.mxu0 0
      %1659 = vmatprep.subr.bf16.mxu0 0
      %1660 = vmatpush1.bf16.msra.mxu0 0
      %1661 = vmatprep.mubr.bf16.mxu0 0
      %1662 = vmatmul.mubr.bf16.gmra.mrb[0].mxu0 %v1618
      %v1663 = vpop.f32.mrb[0].mxu0
      %v1664 = vadd.f32 0.0, %v1663
      %v1665 = vpop.f32.mrb[0].mxu0
      %v1666 = vpop.f32.mrb[0].mxu0
      %v1667 = vadd.f32 0.0, %v1666
      %v1668 = vpop.f32.mrb[0].mxu0
      %1669 = vmatprep.mubr.bf16.mxu0 0
      %1670 = vmatmul.mubr.bf16.gmra.mrb[0].mxu0 %v1621
      %v1671 = vpop.f32.mrb[0].mxu0
      %v1672 = vadd.f32 0.0, %v1671
      %v1673 = vpop.f32.mrb[0].mxu0
      %v1674 = vpop.f32.mrb[0].mxu0
      %v1675 = vadd.f32 0.0, %v1674
      %v1676 = vpop.f32.mrb[0].mxu0
      %1677 = vmatprep.mubr.bf16.mxu0 0
      %1678 = vmatmul.mubr.bf16.gmra.mrb[0].mxu0 %v1624
      %v1679 = vpop.f32.mrb[0].mxu0
      %v1680 = vadd.f32 0.0, %v1679
      %v1681 = vpop.f32.mrb[0].mxu0
      %v1682 = vpop.f32.mrb[0].mxu0
      %v1683 = vadd.f32 0.0, %v1682
      %v1684 = vpop.f32.mrb[0].mxu0
      %1685 = vmatprep.mubr.bf16.mxu0 0
      %1686 = vmatmul.mubr.bf16.gmra.mrb[0].mxu0 %v1627
      %v1687 = vpop.f32.mrb[0].mxu0
      %v1688 = vadd.f32 0.0, %v1687
      %v1689 = vpop.f32.mrb[0].mxu0
      %v1690 = vpop.f32.mrb[0].mxu0
      %v1691 = vadd.f32 0.0, %v1690
      %v1692 = vpop.f32.mrb[0].mxu0
      %1693 = vdwg.mxu0
      %v1694 = vld [vmem:[%s5] sm:$0xf]
      %v1695 = vld [vmem:[%s5 + $0x4] sm:$0xf]
      %v1696 = vld [vmem:[%s5 + $0x8] sm:$0xf]
      %v1697 = vld [vmem:[%s5 + $0xc] sm:$0xf]
      %v1698 = vpack.c.bf16 %v1578, %v1575
      %v1699 = vpack.c.bf16 %v1586, %v1583
      %v1700 = vpack.c.bf16 %v1594, %v1591
      %v1701 = vpack.c.bf16 %v1602, %v1599
      %v1702 = vpack.c.bf16 %v1667, %v1664
      %v1703 = vpack.c.bf16 %v1675, %v1672
      %v1704 = vpack.c.bf16 %v1683, %v1680
      %v1705 = vpack.c.bf16 %v1691, %v1688
      %v1710 = vunpack.c.l.b16 %v1694
      %v1711 = vunpack.c.l.b16 %v1695
      %v1712 = vunpack.c.l.b16 %v1696
      %v1713 = vunpack.c.l.b16 %v1697
      %v1714 = vpack.c.b16 %v1711, %v1710
      %v1715 = vpack.c.b16 %v1713, %v1712
      %v1719 = vsel %vm706, %v1698, 0
      %v1722 = vsel %vm706, %v1699, 0
      %v1725 = vsel %vm706, %v1700, 0
      %v1728 = vsel %vm706, %v1701, 0
      %v1731 = vsel %vm706, %v1702, 0
      %v1734 = vsel %vm706, %v1703, 0
      %v1737 = vsel %vm706, %v1704, 0
      %v1740 = vsel %vm706, %v1705, 0
      %1742 = vmatprep.subr.bf16.mxu0 0
      %1743 = vmatpush1.bf16.msra.mxu0 %v1714
      %1744 = vmatprep.subr.bf16.mxu0 0
      %1745 = vmatpush1.bf16.msra.mxu0 %v1715
      %1746 = vmatprep.subr.bf16.mxu0 0
      %1747 = vmatpush1.bf16.msra.mxu0 0
      %1748 = vmatprep.subr.bf16.mxu0 0
      %1749 = vmatpush1.bf16.msra.mxu0 0
      %1750 = vmatprep.subr.bf16.mxu0 0
      %1751 = vmatpush1.bf16.msra.mxu0 0
      %1752 = vmatprep.subr.bf16.mxu0 0
      %1753 = vmatpush1.bf16.msra.mxu0 0
      %1754 = vmatprep.subr.bf16.mxu0 0
      %1755 = vmatpush1.bf16.msra.mxu0 0
      %1756 = vmatprep.subr.bf16.mxu0 0
      %1757 = vmatpush1.bf16.msra.mxu0 0
      %1758 = vmatprep.subr.bf16.mxu0 0
      %1759 = vmatpush1.bf16.msra.mxu0 0
      %1760 = vmatprep.subr.bf16.mxu0 0
      %1761 = vmatpush1.bf16.msra.mxu0 0
      %1762 = vmatprep.subr.bf16.mxu0 0
      %1763 = vmatpush1.bf16.msra.mxu0 0
      %1764 = vmatprep.subr.bf16.mxu0 0
      %1765 = vmatpush1.bf16.msra.mxu0 0
      %1766 = vmatprep.subr.bf16.mxu0 0
      %1767 = vmatpush1.bf16.msra.mxu0 0
      %1768 = vmatprep.subr.bf16.mxu0 0
      %1769 = vmatpush1.bf16.msra.mxu0 0
      %1770 = vmatprep.subr.bf16.mxu0 0
      %1771 = vmatpush1.bf16.msra.mxu0 0
      %1772 = vmatprep.subr.bf16.mxu0 0
      %1773 = vmatpush1.bf16.msra.mxu0 0
      %1774 = vmatprep.mubr.bf16.mxu0 0
      %1775 = vmatmul.mubr.bf16.gmra.mrb[0].mxu0 %v1719
      %v1776 = vpop.f32.mrb[0].mxu0
      %v1777 = vadd.f32 0.0, %v1776
      %v1778 = vpop.f32.mrb[0].mxu0
      %v1779 = vpop.f32.mrb[0].mxu0
      %v1780 = vadd.f32 0.0, %v1779
      %v1781 = vpop.f32.mrb[0].mxu0
      %1782 = vmatprep.mubr.bf16.mxu0 0
      %1783 = vmatmul.mubr.bf16.gmra.mrb[0].mxu0 %v1722
      %v1784 = vpop.f32.mrb[0].mxu0
      %v1785 = vadd.f32 0.0, %v1784
      %v1786 = vpop.f32.mrb[0].mxu0
      %v1787 = vpop.f32.mrb[0].mxu0
      %v1788 = vadd.f32 0.0, %v1787
      %v1789 = vpop.f32.mrb[0].mxu0
      %1790 = vmatprep.mubr.bf16.mxu0 0
      %1791 = vmatmul.mubr.bf16.gmra.mrb[0].mxu0 %v1725
      %v1792 = vpop.f32.mrb[0].mxu0
      %v1793 = vadd.f32 0.0, %v1792
      %v1794 = vpop.f32.mrb[0].mxu0
      %v1795 = vpop.f32.mrb[0].mxu0
      %v1796 = vadd.f32 0.0, %v1795
      %v1797 = vpop.f32.mrb[0].mxu0
      %1798 = vmatprep.mubr.bf16.mxu0 0
      %1799 = vmatmul.mubr.bf16.gmra.mrb[0].mxu0 %v1728
      %v1800 = vpop.f32.mrb[0].mxu0
      %v1801 = vadd.f32 0.0, %v1800
      %v1802 = vpop.f32.mrb[0].mxu0
      %v1803 = vpop.f32.mrb[0].mxu0
      %v1804 = vadd.f32 0.0, %v1803
      %v1805 = vpop.f32.mrb[0].mxu0
      %1806 = vmatprep.mubr.bf16.mxu0 0
      %1807 = vmatmul.mubr.bf16.gmra.mrb[0].mxu0 %v1731
      %v1808 = vpop.f32.mrb[0].mxu0
      %v1809 = vadd.f32 0.0, %v1808
      %v1810 = vpop.f32.mrb[0].mxu0
      %v1811 = vpop.f32.mrb[0].mxu0
      %v1812 = vadd.f32 0.0, %v1811
      %v1813 = vpop.f32.mrb[0].mxu0
      %1814 = vmatprep.mubr.bf16.mxu0 0
      %1815 = vmatmul.mubr.bf16.gmra.mrb[0].mxu0 %v1734
      %v1816 = vpop.f32.mrb[0].mxu0
      %v1817 = vadd.f32 0.0, %v1816
      %v1818 = vpop.f32.mrb[0].mxu0
      %v1819 = vpop.f32.mrb[0].mxu0
      %v1820 = vadd.f32 0.0, %v1819
      %v1821 = vpop.f32.mrb[0].mxu0
      %1822 = vmatprep.mubr.bf16.mxu0 0
      %1823 = vmatmul.mubr.bf16.gmra.mrb[0].mxu0 %v1737
      %v1824 = vpop.f32.mrb[0].mxu0
      %v1825 = vadd.f32 0.0, %v1824
      %v1826 = vpop.f32.mrb[0].mxu0
      %v1827 = vpop.f32.mrb[0].mxu0
      %v1828 = vadd.f32 0.0, %v1827
      %v1829 = vpop.f32.mrb[0].mxu0
      %1830 = vmatprep.mubr.bf16.mxu0 0
      %1831 = vmatmul.mubr.bf16.gmra.mrb[0].mxu0 %v1740
      %v1832 = vpop.f32.mrb[0].mxu0
      %v1833 = vadd.f32 0.0, %v1832
      %v1834 = vpop.f32.mrb[0].mxu0
      %v1835 = vpop.f32.mrb[0].mxu0
      %v1836 = vadd.f32 0.0, %v1835
      %v1837 = vpop.f32.mrb[0].mxu0
      %1838 = vdwg.mxu0
      %v1839 = vadd.f32 %v690, %v1777
      %v1840 = vadd.f32 %v691, %v1780
      %v1841 = vadd.f32 %v692, %v1785
      %v1842 = vadd.f32 %v693, %v1788
      %v1843 = vadd.f32 %v694, %v1793
      %v1844 = vadd.f32 %v695, %v1796
      %v1845 = vadd.f32 %v696, %v1801
      %v1846 = vadd.f32 %v697, %v1804
      %v1847 = vadd.f32 %v698, %v1809
      %v1848 = vadd.f32 %v699, %v1812
      %v1849 = vadd.f32 %v700, %v1817
      %v1850 = vadd.f32 %v701, %v1820
      %v1851 = vadd.f32 %v702, %v1825
      %v1852 = vadd.f32 %v703, %v1828
      %v1853 = vadd.f32 %v704, %v1833
      %v1854 = vadd.f32 %v705, %v1836
      %v1855 = vlaneseq
      %v1856 = vshrl.u32 %v1855, 7
      %v1857 = vsub.s32 4, %v1856
      %v1858 = vrot.slane %v445, %v1857
      %v1859 = vadd.f32 %v1839, %v1858
      %v1860 = vadd.f32 %v1840, %v1858
      %v1861 = vadd.f32 %v1841, %v1858
      %v1862 = vadd.f32 %v1842, %v1858
      %v1863 = vadd.f32 %v1843, %v1858
      %v1864 = vadd.f32 %v1844, %v1858
      %v1865 = vadd.f32 %v1845, %v1858
      %v1866 = vadd.f32 %v1846, %v1858
      %v1867 = vadd.f32 %v1847, %v1858
      %v1868 = vadd.f32 %v1848, %v1858
      %v1869 = vadd.f32 %v1849, %v1858
      %v1870 = vadd.f32 %v1850, %v1858
      %v1871 = vadd.f32 %v1851, %v1858
      %v1872 = vadd.f32 %v1852, %v1858
      %v1873 = vadd.f32 %v1853, %v1858
      %v1874 = vadd.f32 %v1854, %v1858
      %v1875 = vsel %vm706, %v1859, 0.0
      %1876 = vadd.xlane.f32.xlu0 %v1875
      %v1877 = vpop.xlane.xlu0 %1876
      %v1878 = vsel %vm706, %v1860, 0.0
      %1879 = vadd.xlane.f32.xlu0 %v1878
      %v1880 = vpop.xlane.xlu0 %1879
      %v1881 = vsel %vm706, %v1861, 0.0
      %1882 = vadd.xlane.f32.xlu0 %v1881
      %v1883 = vpop.xlane.xlu0 %1882
      %v1884 = vsel %vm706, %v1862, 0.0
      %1885 = vadd.xlane.f32.xlu0 %v1884
      %v1886 = vpop.xlane.xlu0 %1885
      %v1887 = vsel %vm706, %v1863, 0.0
      %1888 = vadd.xlane.f32.xlu0 %v1887
      %v1889 = vpop.xlane.xlu0 %1888
      %v1890 = vsel %vm706, %v1864, 0.0
      %1891 = vadd.xlane.f32.xlu0 %v1890
      %v1892 = vpop.xlane.xlu0 %1891
      %v1893 = vsel %vm706, %v1865, 0.0
      %1894 = vadd.xlane.f32.xlu0 %v1893
      %v1895 = vpop.xlane.xlu0 %1894
      %v1896 = vsel %vm706, %v1866, 0.0
      %1897 = vadd.xlane.f32.xlu0 %v1896
      %v1898 = vpop.xlane.xlu0 %1897
      %v1899 = vsel %vm706, %v1867, 0.0
      %1900 = vadd.xlane.f32.xlu0 %v1899
      %v1901 = vpop.xlane.xlu0 %1900
      %v1902 = vsel %vm706, %v1868, 0.0
      %1903 = vadd.xlane.f32.xlu0 %v1902
      %v1904 = vpop.xlane.xlu0 %1903
      %v1905 = vsel %vm706, %v1869, 0.0
      %1906 = vadd.xlane.f32.xlu0 %v1905
      %v1907 = vpop.xlane.xlu0 %1906
      %v1908 = vsel %vm706, %v1870, 0.0
      %1909 = vadd.xlane.f32.xlu0 %v1908
      %v1910 = vpop.xlane.xlu0 %1909
      %v1911 = vsel %vm706, %v1871, 0.0
      %1912 = vadd.xlane.f32.xlu0 %v1911
      %v1913 = vpop.xlane.xlu0 %1912
      %v1914 = vsel %vm706, %v1872, 0.0
      %1915 = vadd.xlane.f32.xlu0 %v1914
      %v1916 = vpop.xlane.xlu0 %1915
      %v1917 = vsel %vm706, %v1873, 0.0
      %1918 = vadd.xlane.f32.xlu0 %v1917
      %v1919 = vpop.xlane.xlu0 %1918
      %v1920 = vsel %vm706, %v1874, 0.0
      %1921 = vadd.xlane.f32.xlu0 %v1920
      %v1922 = vpop.xlane.xlu0 %1921
      %v1923 = vmul.f32 %v1877, %v755
      %v1924 = vmul.f32 %v1880, %v755
      %v1925 = vmul.f32 %v1883, %v755
      %v1926 = vmul.f32 %v1886, %v755
      %v1927 = vmul.f32 %v1889, %v755
      %v1928 = vmul.f32 %v1892, %v755
      %v1929 = vmul.f32 %v1895, %v755
      %v1930 = vmul.f32 %v1898, %v755
      %v1931 = vmul.f32 %v1901, %v755
      %v1932 = vmul.f32 %v1904, %v755
      %v1933 = vmul.f32 %v1907, %v755
      %v1934 = vmul.f32 %v1910, %v755
      %v1935 = vmul.f32 %v1913, %v755
      %v1936 = vmul.f32 %v1916, %v755
      %v1937 = vmul.f32 %v1919, %v755
      %v1938 = vmul.f32 %v1922, %v755
      %v1939 = vsub.f32 %v1859, %v1923
      %v1940 = vsub.f32 %v1860, %v1924
      %v1941 = vsub.f32 %v1861, %v1925
      %v1942 = vsub.f32 %v1862, %v1926
      %v1943 = vsub.f32 %v1863, %v1927
      %v1944 = vsub.f32 %v1864, %v1928
      %v1945 = vsub.f32 %v1865, %v1929
      %v1946 = vsub.f32 %v1866, %v1930
      %v1947 = vsub.f32 %v1867, %v1931
      %v1948 = vsub.f32 %v1868, %v1932
      %v1949 = vsub.f32 %v1869, %v1933
      %v1950 = vsub.f32 %v1870, %v1934
      %v1951 = vsub.f32 %v1871, %v1935
      %v1952 = vsub.f32 %v1872, %v1936
      %v1953 = vsub.f32 %v1873, %v1937
      %v1954 = vsub.f32 %v1874, %v1938
      %v1955 = vmul.f32 %v1939, %v1939
      %v1956 = vmul.f32 %v1940, %v1940
      %v1957 = vmul.f32 %v1941, %v1941
      %v1958 = vmul.f32 %v1942, %v1942
      %v1959 = vmul.f32 %v1943, %v1943
      %v1960 = vmul.f32 %v1944, %v1944
      %v1961 = vmul.f32 %v1945, %v1945
      %v1962 = vmul.f32 %v1946, %v1946
      %v1963 = vmul.f32 %v1947, %v1947
      %v1964 = vmul.f32 %v1948, %v1948
      %v1965 = vmul.f32 %v1949, %v1949
      %v1966 = vmul.f32 %v1950, %v1950
      %v1967 = vmul.f32 %v1951, %v1951
      %v1968 = vmul.f32 %v1952, %v1952
      %v1969 = vmul.f32 %v1953, %v1953
      %v1970 = vmul.f32 %v1954, %v1954
      %v1971 = vsel %vm706, %v1955, 0.0
      %1972 = vadd.xlane.f32.xlu0 %v1971
      %v1973 = vpop.xlane.xlu0 %1972
      %v1974 = vsel %vm706, %v1956, 0.0
      %1975 = vadd.xlane.f32.xlu0 %v1974
      %v1976 = vpop.xlane.xlu0 %1975
      %v1977 = vsel %vm706, %v1957, 0.0
      %1978 = vadd.xlane.f32.xlu0 %v1977
      %v1979 = vpop.xlane.xlu0 %1978
      %v1980 = vsel %vm706, %v1958, 0.0
      %1981 = vadd.xlane.f32.xlu0 %v1980
      %v1982 = vpop.xlane.xlu0 %1981
      %v1983 = vsel %vm706, %v1959, 0.0
      %1984 = vadd.xlane.f32.xlu0 %v1983
      %v1985 = vpop.xlane.xlu0 %1984
      %v1986 = vsel %vm706, %v1960, 0.0
      %1987 = vadd.xlane.f32.xlu0 %v1986
      %v1988 = vpop.xlane.xlu0 %1987
      %v1989 = vsel %vm706, %v1961, 0.0
      %1990 = vadd.xlane.f32.xlu0 %v1989
      %v1991 = vpop.xlane.xlu0 %1990
      %v1992 = vsel %vm706, %v1962, 0.0
      %1993 = vadd.xlane.f32.xlu0 %v1992
      %v1994 = vpop.xlane.xlu0 %1993
      %v1995 = vsel %vm706, %v1963, 0.0
      %1996 = vadd.xlane.f32.xlu0 %v1995
      %v1997 = vpop.xlane.xlu0 %1996
      %v1998 = vsel %vm706, %v1964, 0.0
      %1999 = vadd.xlane.f32.xlu0 %v1998
      %v2000 = vpop.xlane.xlu0 %1999
      %v2001 = vsel %vm706, %v1965, 0.0
      %2002 = vadd.xlane.f32.xlu0 %v2001
      %v2003 = vpop.xlane.xlu0 %2002
      %v2004 = vsel %vm706, %v1966, 0.0
      %2005 = vadd.xlane.f32.xlu0 %v2004
      %v2006 = vpop.xlane.xlu0 %2005
      %v2007 = vsel %vm706, %v1967, 0.0
      %2008 = vadd.xlane.f32.xlu0 %v2007
      %v2009 = vpop.xlane.xlu0 %2008
      %v2010 = vsel %vm706, %v1968, 0.0
      %2011 = vadd.xlane.f32.xlu0 %v2010
      %v2012 = vpop.xlane.xlu0 %2011
      %v2013 = vsel %vm706, %v1969, 0.0
      %2014 = vadd.xlane.f32.xlu0 %v2013
      %v2015 = vpop.xlane.xlu0 %2014
      %v2016 = vsel %vm706, %v1970, 0.0
      %2017 = vadd.xlane.f32.xlu0 %v2016
      %v2018 = vpop.xlane.xlu0 %2017
      %v2019 = vmul.f32 %v1973, %v755
      %v2020 = vmul.f32 %v1976, %v755
      %v2021 = vmul.f32 %v1979, %v755
      %v2022 = vmul.f32 %v1982, %v755
      %v2023 = vmul.f32 %v1985, %v755
      %v2024 = vmul.f32 %v1988, %v755
      %v2025 = vmul.f32 %v1991, %v755
      %v2026 = vmul.f32 %v1994, %v755
      %v2027 = vmul.f32 %v1997, %v755
      %v2028 = vmul.f32 %v2000, %v755
      %v2029 = vmul.f32 %v2003, %v755
      %v2030 = vmul.f32 %v2006, %v755
      %v2031 = vmul.f32 %v2009, %v755
      %v2032 = vmul.f32 %v2012, %v755
      %v2033 = vmul.f32 %v2015, %v755
      %v2034 = vmul.f32 %v2018, %v755
      %v2035 = vadd.f32 %v2019, 1e-06
      %v2036 = vadd.f32 %v2020, 1e-06
      %v2037 = vadd.f32 %v2021, 1e-06
      %v2038 = vadd.f32 %v2022, 1e-06
      %v2039 = vadd.f32 %v2023, 1e-06
      %v2040 = vadd.f32 %v2024, 1e-06
      %v2041 = vadd.f32 %v2025, 1e-06
      %v2042 = vadd.f32 %v2026, 1e-06
      %v2043 = vadd.f32 %v2027, 1e-06
      %v2044 = vadd.f32 %v2028, 1e-06
      %v2045 = vadd.f32 %v2029, 1e-06
      %v2046 = vadd.f32 %v2030, 1e-06
      %v2047 = vadd.f32 %v2031, 1e-06
      %v2048 = vadd.f32 %v2032, 1e-06
      %v2049 = vadd.f32 %v2033, 1e-06
      %v2050 = vadd.f32 %v2034, 1e-06
      %v2051 = vrsqrt.pop %v2035
      %v2052 = vrsqrt.pop %v2036
      %v2053 = vrsqrt.pop %v2037
      %v2054 = vrsqrt.pop %v2038
      %v2055 = vrsqrt.pop %v2039
      %v2056 = vrsqrt.pop %v2040
      %v2057 = vrsqrt.pop %v2041
      %v2058 = vrsqrt.pop %v2042
      %v2059 = vrsqrt.pop %v2043
      %v2060 = vrsqrt.pop %v2044
      %v2061 = vrsqrt.pop %v2045
      %v2062 = vrsqrt.pop %v2046
      %v2063 = vrsqrt.pop %v2047
      %v2064 = vrsqrt.pop %v2048
      %v2065 = vrsqrt.pop %v2049
      %v2066 = vrsqrt.pop %v2050
      %v2067 = vmul.f32 %v1939, %v2051
      %v2068 = vmul.f32 %v1940, %v2052
      %v2069 = vmul.f32 %v1941, %v2053
      %v2070 = vmul.f32 %v1942, %v2054
      %v2071 = vmul.f32 %v1943, %v2055
      %v2072 = vmul.f32 %v1944, %v2056
      %v2073 = vmul.f32 %v1945, %v2057
      %v2074 = vmul.f32 %v1946, %v2058
      %v2075 = vmul.f32 %v1947, %v2059
      %v2076 = vmul.f32 %v1948, %v2060
      %v2077 = vmul.f32 %v1949, %v2061
      %v2078 = vmul.f32 %v1950, %v2062
      %v2079 = vmul.f32 %v1951, %v2063
      %v2080 = vmul.f32 %v1952, %v2064
      %v2081 = vmul.f32 %v1953, %v2065
      %v2082 = vmul.f32 %v1954, %v2066
      %v2083 = vlaneseq
      %v2084 = vshrl.u32 %v2083, 7
      %v2085 = vsub.s32 5, %v2084
      %v2086 = vrot.slane %v445, %v2085
      %v2087 = vmul.f32 %v2067, %v2086
      %v2088 = vmul.f32 %v2068, %v2086
      %v2089 = vmul.f32 %v2069, %v2086
      %v2090 = vmul.f32 %v2070, %v2086
      %v2091 = vmul.f32 %v2071, %v2086
      %v2092 = vmul.f32 %v2072, %v2086
      %v2093 = vmul.f32 %v2073, %v2086
      %v2094 = vmul.f32 %v2074, %v2086
      %v2095 = vmul.f32 %v2075, %v2086
      %v2096 = vmul.f32 %v2076, %v2086
      %v2097 = vmul.f32 %v2077, %v2086
      %v2098 = vmul.f32 %v2078, %v2086
      %v2099 = vmul.f32 %v2079, %v2086
      %v2100 = vmul.f32 %v2080, %v2086
      %v2101 = vmul.f32 %v2081, %v2086
      %v2102 = vmul.f32 %v2082, %v2086
      %v2103 = vlaneseq
      %v2104 = vshrl.u32 %v2103, 7
      %v2105 = vsub.s32 6, %v2104
      %v2106 = vrot.slane %v445, %v2105
      %v2107 = vadd.f32 %v2087, %v2106
      %v2108 = vadd.f32 %v2088, %v2106
      %v2109 = vadd.f32 %v2089, %v2106
      %v2110 = vadd.f32 %v2090, %v2106
      %v2111 = vadd.f32 %v2091, %v2106
      %v2112 = vadd.f32 %v2092, %v2106
      %v2113 = vadd.f32 %v2093, %v2106
      %v2114 = vadd.f32 %v2094, %v2106
      %v2115 = vadd.f32 %v2095, %v2106
      %v2116 = vadd.f32 %v2096, %v2106
      %v2117 = vadd.f32 %v2097, %v2106
      %v2118 = vadd.f32 %v2098, %v2106
      %v2119 = vadd.f32 %v2099, %v2106
      %v2120 = vadd.f32 %v2100, %v2106
      %v2121 = vadd.f32 %v2101, %v2106
      %v2122 = vadd.f32 %v2102, %v2106
      %v2123 = vld [vmem:[%s6] sm:$0xf]
      %v2124 = vld [vmem:[%s6 + $0x4] sm:$0xf]
      %v2125 = vld [vmem:[%s6 + $0x8] sm:$0xf]
      %v2126 = vld [vmem:[%s6 + $0xc] sm:$0xf]
      %v2127 = vpack.c.bf16 %v2108, %v2107
      %v2128 = vpack.c.bf16 %v2110, %v2109
      %v2129 = vpack.c.bf16 %v2112, %v2111
      %v2130 = vpack.c.bf16 %v2114, %v2113
      %v2131 = vpack.c.bf16 %v2116, %v2115
      %v2132 = vpack.c.bf16 %v2118, %v2117
      %v2133 = vpack.c.bf16 %v2120, %v2119
      %v2134 = vpack.c.bf16 %v2122, %v2121
      %v2135 = vlaneseq
      %v2136 = vshrl.u32 %v2135, 7
      %v2137 = vsub.s32 7, %v2136
      %v2138 = vrot.slane %v445, %v2137
      %v2143 = vunpack.c.l.b16 %v2123
      %v2144 = vunpack.c.l.b16 %v2124
      %v2145 = vunpack.c.l.b16 %v2125
      %v2146 = vunpack.c.l.b16 %v2126
      %v2147 = vpack.c.b16 %v2144, %v2143
      %v2148 = vpack.c.b16 %v2146, %v2145
      %v2152 = vsel %vm706, %v2127, 0
      %v2155 = vsel %vm706, %v2128, 0
      %v2158 = vsel %vm706, %v2129, 0
      %v2161 = vsel %vm706, %v2130, 0
      %v2164 = vsel %vm706, %v2131, 0
      %v2167 = vsel %vm706, %v2132, 0
      %v2170 = vsel %vm706, %v2133, 0
      %v2173 = vsel %vm706, %v2134, 0
      %2175 = vmatprep.subr.bf16.mxu0 0
      %2176 = vmatpush1.bf16.msra.mxu0 %v2147
      %2177 = vmatprep.subr.bf16.mxu0 0
      %2178 = vmatpush1.bf16.msra.mxu0 %v2148
      %2179 = vmatprep.subr.bf16.mxu0 0
      %2180 = vmatpush1.bf16.msra.mxu0 0
      %2181 = vmatprep.subr.bf16.mxu0 0
      %2182 = vmatpush1.bf16.msra.mxu0 0
      %2183 = vmatprep.subr.bf16.mxu0 0
      %2184 = vmatpush1.bf16.msra.mxu0 0
      %2185 = vmatprep.subr.bf16.mxu0 0
      %2186 = vmatpush1.bf16.msra.mxu0 0
      %2187 = vmatprep.subr.bf16.mxu0 0
      %2188 = vmatpush1.bf16.msra.mxu0 0
      %2189 = vmatprep.subr.bf16.mxu0 0
      %2190 = vmatpush1.bf16.msra.mxu0 0
      %2191 = vmatprep.subr.bf16.mxu0 0
      %2192 = vmatpush1.bf16.msra.mxu0 0
      %2193 = vmatprep.subr.bf16.mxu0 0
      %2194 = vmatpush1.bf16.msra.mxu0 0
      %2195 = vmatprep.subr.bf16.mxu0 0
      %2196 = vmatpush1.bf16.msra.mxu0 0
      %2197 = vmatprep.subr.bf16.mxu0 0
      %2198 = vmatpush1.bf16.msra.mxu0 0
      %2199 = vmatprep.subr.bf16.mxu0 0
      %2200 = vmatpush1.bf16.msra.mxu0 0
      %2201 = vmatprep.subr.bf16.mxu0 0
      %2202 = vmatpush1.bf16.msra.mxu0 0
      %2203 = vmatprep.subr.bf16.mxu0 0
      %2204 = vmatpush1.bf16.msra.mxu0 0
      %2205 = vmatprep.subr.bf16.mxu0 0
      %2206 = vmatpush1.bf16.msra.mxu0 0
      %2207 = vmatprep.mubr.bf16.mxu0 0
      %2208 = vmatmul.mubr.bf16.gmra.mrb[0].mxu0 %v2152
      %v2209 = vpop.f32.mrb[0].mxu0
      %v2210 = vadd.f32 %v2138, %v2209
      %v2211 = vpop.f32.mrb[0].mxu0
      %v2212 = vpop.f32.mrb[0].mxu0
      %v2213 = vadd.f32 %v2138, %v2212
      %v2214 = vpop.f32.mrb[0].mxu0
      %2215 = vmatprep.mubr.bf16.mxu0 0
      %2216 = vmatmul.mubr.bf16.gmra.mrb[0].mxu0 %v2155
      %v2217 = vpop.f32.mrb[0].mxu0
      %v2218 = vadd.f32 %v2138, %v2217
      %v2219 = vpop.f32.mrb[0].mxu0
      %v2220 = vpop.f32.mrb[0].mxu0
      %v2221 = vadd.f32 %v2138, %v2220
      %v2222 = vpop.f32.mrb[0].mxu0
      %2223 = vmatprep.mubr.bf16.mxu0 0
      %2224 = vmatmul.mubr.bf16.gmra.mrb[0].mxu0 %v2158
      %v2225 = vpop.f32.mrb[0].mxu0
      %v2226 = vadd.f32 %v2138, %v2225
      %v2227 = vpop.f32.mrb[0].mxu0
      %v2228 = vpop.f32.mrb[0].mxu0
      %v2229 = vadd.f32 %v2138, %v2228
      %v2230 = vpop.f32.mrb[0].mxu0
      %2231 = vmatprep.mubr.bf16.mxu0 0
      %2232 = vmatmul.mubr.bf16.gmra.mrb[0].mxu0 %v2161
      %v2233 = vpop.f32.mrb[0].mxu0
      %v2234 = vadd.f32 %v2138, %v2233
      %v2235 = vpop.f32.mrb[0].mxu0
      %v2236 = vpop.f32.mrb[0].mxu0
      %v2237 = vadd.f32 %v2138, %v2236
      %v2238 = vpop.f32.mrb[0].mxu0
      %2239 = vmatprep.mubr.bf16.mxu0 0
      %2240 = vmatmul.mubr.bf16.gmra.mrb[0].mxu0 %v2164
      %v2241 = vpop.f32.mrb[0].mxu0
      %v2242 = vadd.f32 %v2138, %v2241
      %v2243 = vpop.f32.mrb[0].mxu0
      %v2244 = vpop.f32.mrb[0].mxu0
      %v2245 = vadd.f32 %v2138, %v2244
      %v2246 = vpop.f32.mrb[0].mxu0
      %2247 = vmatprep.mubr.bf16.mxu0 0
      %2248 = vmatmul.mubr.bf16.gmra.mrb[0].mxu0 %v2167
      %v2249 = vpop.f32.mrb[0].mxu0
      %v2250 = vadd.f32 %v2138, %v2249
      %v2251 = vpop.f32.mrb[0].mxu0
      %v2252 = vpop.f32.mrb[0].mxu0
      %v2253 = vadd.f32 %v2138, %v2252
      %v2254 = vpop.f32.mrb[0].mxu0
      %2255 = vmatprep.mubr.bf16.mxu0 0
      %2256 = vmatmul.mubr.bf16.gmra.mrb[0].mxu0 %v2170
      %v2257 = vpop.f32.mrb[0].mxu0
      %v2258 = vadd.f32 %v2138, %v2257
      %v2259 = vpop.f32.mrb[0].mxu0
      %v2260 = vpop.f32.mrb[0].mxu0
      %v2261 = vadd.f32 %v2138, %v2260
      %v2262 = vpop.f32.mrb[0].mxu0
      %2263 = vmatprep.mubr.bf16.mxu0 0
      %2264 = vmatmul.mubr.bf16.gmra.mrb[0].mxu0 %v2173
      %v2265 = vpop.f32.mrb[0].mxu0
      %v2266 = vadd.f32 %v2138, %v2265
      %v2267 = vpop.f32.mrb[0].mxu0
      %v2268 = vpop.f32.mrb[0].mxu0
      %v2269 = vadd.f32 %v2138, %v2268
      %v2270 = vpop.f32.mrb[0].mxu0
      %2271 = vdwg.mxu0
      %v2272 = vmul.f32 %v2210, %v2210
      %v2273 = vmul.f32 %v2213, %v2213
      %v2274 = vmul.f32 %v2218, %v2218
      %v2275 = vmul.f32 %v2221, %v2221
      %v2276 = vmul.f32 %v2226, %v2226
      %v2277 = vmul.f32 %v2229, %v2229
      %v2278 = vmul.f32 %v2234, %v2234
      %v2279 = vmul.f32 %v2237, %v2237
      %v2280 = vmul.f32 %v2242, %v2242
      %v2281 = vmul.f32 %v2245, %v2245
      %v2282 = vmul.f32 %v2250, %v2250
      %v2283 = vmul.f32 %v2253, %v2253
      %v2284 = vmul.f32 %v2258, %v2258
      %v2285 = vmul.f32 %v2261, %v2261
      %v2286 = vmul.f32 %v2266, %v2266
      %v2287 = vmul.f32 %v2269, %v2269
      %v2288 = vmul.f32 %v2210, %v2272
      %v2289 = vmul.f32 %v2213, %v2273
      %v2290 = vmul.f32 %v2218, %v2274
      %v2291 = vmul.f32 %v2221, %v2275
      %v2292 = vmul.f32 %v2226, %v2276
      %v2293 = vmul.f32 %v2229, %v2277
      %v2294 = vmul.f32 %v2234, %v2278
      %v2295 = vmul.f32 %v2237, %v2279
      %v2296 = vmul.f32 %v2242, %v2280
      %v2297 = vmul.f32 %v2245, %v2281
      %v2298 = vmul.f32 %v2250, %v2282
      %v2299 = vmul.f32 %v2253, %v2283
      %v2300 = vmul.f32 %v2258, %v2284
      %v2301 = vmul.f32 %v2261, %v2285
      %v2302 = vmul.f32 %v2266, %v2286
      %v2303 = vmul.f32 %v2269, %v2287
      %v2304 = vmul.f32 %v2288, 0.044715
      %v2305 = vmul.f32 %v2289, 0.044715
      %v2306 = vmul.f32 %v2290, 0.044715
      %v2307 = vmul.f32 %v2291, 0.044715
      %v2308 = vmul.f32 %v2292, 0.044715
      %v2309 = vmul.f32 %v2293, 0.044715
      %v2310 = vmul.f32 %v2294, 0.044715
      %v2311 = vmul.f32 %v2295, 0.044715
      %v2312 = vmul.f32 %v2296, 0.044715
      %v2313 = vmul.f32 %v2297, 0.044715
      %v2314 = vmul.f32 %v2298, 0.044715
      %v2315 = vmul.f32 %v2299, 0.044715
      %v2316 = vmul.f32 %v2300, 0.044715
      %v2317 = vmul.f32 %v2301, 0.044715
      %v2318 = vmul.f32 %v2302, 0.044715
      %v2319 = vmul.f32 %v2303, 0.044715
      %v2320 = vadd.f32 %v2210, %v2304
      %v2321 = vadd.f32 %v2213, %v2305
      %v2322 = vadd.f32 %v2218, %v2306
      %v2323 = vadd.f32 %v2221, %v2307
      %v2324 = vadd.f32 %v2226, %v2308
      %v2325 = vadd.f32 %v2229, %v2309
      %v2326 = vadd.f32 %v2234, %v2310
      %v2327 = vadd.f32 %v2237, %v2311
      %v2328 = vadd.f32 %v2242, %v2312
      %v2329 = vadd.f32 %v2245, %v2313
      %v2330 = vadd.f32 %v2250, %v2314
      %v2331 = vadd.f32 %v2253, %v2315
      %v2332 = vadd.f32 %v2258, %v2316
      %v2333 = vadd.f32 %v2261, %v2317
      %v2334 = vadd.f32 %v2266, %v2318
      %v2335 = vadd.f32 %v2269, %v2319
      %v2336 = vmul.f32 %v2320, 0.7978846
      %v2337 = vmul.f32 %v2321, 0.7978846
      %v2338 = vmul.f32 %v2322, 0.7978846
      %v2339 = vmul.f32 %v2323, 0.7978846
      %v2340 = vmul.f32 %v2324, 0.7978846
      %v2341 = vmul.f32 %v2325, 0.7978846
      %v2342 = vmul.f32 %v2326, 0.7978846
      %v2343 = vmul.f32 %v2327, 0.7978846
      %v2344 = vmul.f32 %v2328, 0.7978846
      %v2345 = vmul.f32 %v2329, 0.7978846
      %v2346 = vmul.f32 %v2330, 0.7978846
      %v2347 = vmul.f32 %v2331, 0.7978846
      %v2348 = vmul.f32 %v2332, 0.7978846
      %v2349 = vmul.f32 %v2333, 0.7978846
      %v2350 = vmul.f32 %v2334, 0.7978846
      %v2351 = vmul.f32 %v2335, 0.7978846
      %v2352 = vtanh.pop %v2336
      %v2353 = vtanh.pop %v2337
      %v2354 = vtanh.pop %v2338
      %v2355 = vtanh.pop %v2339
      %v2356 = vtanh.pop %v2340
      %v2357 = vtanh.pop %v2341
      %v2358 = vtanh.pop %v2342
      %v2359 = vtanh.pop %v2343
      %v2360 = vtanh.pop %v2344
      %v2361 = vtanh.pop %v2345
      %v2362 = vtanh.pop %v2346
      %v2363 = vtanh.pop %v2347
      %v2364 = vtanh.pop %v2348
      %v2365 = vtanh.pop %v2349
      %v2366 = vtanh.pop %v2350
      %v2367 = vtanh.pop %v2351
      %v2368 = vadd.f32 %v2352, 1.0
      %v2369 = vadd.f32 %v2353, 1.0
      %v2370 = vadd.f32 %v2354, 1.0
      %v2371 = vadd.f32 %v2355, 1.0
      %v2372 = vadd.f32 %v2356, 1.0
      %v2373 = vadd.f32 %v2357, 1.0
      %v2374 = vadd.f32 %v2358, 1.0
      %v2375 = vadd.f32 %v2359, 1.0
      %v2376 = vadd.f32 %v2360, 1.0
      %v2377 = vadd.f32 %v2361, 1.0
      %v2378 = vadd.f32 %v2362, 1.0
      %v2379 = vadd.f32 %v2363, 1.0
      %v2380 = vadd.f32 %v2364, 1.0
      %v2381 = vadd.f32 %v2365, 1.0
      %v2382 = vadd.f32 %v2366, 1.0
      %v2383 = vadd.f32 %v2367, 1.0
      %v2384 = vmul.f32 %v2368, 0.5
      %v2385 = vmul.f32 %v2369, 0.5
      %v2386 = vmul.f32 %v2370, 0.5
      %v2387 = vmul.f32 %v2371, 0.5
      %v2388 = vmul.f32 %v2372, 0.5
      %v2389 = vmul.f32 %v2373, 0.5
      %v2390 = vmul.f32 %v2374, 0.5
      %v2391 = vmul.f32 %v2375, 0.5
      %v2392 = vmul.f32 %v2376, 0.5
      %v2393 = vmul.f32 %v2377, 0.5
      %v2394 = vmul.f32 %v2378, 0.5
      %v2395 = vmul.f32 %v2379, 0.5
      %v2396 = vmul.f32 %v2380, 0.5
      %v2397 = vmul.f32 %v2381, 0.5
      %v2398 = vmul.f32 %v2382, 0.5
      %v2399 = vmul.f32 %v2383, 0.5
      %v2400 = vmul.f32 %v2210, %v2384
      %v2401 = vmul.f32 %v2213, %v2385
      %v2402 = vmul.f32 %v2218, %v2386
      %v2403 = vmul.f32 %v2221, %v2387
      %v2404 = vmul.f32 %v2226, %v2388
      %v2405 = vmul.f32 %v2229, %v2389
      %v2406 = vmul.f32 %v2234, %v2390
      %v2407 = vmul.f32 %v2237, %v2391
      %v2408 = vmul.f32 %v2242, %v2392
      %v2409 = vmul.f32 %v2245, %v2393
      %v2410 = vmul.f32 %v2250, %v2394
      %v2411 = vmul.f32 %v2253, %v2395
      %v2412 = vmul.f32 %v2258, %v2396
      %v2413 = vmul.f32 %v2261, %v2397
      %v2414 = vmul.f32 %v2266, %v2398
      %v2415 = vmul.f32 %v2269, %v2399
      %v2416 = vld [vmem:[%s7] sm:$0xf]
      %v2417 = vld [vmem:[%s7 + $0x4] sm:$0xf]
      %v2418 = vld [vmem:[%s7 + $0x8] sm:$0xf]
      %v2419 = vld [vmem:[%s7 + $0xc] sm:$0xf]
      %v2420 = vld [vmem:[%s7 + $0x10] sm:$0xf]
      %v2421 = vld [vmem:[%s7 + $0x14] sm:$0xf]
      %v2422 = vld [vmem:[%s7 + $0x18] sm:$0xf]
      %v2423 = vld [vmem:[%s7 + $0x1c] sm:$0xf]
      %v2424 = vld [vmem:[%s7 + $0x20] sm:$0xf]
      %v2425 = vld [vmem:[%s7 + $0x24] sm:$0xf]
      %v2426 = vld [vmem:[%s7 + $0x28] sm:$0xf]
      %v2427 = vld [vmem:[%s7 + $0x2c] sm:$0xf]
      %v2428 = vld [vmem:[%s7 + $0x30] sm:$0xf]
      %v2429 = vld [vmem:[%s7 + $0x34] sm:$0xf]
      %v2430 = vld [vmem:[%s7 + $0x38] sm:$0xf]
      %v2431 = vld [vmem:[%s7 + $0x3c] sm:$0xf]
      %v2432 = vpack.c.bf16 %v2401, %v2400
      %v2433 = vpack.c.bf16 %v2403, %v2402
      %v2434 = vpack.c.bf16 %v2405, %v2404
      %v2435 = vpack.c.bf16 %v2407, %v2406
      %v2436 = vpack.c.bf16 %v2409, %v2408
      %v2437 = vpack.c.bf16 %v2411, %v2410
      %v2438 = vpack.c.bf16 %v2413, %v2412
      %v2439 = vpack.c.bf16 %v2415, %v2414
      %v2456 = vunpack.c.l.b16 %v2416
      %v2457 = vunpack.c.l.b16 %v2417
      %v2458 = vunpack.c.l.b16 %v2418
      %v2459 = vunpack.c.l.b16 %v2419
      %v2460 = vunpack.c.l.b16 %v2420
      %v2461 = vunpack.c.l.b16 %v2421
      %v2462 = vunpack.c.l.b16 %v2422
      %v2463 = vunpack.c.l.b16 %v2423
      %v2464 = vunpack.c.l.b16 %v2424
      %v2465 = vunpack.c.l.b16 %v2425
      %v2466 = vunpack.c.l.b16 %v2426
      %v2467 = vunpack.c.l.b16 %v2427
      %v2468 = vunpack.c.l.b16 %v2428
      %v2469 = vunpack.c.l.b16 %v2429
      %v2470 = vunpack.c.l.b16 %v2430
      %v2471 = vunpack.c.l.b16 %v2431
      %v2472 = vpack.c.b16 %v2457, %v2456
      %v2473 = vpack.c.b16 %v2459, %v2458
      %v2474 = vpack.c.b16 %v2461, %v2460
      %v2475 = vpack.c.b16 %v2463, %v2462
      %v2476 = vpack.c.b16 %v2465, %v2464
      %v2477 = vpack.c.b16 %v2467, %v2466
      %v2478 = vpack.c.b16 %v2469, %v2468
      %v2479 = vpack.c.b16 %v2471, %v2470
      %2488 = vmatprep.subr.bf16.mxu0 0
      %2489 = vmatpush1.bf16.msra.mxu0 %v2472
      %2490 = vmatprep.subr.bf16.mxu0 0
      %2491 = vmatpush1.bf16.msra.mxu0 %v2473
      %2492 = vmatprep.subr.bf16.mxu0 0
      %2493 = vmatpush1.bf16.msra.mxu0 %v2474
      %2494 = vmatprep.subr.bf16.mxu0 0
      %2495 = vmatpush1.bf16.msra.mxu0 %v2475
      %2496 = vmatprep.subr.bf16.mxu0 0
      %2497 = vmatpush1.bf16.msra.mxu0 %v2476
      %2498 = vmatprep.subr.bf16.mxu0 0
      %2499 = vmatpush1.bf16.msra.mxu0 %v2477
      %2500 = vmatprep.subr.bf16.mxu0 0
      %2501 = vmatpush1.bf16.msra.mxu0 %v2478
      %2502 = vmatprep.subr.bf16.mxu0 0
      %2503 = vmatpush1.bf16.msra.mxu0 %v2479
      %2504 = vmatprep.subr.bf16.mxu0 0
      %2505 = vmatpush1.bf16.msra.mxu0 0
      %2506 = vmatprep.subr.bf16.mxu0 0
      %2507 = vmatpush1.bf16.msra.mxu0 0
      %2508 = vmatprep.subr.bf16.mxu0 0
      %2509 = vmatpush1.bf16.msra.mxu0 0
      %2510 = vmatprep.subr.bf16.mxu0 0
      %2511 = vmatpush1.bf16.msra.mxu0 0
      %2512 = vmatprep.subr.bf16.mxu0 0
      %2513 = vmatpush1.bf16.msra.mxu0 0
      %2514 = vmatprep.subr.bf16.mxu0 0
      %2515 = vmatpush1.bf16.msra.mxu0 0
      %2516 = vmatprep.subr.bf16.mxu0 0
      %2517 = vmatpush1.bf16.msra.mxu0 0
      %2518 = vmatprep.subr.bf16.mxu0 0
      %2519 = vmatpush1.bf16.msra.mxu0 0
      %2520 = vmatprep.mubr.bf16.mxu0 0
      %2521 = vmatmul.mubr.bf16.gmra.mrb[0].mxu0 %v2432
      %v2522 = vpop.f32.mrb[0].mxu0
      %v2523 = vadd.f32 0.0, %v2522
      %v2524 = vpop.f32.mrb[0].mxu0
      %v2525 = vpop.f32.mrb[0].mxu0
      %v2526 = vadd.f32 0.0, %v2525
      %v2527 = vpop.f32.mrb[0].mxu0
      %2528 = vmatprep.mubr.bf16.mxu0 0
      %2529 = vmatmul.mubr.bf16.gmra.mrb[0].mxu0 %v2433
      %v2530 = vpop.f32.mrb[0].mxu0
      %v2531 = vadd.f32 0.0, %v2530
      %v2532 = vpop.f32.mrb[0].mxu0
      %v2533 = vpop.f32.mrb[0].mxu0
      %v2534 = vadd.f32 0.0, %v2533
      %v2535 = vpop.f32.mrb[0].mxu0
      %2536 = vmatprep.mubr.bf16.mxu0 0
      %2537 = vmatmul.mubr.bf16.gmra.mrb[0].mxu0 %v2434
      %v2538 = vpop.f32.mrb[0].mxu0
      %v2539 = vadd.f32 0.0, %v2538
      %v2540 = vpop.f32.mrb[0].mxu0
      %v2541 = vpop.f32.mrb[0].mxu0
      %v2542 = vadd.f32 0.0, %v2541
      %v2543 = vpop.f32.mrb[0].mxu0
      %2544 = vmatprep.mubr.bf16.mxu0 0
      %2545 = vmatmul.mubr.bf16.gmra.mrb[0].mxu0 %v2435
      %v2546 = vpop.f32.mrb[0].mxu0
      %v2547 = vadd.f32 0.0, %v2546
      %v2548 = vpop.f32.mrb[0].mxu0
      %v2549 = vpop.f32.mrb[0].mxu0
      %v2550 = vadd.f32 0.0, %v2549
      %v2551 = vpop.f32.mrb[0].mxu0
      %2552 = vmatprep.mubr.bf16.mxu0 0
      %2553 = vmatmul.mubr.bf16.gmra.mrb[0].mxu0 %v2436
      %v2554 = vpop.f32.mrb[0].mxu0
      %v2555 = vadd.f32 0.0, %v2554
      %v2556 = vpop.f32.mrb[0].mxu0
      %v2557 = vpop.f32.mrb[0].mxu0
      %v2558 = vadd.f32 0.0, %v2557
      %v2559 = vpop.f32.mrb[0].mxu0
      %2560 = vmatprep.mubr.bf16.mxu0 0
      %2561 = vmatmul.mubr.bf16.gmra.mrb[0].mxu0 %v2437
      %v2562 = vpop.f32.mrb[0].mxu0
      %v2563 = vadd.f32 0.0, %v2562
      %v2564 = vpop.f32.mrb[0].mxu0
      %v2565 = vpop.f32.mrb[0].mxu0
      %v2566 = vadd.f32 0.0, %v2565
      %v2567 = vpop.f32.mrb[0].mxu0
      %2568 = vmatprep.mubr.bf16.mxu0 0
      %2569 = vmatmul.mubr.bf16.gmra.mrb[0].mxu0 %v2438
      %v2570 = vpop.f32.mrb[0].mxu0
      %v2571 = vadd.f32 0.0, %v2570
      %v2572 = vpop.f32.mrb[0].mxu0
      %v2573 = vpop.f32.mrb[0].mxu0
      %v2574 = vadd.f32 0.0, %v2573
      %v2575 = vpop.f32.mrb[0].mxu0
      %2576 = vmatprep.mubr.bf16.mxu0 0
      %2577 = vmatmul.mubr.bf16.gmra.mrb[0].mxu0 %v2439
      %v2578 = vpop.f32.mrb[0].mxu0
      %v2579 = vadd.f32 0.0, %v2578
      %v2580 = vpop.f32.mrb[0].mxu0
      %v2581 = vpop.f32.mrb[0].mxu0
      %v2582 = vadd.f32 0.0, %v2581
      %v2583 = vpop.f32.mrb[0].mxu0
      %2584 = vdwg.mxu0
      %v2585 = vadd.f32 %v1859, %v2523
      %v2586 = vadd.f32 %v1860, %v2526
      %v2587 = vadd.f32 %v1861, %v2531
      %v2588 = vadd.f32 %v1862, %v2534
      %v2589 = vadd.f32 %v1863, %v2539
      %v2590 = vadd.f32 %v1864, %v2542
      %v2591 = vadd.f32 %v1865, %v2547
      %v2592 = vadd.f32 %v1866, %v2550
      %v2593 = vadd.f32 %v1867, %v2555
      %v2594 = vadd.f32 %v1868, %v2558
      %v2595 = vadd.f32 %v1869, %v2563
      %v2596 = vadd.f32 %v1870, %v2566
      %v2597 = vadd.f32 %v1871, %v2571
      %v2598 = vadd.f32 %v1872, %v2574
      %v2599 = vadd.f32 %v1873, %v2579
      %v2600 = vadd.f32 %v1874, %v2582
      %v2601 = vlaneseq
      %v2602 = vshrl.u32 %v2601, 7
      %v2603 = vsub.s32 0, %v2602
      %v2604 = vrot.slane %v446, %v2603
      %v2605 = vadd.f32 %v2585, %v2604
      %v2606 = vadd.f32 %v2586, %v2604
      %v2607 = vadd.f32 %v2587, %v2604
      %v2608 = vadd.f32 %v2588, %v2604
      %v2609 = vadd.f32 %v2589, %v2604
      %v2610 = vadd.f32 %v2590, %v2604
      %v2611 = vadd.f32 %v2591, %v2604
      %v2612 = vadd.f32 %v2592, %v2604
      %v2613 = vadd.f32 %v2593, %v2604
      %v2614 = vadd.f32 %v2594, %v2604
      %v2615 = vadd.f32 %v2595, %v2604
      %v2616 = vadd.f32 %v2596, %v2604
      %v2617 = vadd.f32 %v2597, %v2604
      %v2618 = vadd.f32 %v2598, %v2604
      %v2619 = vadd.f32 %v2599, %v2604
      %v2620 = vadd.f32 %v2600, %v2604
      %v2621 = vsel %vm706, %v2605, 0.0
      %2622 = vadd.xlane.f32.xlu0 %v2621
      %v2623 = vpop.xlane.xlu0 %2622
      %v2624 = vsel %vm706, %v2606, 0.0
      %2625 = vadd.xlane.f32.xlu0 %v2624
      %v2626 = vpop.xlane.xlu0 %2625
      %v2627 = vsel %vm706, %v2607, 0.0
      %2628 = vadd.xlane.f32.xlu0 %v2627
      %v2629 = vpop.xlane.xlu0 %2628
      %v2630 = vsel %vm706, %v2608, 0.0
      %2631 = vadd.xlane.f32.xlu0 %v2630
      %v2632 = vpop.xlane.xlu0 %2631
      %v2633 = vsel %vm706, %v2609, 0.0
      %2634 = vadd.xlane.f32.xlu0 %v2633
      %v2635 = vpop.xlane.xlu0 %2634
      %v2636 = vsel %vm706, %v2610, 0.0
      %2637 = vadd.xlane.f32.xlu0 %v2636
      %v2638 = vpop.xlane.xlu0 %2637
      %v2639 = vsel %vm706, %v2611, 0.0
      %2640 = vadd.xlane.f32.xlu0 %v2639
      %v2641 = vpop.xlane.xlu0 %2640
      %v2642 = vsel %vm706, %v2612, 0.0
      %2643 = vadd.xlane.f32.xlu0 %v2642
      %v2644 = vpop.xlane.xlu0 %2643
      %v2645 = vsel %vm706, %v2613, 0.0
      %2646 = vadd.xlane.f32.xlu0 %v2645
      %v2647 = vpop.xlane.xlu0 %2646
      %v2648 = vsel %vm706, %v2614, 0.0
      %2649 = vadd.xlane.f32.xlu0 %v2648
      %v2650 = vpop.xlane.xlu0 %2649
      %v2651 = vsel %vm706, %v2615, 0.0
      %2652 = vadd.xlane.f32.xlu0 %v2651
      %v2653 = vpop.xlane.xlu0 %2652
      %v2654 = vsel %vm706, %v2616, 0.0
      %2655 = vadd.xlane.f32.xlu0 %v2654
      %v2656 = vpop.xlane.xlu0 %2655
      %v2657 = vsel %vm706, %v2617, 0.0
      %2658 = vadd.xlane.f32.xlu0 %v2657
      %v2659 = vpop.xlane.xlu0 %2658
      %v2660 = vsel %vm706, %v2618, 0.0
      %2661 = vadd.xlane.f32.xlu0 %v2660
      %v2662 = vpop.xlane.xlu0 %2661
      %v2663 = vsel %vm706, %v2619, 0.0
      %2664 = vadd.xlane.f32.xlu0 %v2663
      %v2665 = vpop.xlane.xlu0 %2664
      %v2666 = vsel %vm706, %v2620, 0.0
      %2667 = vadd.xlane.f32.xlu0 %v2666
      %v2668 = vpop.xlane.xlu0 %2667
      %v2669 = vmul.f32 %v2623, %v755
      %v2670 = vmul.f32 %v2626, %v755
      %v2671 = vmul.f32 %v2629, %v755
      %v2672 = vmul.f32 %v2632, %v755
      %v2673 = vmul.f32 %v2635, %v755
      %v2674 = vmul.f32 %v2638, %v755
      %v2675 = vmul.f32 %v2641, %v755
      %v2676 = vmul.f32 %v2644, %v755
      %v2677 = vmul.f32 %v2647, %v755
      %v2678 = vmul.f32 %v2650, %v755
      %v2679 = vmul.f32 %v2653, %v755
      %v2680 = vmul.f32 %v2656, %v755
      %v2681 = vmul.f32 %v2659, %v755
      %v2682 = vmul.f32 %v2662, %v755
      %v2683 = vmul.f32 %v2665, %v755
      %v2684 = vmul.f32 %v2668, %v755
      %v2685 = vsub.f32 %v2605, %v2669
      %v2686 = vsub.f32 %v2606, %v2670
      %v2687 = vsub.f32 %v2607, %v2671
      %v2688 = vsub.f32 %v2608, %v2672
      %v2689 = vsub.f32 %v2609, %v2673
      %v2690 = vsub.f32 %v2610, %v2674
      %v2691 = vsub.f32 %v2611, %v2675
      %v2692 = vsub.f32 %v2612, %v2676
      %v2693 = vsub.f32 %v2613, %v2677
      %v2694 = vsub.f32 %v2614, %v2678
      %v2695 = vsub.f32 %v2615, %v2679
      %v2696 = vsub.f32 %v2616, %v2680
      %v2697 = vsub.f32 %v2617, %v2681
      %v2698 = vsub.f32 %v2618, %v2682
      %v2699 = vsub.f32 %v2619, %v2683
      %v2700 = vsub.f32 %v2620, %v2684
      %v2701 = vmul.f32 %v2685, %v2685
      %v2702 = vmul.f32 %v2686, %v2686
      %v2703 = vmul.f32 %v2687, %v2687
      %v2704 = vmul.f32 %v2688, %v2688
      %v2705 = vmul.f32 %v2689, %v2689
      %v2706 = vmul.f32 %v2690, %v2690
      %v2707 = vmul.f32 %v2691, %v2691
      %v2708 = vmul.f32 %v2692, %v2692
      %v2709 = vmul.f32 %v2693, %v2693
      %v2710 = vmul.f32 %v2694, %v2694
      %v2711 = vmul.f32 %v2695, %v2695
      %v2712 = vmul.f32 %v2696, %v2696
      %v2713 = vmul.f32 %v2697, %v2697
      %v2714 = vmul.f32 %v2698, %v2698
      %v2715 = vmul.f32 %v2699, %v2699
      %v2716 = vmul.f32 %v2700, %v2700
      %v2717 = vsel %vm706, %v2701, 0.0
      %2718 = vadd.xlane.f32.xlu0 %v2717
      %v2719 = vpop.xlane.xlu0 %2718
      %v2720 = vsel %vm706, %v2702, 0.0
      %2721 = vadd.xlane.f32.xlu0 %v2720
      %v2722 = vpop.xlane.xlu0 %2721
      %v2723 = vsel %vm706, %v2703, 0.0
      %2724 = vadd.xlane.f32.xlu0 %v2723
      %v2725 = vpop.xlane.xlu0 %2724
      %v2726 = vsel %vm706, %v2704, 0.0
      %2727 = vadd.xlane.f32.xlu0 %v2726
      %v2728 = vpop.xlane.xlu0 %2727
      %v2729 = vsel %vm706, %v2705, 0.0
      %2730 = vadd.xlane.f32.xlu0 %v2729
      %v2731 = vpop.xlane.xlu0 %2730
      %v2732 = vsel %vm706, %v2706, 0.0
      %2733 = vadd.xlane.f32.xlu0 %v2732
      %v2734 = vpop.xlane.xlu0 %2733
      %v2735 = vsel %vm706, %v2707, 0.0
      %2736 = vadd.xlane.f32.xlu0 %v2735
      %v2737 = vpop.xlane.xlu0 %2736
      %v2738 = vsel %vm706, %v2708, 0.0
      %2739 = vadd.xlane.f32.xlu0 %v2738
      %v2740 = vpop.xlane.xlu0 %2739
      %v2741 = vsel %vm706, %v2709, 0.0
      %2742 = vadd.xlane.f32.xlu0 %v2741
      %v2743 = vpop.xlane.xlu0 %2742
      %v2744 = vsel %vm706, %v2710, 0.0
      %2745 = vadd.xlane.f32.xlu0 %v2744
      %v2746 = vpop.xlane.xlu0 %2745
      %v2747 = vsel %vm706, %v2711, 0.0
      %2748 = vadd.xlane.f32.xlu0 %v2747
      %v2749 = vpop.xlane.xlu0 %2748
      %v2750 = vsel %vm706, %v2712, 0.0
      %2751 = vadd.xlane.f32.xlu0 %v2750
      %v2752 = vpop.xlane.xlu0 %2751
      %v2753 = vsel %vm706, %v2713, 0.0
      %2754 = vadd.xlane.f32.xlu0 %v2753
      %v2755 = vpop.xlane.xlu0 %2754
      %v2756 = vsel %vm706, %v2714, 0.0
      %2757 = vadd.xlane.f32.xlu0 %v2756
      %v2758 = vpop.xlane.xlu0 %2757
      %v2759 = vsel %vm706, %v2715, 0.0
      %2760 = vadd.xlane.f32.xlu0 %v2759
      %v2761 = vpop.xlane.xlu0 %2760
      %v2762 = vsel %vm706, %v2716, 0.0
      %2763 = vadd.xlane.f32.xlu0 %v2762
      %v2764 = vpop.xlane.xlu0 %2763
      %v2765 = vmul.f32 %v2719, %v755
      %v2766 = vmul.f32 %v2722, %v755
      %v2767 = vmul.f32 %v2725, %v755
      %v2768 = vmul.f32 %v2728, %v755
      %v2769 = vmul.f32 %v2731, %v755
      %v2770 = vmul.f32 %v2734, %v755
      %v2771 = vmul.f32 %v2737, %v755
      %v2772 = vmul.f32 %v2740, %v755
      %v2773 = vmul.f32 %v2743, %v755
      %v2774 = vmul.f32 %v2746, %v755
      %v2775 = vmul.f32 %v2749, %v755
      %v2776 = vmul.f32 %v2752, %v755
      %v2777 = vmul.f32 %v2755, %v755
      %v2778 = vmul.f32 %v2758, %v755
      %v2779 = vmul.f32 %v2761, %v755
      %v2780 = vmul.f32 %v2764, %v755
      %v2781 = vadd.f32 %v2765, 1e-06
      %v2782 = vadd.f32 %v2766, 1e-06
      %v2783 = vadd.f32 %v2767, 1e-06
      %v2784 = vadd.f32 %v2768, 1e-06
      %v2785 = vadd.f32 %v2769, 1e-06
      %v2786 = vadd.f32 %v2770, 1e-06
      %v2787 = vadd.f32 %v2771, 1e-06
      %v2788 = vadd.f32 %v2772, 1e-06
      %v2789 = vadd.f32 %v2773, 1e-06
      %v2790 = vadd.f32 %v2774, 1e-06
      %v2791 = vadd.f32 %v2775, 1e-06
      %v2792 = vadd.f32 %v2776, 1e-06
      %v2793 = vadd.f32 %v2777, 1e-06
      %v2794 = vadd.f32 %v2778, 1e-06
      %v2795 = vadd.f32 %v2779, 1e-06
      %v2796 = vadd.f32 %v2780, 1e-06
      %v2797 = vrsqrt.pop %v2781
      %v2798 = vrsqrt.pop %v2782
      %v2799 = vrsqrt.pop %v2783
      %v2800 = vrsqrt.pop %v2784
      %v2801 = vrsqrt.pop %v2785
      %v2802 = vrsqrt.pop %v2786
      %v2803 = vrsqrt.pop %v2787
      %v2804 = vrsqrt.pop %v2788
      %v2805 = vrsqrt.pop %v2789
      %v2806 = vrsqrt.pop %v2790
      %v2807 = vrsqrt.pop %v2791
      %v2808 = vrsqrt.pop %v2792
      %v2809 = vrsqrt.pop %v2793
      %v2810 = vrsqrt.pop %v2794
      %v2811 = vrsqrt.pop %v2795
      %v2812 = vrsqrt.pop %v2796
      %v2813 = vmul.f32 %v2685, %v2797
      %v2814 = vmul.f32 %v2686, %v2798
      %v2815 = vmul.f32 %v2687, %v2799
      %v2816 = vmul.f32 %v2688, %v2800
      %v2817 = vmul.f32 %v2689, %v2801
      %v2818 = vmul.f32 %v2690, %v2802
      %v2819 = vmul.f32 %v2691, %v2803
      %v2820 = vmul.f32 %v2692, %v2804
      %v2821 = vmul.f32 %v2693, %v2805
      %v2822 = vmul.f32 %v2694, %v2806
      %v2823 = vmul.f32 %v2695, %v2807
      %v2824 = vmul.f32 %v2696, %v2808
      %v2825 = vmul.f32 %v2697, %v2809
      %v2826 = vmul.f32 %v2698, %v2810
      %v2827 = vmul.f32 %v2699, %v2811
      %v2828 = vmul.f32 %v2700, %v2812
      %v2829 = vlaneseq
      %v2830 = vshrl.u32 %v2829, 7
      %v2831 = vsub.s32 1, %v2830
      %v2832 = vrot.slane %v446, %v2831
      %v2833 = vmul.f32 %v2813, %v2832
      %v2834 = vmul.f32 %v2814, %v2832
      %v2835 = vmul.f32 %v2815, %v2832
      %v2836 = vmul.f32 %v2816, %v2832
      %v2837 = vmul.f32 %v2817, %v2832
      %v2838 = vmul.f32 %v2818, %v2832
      %v2839 = vmul.f32 %v2819, %v2832
      %v2840 = vmul.f32 %v2820, %v2832
      %v2841 = vmul.f32 %v2821, %v2832
      %v2842 = vmul.f32 %v2822, %v2832
      %v2843 = vmul.f32 %v2823, %v2832
      %v2844 = vmul.f32 %v2824, %v2832
      %v2845 = vmul.f32 %v2825, %v2832
      %v2846 = vmul.f32 %v2826, %v2832
      %v2847 = vmul.f32 %v2827, %v2832
      %v2848 = vmul.f32 %v2828, %v2832
      %v2849 = vlaneseq
      %v2850 = vshrl.u32 %v2849, 7
      %v2851 = vsub.s32 2, %v2850
      %v2852 = vrot.slane %v446, %v2851
      %v2853 = vadd.f32 %v2833, %v2852
      %v2854 = vadd.f32 %v2834, %v2852
      %v2855 = vadd.f32 %v2835, %v2852
      %v2856 = vadd.f32 %v2836, %v2852
      %v2857 = vadd.f32 %v2837, %v2852
      %v2858 = vadd.f32 %v2838, %v2852
      %v2859 = vadd.f32 %v2839, %v2852
      %v2860 = vadd.f32 %v2840, %v2852
      %v2861 = vadd.f32 %v2841, %v2852
      %v2862 = vadd.f32 %v2842, %v2852
      %v2863 = vadd.f32 %v2843, %v2852
      %v2864 = vadd.f32 %v2844, %v2852
      %v2865 = vadd.f32 %v2845, %v2852
      %v2866 = vadd.f32 %v2846, %v2852
      %v2867 = vadd.f32 %v2847, %v2852
      %v2868 = vadd.f32 %v2848, %v2852
      %v2869 = vld [vmem:[%s8] sm:$0xff]
      %v2870 = vld [vmem:[%s8 + $0x8] sm:$0xff]
      %v2871 = vld [vmem:[%s8 + $0x10] sm:$0xff]
      %v2872 = vld [vmem:[%s8 + $0x18] sm:$0xff]
      %v2873 = vpack.c.bf16 %v2854, %v2853
      %v2874 = vpack.c.bf16 %v2856, %v2855
      %v2875 = vpack.c.bf16 %v2858, %v2857
      %v2876 = vpack.c.bf16 %v2860, %v2859
      %v2877 = vpack.c.bf16 %v2862, %v2861
      %v2878 = vpack.c.bf16 %v2864, %v2863
      %v2879 = vpack.c.bf16 %v2866, %v2865
      %v2880 = vpack.c.bf16 %v2868, %v2867
      %v2881 = vlaneseq
      %v2882 = vshrl.u32 %v2881, 7
      %v2883 = vsub.s32 3, %v2882
      %v2884 = vrot.slane %v446, %v2883
      %v2885 = vlaneseq
      %v2886 = vshrl.u32 %v2885, 7
      %v2887 = vsub.s32 3, %v2886
      %v2888 = vrot.slane %v447, %v2887
      %v2893 = vunpack.c.l.b16 %v2869
      %v2894 = vunpack.c.h.b16 %v2869
      %v2895 = vunpack.c.l.b16 %v2870
      %v2896 = vunpack.c.h.b16 %v2870
      %v2897 = vunpack.c.l.b16 %v2871
      %v2898 = vunpack.c.h.b16 %v2871
      %v2899 = vunpack.c.l.b16 %v2872
      %v2900 = vunpack.c.h.b16 %v2872
      %v2901 = vpack.c.b16 %v2895, %v2893
      %v2902 = vpack.c.b16 %v2896, %v2894
      %v2903 = vpack.c.b16 %v2899, %v2897
      %v2904 = vpack.c.b16 %v2900, %v2898
      %v2910 = vsel %vm706, %v2873, 0
      %v2913 = vsel %vm706, %v2874, 0
      %v2916 = vsel %vm706, %v2875, 0
      %v2919 = vsel %vm706, %v2876, 0
      %v2922 = vsel %vm706, %v2877, 0
      %v2925 = vsel %vm706, %v2878, 0
      %v2928 = vsel %vm706, %v2879, 0
      %v2931 = vsel %vm706, %v2880, 0
      %2933 = vmatprep.subr.bf16.mxu0 %v2902
      %2934 = vmatpush1.bf16.msra.mxu0 %v2901
      %2935 = vmatprep.subr.bf16.mxu0 %v2904
      %2936 = vmatpush1.bf16.msra.mxu0 %v2903
      %2937 = vmatprep.subr.bf16.mxu0 0
      %2938 = vmatpush1.bf16.msra.mxu0 0
      %2939 = vmatprep.subr.bf16.mxu0 0
      %2940 = vmatpush1.bf16.msra.mxu0 0
      %2941 = vmatprep.subr.bf16.mxu0 0
      %2942 = vmatpush1.bf16.msra.mxu0 0
      %2943 = vmatprep.subr.bf16.mxu0 0
      %2944 = vmatpush1.bf16.msra.mxu0 0
      %2945 = vmatprep.subr.bf16.mxu0 0
      %2946 = vmatpush1.bf16.msra.mxu0 0
      %2947 = vmatprep.subr.bf16.mxu0 0
      %2948 = vmatpush1.bf16.msra.mxu0 0
      %2949 = vmatprep.subr.bf16.mxu0 0
      %2950 = vmatpush1.bf16.msra.mxu0 0
      %2951 = vmatprep.subr.bf16.mxu0 0
      %2952 = vmatpush1.bf16.msra.mxu0 0
      %2953 = vmatprep.subr.bf16.mxu0 0
      %2954 = vmatpush1.bf16.msra.mxu0 0
      %2955 = vmatprep.subr.bf16.mxu0 0
      %2956 = vmatpush1.bf16.msra.mxu0 0
      %2957 = vmatprep.subr.bf16.mxu0 0
      %2958 = vmatpush1.bf16.msra.mxu0 0
      %2959 = vmatprep.subr.bf16.mxu0 0
      %2960 = vmatpush1.bf16.msra.mxu0 0
      %2961 = vmatprep.subr.bf16.mxu0 0
      %2962 = vmatpush1.bf16.msra.mxu0 0
      %2963 = vmatprep.subr.bf16.mxu0 0
      %2964 = vmatpush1.bf16.msra.mxu0 0
      %2965 = vmatprep.mubr.bf16.mxu0 0
      %2966 = vmatmul.mubr.bf16.gmra.mrb[0].mxu0 %v2910
      %v2967 = vpop.f32.mrb[0].mxu0
      %v2968 = vadd.f32 %v2884, %v2967
      %v2969 = vpop.f32.mrb[0].mxu0
      %v2970 = vadd.f32 %v2888, %v2969
      %v2971 = vpop.f32.mrb[0].mxu0
      %v2972 = vadd.f32 %v2884, %v2971
      %v2973 = vpop.f32.mrb[0].mxu0
      %v2974 = vadd.f32 %v2888, %v2973
      %2975 = vmatprep.mubr.bf16.mxu0 0
      %2976 = vmatmul.mubr.bf16.gmra.mrb[0].mxu0 %v2913
      %v2977 = vpop.f32.mrb[0].mxu0
      %v2978 = vadd.f32 %v2884, %v2977
      %v2979 = vpop.f32.mrb[0].mxu0
      %v2980 = vadd.f32 %v2888, %v2979
      %v2981 = vpop.f32.mrb[0].mxu0
      %v2982 = vadd.f32 %v2884, %v2981
      %v2983 = vpop.f32.mrb[0].mxu0
      %v2984 = vadd.f32 %v2888, %v2983
      %2985 = vmatprep.mubr.bf16.mxu0 0
      %2986 = vmatmul.mubr.bf16.gmra.mrb[0].mxu0 %v2916
      %v2987 = vpop.f32.mrb[0].mxu0
      %v2988 = vadd.f32 %v2884, %v2987
      %v2989 = vpop.f32.mrb[0].mxu0
      %v2990 = vadd.f32 %v2888, %v2989
      %v2991 = vpop.f32.mrb[0].mxu0
      %v2992 = vadd.f32 %v2884, %v2991
      %v2993 = vpop.f32.mrb[0].mxu0
      %v2994 = vadd.f32 %v2888, %v2993
      %2995 = vmatprep.mubr.bf16.mxu0 0
      %2996 = vmatmul.mubr.bf16.gmra.mrb[0].mxu0 %v2919
      %v2997 = vpop.f32.mrb[0].mxu0
      %v2998 = vadd.f32 %v2884, %v2997
      %v2999 = vpop.f32.mrb[0].mxu0
      %v3000 = vadd.f32 %v2888, %v2999
      %v3001 = vpop.f32.mrb[0].mxu0
      %v3002 = vadd.f32 %v2884, %v3001
      %v3003 = vpop.f32.mrb[0].mxu0
      %v3004 = vadd.f32 %v2888, %v3003
      %3005 = vmatprep.mubr.bf16.mxu0 0
      %3006 = vmatmul.mubr.bf16.gmra.mrb[0].mxu0 %v2922
      %v3007 = vpop.f32.mrb[0].mxu0
      %v3008 = vadd.f32 %v2884, %v3007
      %v3009 = vpop.f32.mrb[0].mxu0
      %v3010 = vadd.f32 %v2888, %v3009
      %v3011 = vpop.f32.mrb[0].mxu0
      %v3012 = vadd.f32 %v2884, %v3011
      %v3013 = vpop.f32.mrb[0].mxu0
      %v3014 = vadd.f32 %v2888, %v3013
      %3015 = vmatprep.mubr.bf16.mxu0 0
      %3016 = vmatmul.mubr.bf16.gmra.mrb[0].mxu0 %v2925
      %v3017 = vpop.f32.mrb[0].mxu0
      %v3018 = vadd.f32 %v2884, %v3017
      %v3019 = vpop.f32.mrb[0].mxu0
      %v3020 = vadd.f32 %v2888, %v3019
      %v3021 = vpop.f32.mrb[0].mxu0
      %v3022 = vadd.f32 %v2884, %v3021
      %v3023 = vpop.f32.mrb[0].mxu0
      %v3024 = vadd.f32 %v2888, %v3023
      %3025 = vmatprep.mubr.bf16.mxu0 0
      %3026 = vmatmul.mubr.bf16.gmra.mrb[0].mxu0 %v2928
      %v3027 = vpop.f32.mrb[0].mxu0
      %v3028 = vadd.f32 %v2884, %v3027
      %v3029 = vpop.f32.mrb[0].mxu0
      %v3030 = vadd.f32 %v2888, %v3029
      %v3031 = vpop.f32.mrb[0].mxu0
      %v3032 = vadd.f32 %v2884, %v3031
      %v3033 = vpop.f32.mrb[0].mxu0
      %v3034 = vadd.f32 %v2888, %v3033
      %3035 = vmatprep.mubr.bf16.mxu0 0
      %3036 = vmatmul.mubr.bf16.gmra.mrb[0].mxu0 %v2931
      %v3037 = vpop.f32.mrb[0].mxu0
      %v3038 = vadd.f32 %v2884, %v3037
      %v3039 = vpop.f32.mrb[0].mxu0
      %v3040 = vadd.f32 %v2888, %v3039
      %v3041 = vpop.f32.mrb[0].mxu0
      %v3042 = vadd.f32 %v2884, %v3041
      %v3043 = vpop.f32.mrb[0].mxu0
      %v3044 = vadd.f32 %v2888, %v3043
      %3045 = vdwg.mxu0
      %v3078 = vcombine.low %v2968, %v2970
      %v3079 = vcombine.high %v2968, %v2970
      %v3080 = vcombine.low %v2972, %v2974
      %v3081 = vcombine.high %v2972, %v2974
      %v3082 = vcombine.low %v2978, %v2980
      %v3083 = vcombine.high %v2978, %v2980
      %v3084 = vcombine.low %v2982, %v2984
      %v3085 = vcombine.high %v2982, %v2984
      %v3086 = vcombine.low %v2988, %v2990
      %v3087 = vcombine.high %v2988, %v2990
      %v3088 = vcombine.low %v2992, %v2994
      %v3089 = vcombine.high %v2992, %v2994
      %v3090 = vcombine.low %v2998, %v3000
      %v3091 = vcombine.high %v2998, %v3000
      %v3092 = vcombine.low %v3002, %v3004
      %v3093 = vcombine.high %v3002, %v3004
      %v3094 = vcombine.low %v3008, %v3010
      %v3095 = vcombine.high %v3008, %v3010
      %v3096 = vcombine.low %v3012, %v3014
      %v3097 = vcombine.high %v3012, %v3014
      %v3098 = vcombine.low %v3018, %v3020
      %v3099 = vcombine.high %v3018, %v3020
      %v3100 = vcombine.low %v3022, %v3024
      %v3101 = vcombine.high %v3022, %v3024
      %v3102 = vcombine.low %v3028, %v3030
      %v3103 = vcombine.high %v3028, %v3030
      %v3104 = vcombine.low %v3032, %v3034
      %v3105 = vcombine.high %v3032, %v3034
      %v3106 = vcombine.low %v3038, %v3040
      %v3107 = vcombine.high %v3038, %v3040
      %v3108 = vcombine.low %v3042, %v3044
      %v3109 = vcombine.high %v3042, %v3044
      %v3142 = vcombine.high %v3078, %v3078
      %v3143 = vcombine.high %v3079, %v3079
      %v3144 = vcombine.high %v3080, %v3080
      %v3145 = vcombine.high %v3081, %v3081
      %v3146 = vcombine.high %v3082, %v3082
      %v3147 = vcombine.high %v3083, %v3083
      %v3148 = vcombine.high %v3084, %v3084
      %v3149 = vcombine.high %v3085, %v3085
      %v3150 = vcombine.high %v3086, %v3086
      %v3151 = vcombine.high %v3087, %v3087
      %v3152 = vcombine.high %v3088, %v3088
      %v3153 = vcombine.high %v3089, %v3089
      %v3154 = vcombine.high %v3090, %v3090
      %v3155 = vcombine.high %v3091, %v3091
      %v3156 = vcombine.high %v3092, %v3092
      %v3157 = vcombine.high %v3093, %v3093
      %v3158 = vcombine.high %v3094, %v3094
      %v3159 = vcombine.high %v3095, %v3095
      %v3160 = vcombine.high %v3096, %v3096
      %v3161 = vcombine.high %v3097, %v3097
      %v3162 = vcombine.high %v3098, %v3098
      %v3163 = vcombine.high %v3099, %v3099
      %v3164 = vcombine.high %v3100, %v3100
      %v3165 = vcombine.high %v3101, %v3101
      %v3166 = vcombine.high %v3102, %v3102
      %v3167 = vcombine.high %v3103, %v3103
      %v3168 = vcombine.high %v3104, %v3104
      %v3169 = vcombine.high %v3105, %v3105
      %v3170 = vcombine.high %v3106, %v3106
      %v3171 = vcombine.high %v3107, %v3107
      %v3172 = vcombine.high %v3108, %v3108
      %v3173 = vcombine.high %v3109, %v3109
      %vm3206 = vcmask 1043456
      %v3207 = vsel %vm3206, %v3078, -inf
      %v3208 = vrot.slane %v3207, 4
      %v3209 = vmax.f32 %v3207, %v3208
      %v3210 = vrot.slane %v3209, 2
      %v3211 = vmax.f32 %v3209, %v3210
      %v3212 = vrot.slane %v3211, 1
      %v3213 = vmax.f32 %v3211, %v3212
      %v3214 = vsel %vm3206, %v3142, -inf
      %v3215 = vrot.slane %v3214, 4
      %v3216 = vmax.f32 %v3214, %v3215
      %v3217 = vrot.slane %v3216, 2
      %v3218 = vmax.f32 %v3216, %v3217
      %v3219 = vrot.slane %v3218, 1
      %v3220 = vmax.f32 %v3218, %v3219
      %v3221 = vsel %vm3206, %v3079, -inf
      %v3222 = vrot.slane %v3221, 4
      %v3223 = vmax.f32 %v3221, %v3222
      %v3224 = vrot.slane %v3223, 2
      %v3225 = vmax.f32 %v3223, %v3224
      %v3226 = vrot.slane %v3225, 1
      %v3227 = vmax.f32 %v3225, %v3226
      %v3228 = vsel %vm3206, %v3143, -inf
      %v3229 = vrot.slane %v3228, 4
      %v3230 = vmax.f32 %v3228, %v3229
      %v3231 = vrot.slane %v3230, 2
      %v3232 = vmax.f32 %v3230, %v3231
      %v3233 = vrot.slane %v3232, 1
      %v3234 = vmax.f32 %v3232, %v3233
      %v3235 = vsel %vm3206, %v3080, -inf
      %v3236 = vrot.slane %v3235, 4
      %v3237 = vmax.f32 %v3235, %v3236
      %v3238 = vrot.slane %v3237, 2
      %v3239 = vmax.f32 %v3237, %v3238
      %v3240 = vrot.slane %v3239, 1
      %v3241 = vmax.f32 %v3239, %v3240
      %v3242 = vsel %vm3206, %v3144, -inf
      %v3243 = vrot.slane %v3242, 4
      %v3244 = vmax.f32 %v3242, %v3243
      %v3245 = vrot.slane %v3244, 2
      %v3246 = vmax.f32 %v3244, %v3245
      %v3247 = vrot.slane %v3246, 1
      %v3248 = vmax.f32 %v3246, %v3247
      %v3249 = vsel %vm3206, %v3081, -inf
      %v3250 = vrot.slane %v3249, 4
      %v3251 = vmax.f32 %v3249, %v3250
      %v3252 = vrot.slane %v3251, 2
      %v3253 = vmax.f32 %v3251, %v3252
      %v3254 = vrot.slane %v3253, 1
      %v3255 = vmax.f32 %v3253, %v3254
      %v3256 = vsel %vm3206, %v3145, -inf
      %v3257 = vrot.slane %v3256, 4
      %v3258 = vmax.f32 %v3256, %v3257
      %v3259 = vrot.slane %v3258, 2
      %v3260 = vmax.f32 %v3258, %v3259
      %v3261 = vrot.slane %v3260, 1
      %v3262 = vmax.f32 %v3260, %v3261
      %v3263 = vsel %vm3206, %v3082, -inf
      %v3264 = vrot.slane %v3263, 4
      %v3265 = vmax.f32 %v3263, %v3264
      %v3266 = vrot.slane %v3265, 2
      %v3267 = vmax.f32 %v3265, %v3266
      %v3268 = vrot.slane %v3267, 1
      %v3269 = vmax.f32 %v3267, %v3268
      %v3270 = vsel %vm3206, %v3146, -inf
      %v3271 = vrot.slane %v3270, 4
      %v3272 = vmax.f32 %v3270, %v3271
      %v3273 = vrot.slane %v3272, 2
      %v3274 = vmax.f32 %v3272, %v3273
      %v3275 = vrot.slane %v3274, 1
      %v3276 = vmax.f32 %v3274, %v3275
      %v3277 = vsel %vm3206, %v3083, -inf
      %v3278 = vrot.slane %v3277, 4
      %v3279 = vmax.f32 %v3277, %v3278
      %v3280 = vrot.slane %v3279, 2
      %v3281 = vmax.f32 %v3279, %v3280
      %v3282 = vrot.slane %v3281, 1
      %v3283 = vmax.f32 %v3281, %v3282
      %v3284 = vsel %vm3206, %v3147, -inf
      %v3285 = vrot.slane %v3284, 4
      %v3286 = vmax.f32 %v3284, %v3285
      %v3287 = vrot.slane %v3286, 2
      %v3288 = vmax.f32 %v3286, %v3287
      %v3289 = vrot.slane %v3288, 1
      %v3290 = vmax.f32 %v3288, %v3289
      %v3291 = vsel %vm3206, %v3084, -inf
      %v3292 = vrot.slane %v3291, 4
      %v3293 = vmax.f32 %v3291, %v3292
      %v3294 = vrot.slane %v3293, 2
      %v3295 = vmax.f32 %v3293, %v3294
      %v3296 = vrot.slane %v3295, 1
      %v3297 = vmax.f32 %v3295, %v3296
      %v3298 = vsel %vm3206, %v3148, -inf
      %v3299 = vrot.slane %v3298, 4
      %v3300 = vmax.f32 %v3298, %v3299
      %v3301 = vrot.slane %v3300, 2
      %v3302 = vmax.f32 %v3300, %v3301
      %v3303 = vrot.slane %v3302, 1
      %v3304 = vmax.f32 %v3302, %v3303
      %v3305 = vsel %vm3206, %v3085, -inf
      %v3306 = vrot.slane %v3305, 4
      %v3307 = vmax.f32 %v3305, %v3306
      %v3308 = vrot.slane %v3307, 2
      %v3309 = vmax.f32 %v3307, %v3308
      %v3310 = vrot.slane %v3309, 1
      %v3311 = vmax.f32 %v3309, %v3310
      %v3312 = vsel %vm3206, %v3149, -inf
      %v3313 = vrot.slane %v3312, 4
      %v3314 = vmax.f32 %v3312, %v3313
      %v3315 = vrot.slane %v3314, 2
      %v3316 = vmax.f32 %v3314, %v3315
      %v3317 = vrot.slane %v3316, 1
      %v3318 = vmax.f32 %v3316, %v3317
      %v3319 = vsel %vm3206, %v3086, -inf
      %v3320 = vrot.slane %v3319, 4
      %v3321 = vmax.f32 %v3319, %v3320
      %v3322 = vrot.slane %v3321, 2
      %v3323 = vmax.f32 %v3321, %v3322
      %v3324 = vrot.slane %v3323, 1
      %v3325 = vmax.f32 %v3323, %v3324
      %v3326 = vsel %vm3206, %v3150, -inf
      %v3327 = vrot.slane %v3326, 4
      %v3328 = vmax.f32 %v3326, %v3327
      %v3329 = vrot.slane %v3328, 2
      %v3330 = vmax.f32 %v3328, %v3329
      %v3331 = vrot.slane %v3330, 1
      %v3332 = vmax.f32 %v3330, %v3331
      %v3333 = vsel %vm3206, %v3087, -inf
      %v3334 = vrot.slane %v3333, 4
      %v3335 = vmax.f32 %v3333, %v3334
      %v3336 = vrot.slane %v3335, 2
      %v3337 = vmax.f32 %v3335, %v3336
      %v3338 = vrot.slane %v3337, 1
      %v3339 = vmax.f32 %v3337, %v3338
      %v3340 = vsel %vm3206, %v3151, -inf
      %v3341 = vrot.slane %v3340, 4
      %v3342 = vmax.f32 %v3340, %v3341
      %v3343 = vrot.slane %v3342, 2
      %v3344 = vmax.f32 %v3342, %v3343
      %v3345 = vrot.slane %v3344, 1
      %v3346 = vmax.f32 %v3344, %v3345
      %v3347 = vsel %vm3206, %v3088, -inf
      %v3348 = vrot.slane %v3347, 4
      %v3349 = vmax.f32 %v3347, %v3348
      %v3350 = vrot.slane %v3349, 2
      %v3351 = vmax.f32 %v3349, %v3350
      %v3352 = vrot.slane %v3351, 1
      %v3353 = vmax.f32 %v3351, %v3352
      %v3354 = vsel %vm3206, %v3152, -inf
      %v3355 = vrot.slane %v3354, 4
      %v3356 = vmax.f32 %v3354, %v3355
      %v3357 = vrot.slane %v3356, 2
      %v3358 = vmax.f32 %v3356, %v3357
      %v3359 = vrot.slane %v3358, 1
      %v3360 = vmax.f32 %v3358, %v3359
      %v3361 = vsel %vm3206, %v3089, -inf
      %v3362 = vrot.slane %v3361, 4
      %v3363 = vmax.f32 %v3361, %v3362
      %v3364 = vrot.slane %v3363, 2
      %v3365 = vmax.f32 %v3363, %v3364
      %v3366 = vrot.slane %v3365, 1
      %v3367 = vmax.f32 %v3365, %v3366
      %v3368 = vsel %vm3206, %v3153, -inf
      %v3369 = vrot.slane %v3368, 4
      %v3370 = vmax.f32 %v3368, %v3369
      %v3371 = vrot.slane %v3370, 2
      %v3372 = vmax.f32 %v3370, %v3371
      %v3373 = vrot.slane %v3372, 1
      %v3374 = vmax.f32 %v3372, %v3373
      %v3375 = vsel %vm3206, %v3090, -inf
      %v3376 = vrot.slane %v3375, 4
      %v3377 = vmax.f32 %v3375, %v3376
      %v3378 = vrot.slane %v3377, 2
      %v3379 = vmax.f32 %v3377, %v3378
      %v3380 = vrot.slane %v3379, 1
      %v3381 = vmax.f32 %v3379, %v3380
      %v3382 = vsel %vm3206, %v3154, -inf
      %v3383 = vrot.slane %v3382, 4
      %v3384 = vmax.f32 %v3382, %v3383
      %v3385 = vrot.slane %v3384, 2
      %v3386 = vmax.f32 %v3384, %v3385
      %v3387 = vrot.slane %v3386, 1
      %v3388 = vmax.f32 %v3386, %v3387
      %v3389 = vsel %vm3206, %v3091, -inf
      %v3390 = vrot.slane %v3389, 4
      %v3391 = vmax.f32 %v3389, %v3390
      %v3392 = vrot.slane %v3391, 2
      %v3393 = vmax.f32 %v3391, %v3392
      %v3394 = vrot.slane %v3393, 1
      %v3395 = vmax.f32 %v3393, %v3394
      %v3396 = vsel %vm3206, %v3155, -inf
      %v3397 = vrot.slane %v3396, 4
      %v3398 = vmax.f32 %v3396, %v3397
      %v3399 = vrot.slane %v3398, 2
      %v3400 = vmax.f32 %v3398, %v3399
      %v3401 = vrot.slane %v3400, 1
      %v3402 = vmax.f32 %v3400, %v3401
      %v3403 = vsel %vm3206, %v3092, -inf
      %v3404 = vrot.slane %v3403, 4
      %v3405 = vmax.f32 %v3403, %v3404
      %v3406 = vrot.slane %v3405, 2
      %v3407 = vmax.f32 %v3405, %v3406
      %v3408 = vrot.slane %v3407, 1
      %v3409 = vmax.f32 %v3407, %v3408
      %v3410 = vsel %vm3206, %v3156, -inf
      %v3411 = vrot.slane %v3410, 4
      %v3412 = vmax.f32 %v3410, %v3411
      %v3413 = vrot.slane %v3412, 2
      %v3414 = vmax.f32 %v3412, %v3413
      %v3415 = vrot.slane %v3414, 1
      %v3416 = vmax.f32 %v3414, %v3415
      %v3417 = vsel %vm3206, %v3093, -inf
      %v3418 = vrot.slane %v3417, 4
      %v3419 = vmax.f32 %v3417, %v3418
      %v3420 = vrot.slane %v3419, 2
      %v3421 = vmax.f32 %v3419, %v3420
      %v3422 = vrot.slane %v3421, 1
      %v3423 = vmax.f32 %v3421, %v3422
      %v3424 = vsel %vm3206, %v3157, -inf
      %v3425 = vrot.slane %v3424, 4
      %v3426 = vmax.f32 %v3424, %v3425
      %v3427 = vrot.slane %v3426, 2
      %v3428 = vmax.f32 %v3426, %v3427
      %v3429 = vrot.slane %v3428, 1
      %v3430 = vmax.f32 %v3428, %v3429
      %v3431 = vsel %vm3206, %v3094, -inf
      %v3432 = vrot.slane %v3431, 4
      %v3433 = vmax.f32 %v3431, %v3432
      %v3434 = vrot.slane %v3433, 2
      %v3435 = vmax.f32 %v3433, %v3434
      %v3436 = vrot.slane %v3435, 1
      %v3437 = vmax.f32 %v3435, %v3436
      %v3438 = vsel %vm3206, %v3158, -inf
      %v3439 = vrot.slane %v3438, 4
      %v3440 = vmax.f32 %v3438, %v3439
      %v3441 = vrot.slane %v3440, 2
      %v3442 = vmax.f32 %v3440, %v3441
      %v3443 = vrot.slane %v3442, 1
      %v3444 = vmax.f32 %v3442, %v3443
      %v3445 = vsel %vm3206, %v3095, -inf
      %v3446 = vrot.slane %v3445, 4
      %v3447 = vmax.f32 %v3445, %v3446
      %v3448 = vrot.slane %v3447, 2
      %v3449 = vmax.f32 %v3447, %v3448
      %v3450 = vrot.slane %v3449, 1
      %v3451 = vmax.f32 %v3449, %v3450
      %v3452 = vsel %vm3206, %v3159, -inf
      %v3453 = vrot.slane %v3452, 4
      %v3454 = vmax.f32 %v3452, %v3453
      %v3455 = vrot.slane %v3454, 2
      %v3456 = vmax.f32 %v3454, %v3455
      %v3457 = vrot.slane %v3456, 1
      %v3458 = vmax.f32 %v3456, %v3457
      %v3459 = vsel %vm3206, %v3096, -inf
      %v3460 = vrot.slane %v3459, 4
      %v3461 = vmax.f32 %v3459, %v3460
      %v3462 = vrot.slane %v3461, 2
      %v3463 = vmax.f32 %v3461, %v3462
      %v3464 = vrot.slane %v3463, 1
      %v3465 = vmax.f32 %v3463, %v3464
      %v3466 = vsel %vm3206, %v3160, -inf
      %v3467 = vrot.slane %v3466, 4
      %v3468 = vmax.f32 %v3466, %v3467
      %v3469 = vrot.slane %v3468, 2
      %v3470 = vmax.f32 %v3468, %v3469
      %v3471 = vrot.slane %v3470, 1
      %v3472 = vmax.f32 %v3470, %v3471
      %v3473 = vsel %vm3206, %v3097, -inf
      %v3474 = vrot.slane %v3473, 4
      %v3475 = vmax.f32 %v3473, %v3474
      %v3476 = vrot.slane %v3475, 2
      %v3477 = vmax.f32 %v3475, %v3476
      %v3478 = vrot.slane %v3477, 1
      %v3479 = vmax.f32 %v3477, %v3478
      %v3480 = vsel %vm3206, %v3161, -inf
      %v3481 = vrot.slane %v3480, 4
      %v3482 = vmax.f32 %v3480, %v3481
      %v3483 = vrot.slane %v3482, 2
      %v3484 = vmax.f32 %v3482, %v3483
      %v3485 = vrot.slane %v3484, 1
      %v3486 = vmax.f32 %v3484, %v3485
      %v3487 = vsel %vm3206, %v3098, -inf
      %v3488 = vrot.slane %v3487, 4
      %v3489 = vmax.f32 %v3487, %v3488
      %v3490 = vrot.slane %v3489, 2
      %v3491 = vmax.f32 %v3489, %v3490
      %v3492 = vrot.slane %v3491, 1
      %v3493 = vmax.f32 %v3491, %v3492
      %v3494 = vsel %vm3206, %v3162, -inf
      %v3495 = vrot.slane %v3494, 4
      %v3496 = vmax.f32 %v3494, %v3495
      %v3497 = vrot.slane %v3496, 2
      %v3498 = vmax.f32 %v3496, %v3497
      %v3499 = vrot.slane %v3498, 1
      %v3500 = vmax.f32 %v3498, %v3499
      %v3501 = vsel %vm3206, %v3099, -inf
      %v3502 = vrot.slane %v3501, 4
      %v3503 = vmax.f32 %v3501, %v3502
      %v3504 = vrot.slane %v3503, 2
      %v3505 = vmax.f32 %v3503, %v3504
      %v3506 = vrot.slane %v3505, 1
      %v3507 = vmax.f32 %v3505, %v3506
      %v3508 = vsel %vm3206, %v3163, -inf
      %v3509 = vrot.slane %v3508, 4
      %v3510 = vmax.f32 %v3508, %v3509
      %v3511 = vrot.slane %v3510, 2
      %v3512 = vmax.f32 %v3510, %v3511
      %v3513 = vrot.slane %v3512, 1
      %v3514 = vmax.f32 %v3512, %v3513
      %v3515 = vsel %vm3206, %v3100, -inf
      %v3516 = vrot.slane %v3515, 4
      %v3517 = vmax.f32 %v3515, %v3516
      %v3518 = vrot.slane %v3517, 2
      %v3519 = vmax.f32 %v3517, %v3518
      %v3520 = vrot.slane %v3519, 1
      %v3521 = vmax.f32 %v3519, %v3520
      %v3522 = vsel %vm3206, %v3164, -inf
      %v3523 = vrot.slane %v3522, 4
      %v3524 = vmax.f32 %v3522, %v3523
      %v3525 = vrot.slane %v3524, 2
      %v3526 = vmax.f32 %v3524, %v3525
      %v3527 = vrot.slane %v3526, 1
      %v3528 = vmax.f32 %v3526, %v3527
      %v3529 = vsel %vm3206, %v3101, -inf
      %v3530 = vrot.slane %v3529, 4
      %v3531 = vmax.f32 %v3529, %v3530
      %v3532 = vrot.slane %v3531, 2
      %v3533 = vmax.f32 %v3531, %v3532
      %v3534 = vrot.slane %v3533, 1
      %v3535 = vmax.f32 %v3533, %v3534
      %v3536 = vsel %vm3206, %v3165, -inf
      %v3537 = vrot.slane %v3536, 4
      %v3538 = vmax.f32 %v3536, %v3537
      %v3539 = vrot.slane %v3538, 2
      %v3540 = vmax.f32 %v3538, %v3539
      %v3541 = vrot.slane %v3540, 1
      %v3542 = vmax.f32 %v3540, %v3541
      %v3543 = vsel %vm3206, %v3102, -inf
      %v3544 = vrot.slane %v3543, 4
      %v3545 = vmax.f32 %v3543, %v3544
      %v3546 = vrot.slane %v3545, 2
      %v3547 = vmax.f32 %v3545, %v3546
      %v3548 = vrot.slane %v3547, 1
      %v3549 = vmax.f32 %v3547, %v3548
      %v3550 = vsel %vm3206, %v3166, -inf
      %v3551 = vrot.slane %v3550, 4
      %v3552 = vmax.f32 %v3550, %v3551
      %v3553 = vrot.slane %v3552, 2
      %v3554 = vmax.f32 %v3552, %v3553
      %v3555 = vrot.slane %v3554, 1
      %v3556 = vmax.f32 %v3554, %v3555
      %v3557 = vsel %vm3206, %v3103, -inf
      %v3558 = vrot.slane %v3557, 4
      %v3559 = vmax.f32 %v3557, %v3558
      %v3560 = vrot.slane %v3559, 2
      %v3561 = vmax.f32 %v3559, %v3560
      %v3562 = vrot.slane %v3561, 1
      %v3563 = vmax.f32 %v3561, %v3562
      %v3564 = vsel %vm3206, %v3167, -inf
      %v3565 = vrot.slane %v3564, 4
      %v3566 = vmax.f32 %v3564, %v3565
      %v3567 = vrot.slane %v3566, 2
      %v3568 = vmax.f32 %v3566, %v3567
      %v3569 = vrot.slane %v3568, 1
      %v3570 = vmax.f32 %v3568, %v3569
      %v3571 = vsel %vm3206, %v3104, -inf
      %v3572 = vrot.slane %v3571, 4
      %v3573 = vmax.f32 %v3571, %v3572
      %v3574 = vrot.slane %v3573, 2
      %v3575 = vmax.f32 %v3573, %v3574
      %v3576 = vrot.slane %v3575, 1
      %v3577 = vmax.f32 %v3575, %v3576
      %v3578 = vsel %vm3206, %v3168, -inf
      %v3579 = vrot.slane %v3578, 4
      %v3580 = vmax.f32 %v3578, %v3579
      %v3581 = vrot.slane %v3580, 2
      %v3582 = vmax.f32 %v3580, %v3581
      %v3583 = vrot.slane %v3582, 1
      %v3584 = vmax.f32 %v3582, %v3583
      %v3585 = vsel %vm3206, %v3105, -inf
      %v3586 = vrot.slane %v3585, 4
      %v3587 = vmax.f32 %v3585, %v3586
      %v3588 = vrot.slane %v3587, 2
      %v3589 = vmax.f32 %v3587, %v3588
      %v3590 = vrot.slane %v3589, 1
      %v3591 = vmax.f32 %v3589, %v3590
      %v3592 = vsel %vm3206, %v3169, -inf
      %v3593 = vrot.slane %v3592, 4
      %v3594 = vmax.f32 %v3592, %v3593
      %v3595 = vrot.slane %v3594, 2
      %v3596 = vmax.f32 %v3594, %v3595
      %v3597 = vrot.slane %v3596, 1
      %v3598 = vmax.f32 %v3596, %v3597
      %v3599 = vsel %vm3206, %v3106, -inf
      %v3600 = vrot.slane %v3599, 4
      %v3601 = vmax.f32 %v3599, %v3600
      %v3602 = vrot.slane %v3601, 2
      %v3603 = vmax.f32 %v3601, %v3602
      %v3604 = vrot.slane %v3603, 1
      %v3605 = vmax.f32 %v3603, %v3604
      %v3606 = vsel %vm3206, %v3170, -inf
      %v3607 = vrot.slane %v3606, 4
      %v3608 = vmax.f32 %v3606, %v3607
      %v3609 = vrot.slane %v3608, 2
      %v3610 = vmax.f32 %v3608, %v3609
      %v3611 = vrot.slane %v3610, 1
      %v3612 = vmax.f32 %v3610, %v3611
      %v3613 = vsel %vm3206, %v3107, -inf
      %v3614 = vrot.slane %v3613, 4
      %v3615 = vmax.f32 %v3613, %v3614
      %v3616 = vrot.slane %v3615, 2
      %v3617 = vmax.f32 %v3615, %v3616
      %v3618 = vrot.slane %v3617, 1
      %v3619 = vmax.f32 %v3617, %v3618
      %v3620 = vsel %vm3206, %v3171, -inf
      %v3621 = vrot.slane %v3620, 4
      %v3622 = vmax.f32 %v3620, %v3621
      %v3623 = vrot.slane %v3622, 2
      %v3624 = vmax.f32 %v3622, %v3623
      %v3625 = vrot.slane %v3624, 1
      %v3626 = vmax.f32 %v3624, %v3625
      %v3627 = vsel %vm3206, %v3108, -inf
      %v3628 = vrot.slane %v3627, 4
      %v3629 = vmax.f32 %v3627, %v3628
      %v3630 = vrot.slane %v3629, 2
      %v3631 = vmax.f32 %v3629, %v3630
      %v3632 = vrot.slane %v3631, 1
      %v3633 = vmax.f32 %v3631, %v3632
      %v3634 = vsel %vm3206, %v3172, -inf
      %v3635 = vrot.slane %v3634, 4
      %v3636 = vmax.f32 %v3634, %v3635
      %v3637 = vrot.slane %v3636, 2
      %v3638 = vmax.f32 %v3636, %v3637
      %v3639 = vrot.slane %v3638, 1
      %v3640 = vmax.f32 %v3638, %v3639
      %v3641 = vsel %vm3206, %v3109, -inf
      %v3642 = vrot.slane %v3641, 4
      %v3643 = vmax.f32 %v3641, %v3642
      %v3644 = vrot.slane %v3643, 2
      %v3645 = vmax.f32 %v3643, %v3644
      %v3646 = vrot.slane %v3645, 1
      %v3647 = vmax.f32 %v3645, %v3646
      %v3648 = vsel %vm3206, %v3173, -inf
      %v3649 = vrot.slane %v3648, 4
      %v3650 = vmax.f32 %v3648, %v3649
      %v3651 = vrot.slane %v3650, 2
      %v3652 = vmax.f32 %v3650, %v3651
      %v3653 = vrot.slane %v3652, 1
      %v3654 = vmax.f32 %v3652, %v3653
      %3687 = vrot.lane.b32.xlu0 %v3213, 96
      %v3688 = vpop.permute.xlu0 %3687
      %3689 = vrot.lane.b32.xlu0 %v3227, 96
      %v3690 = vpop.permute.xlu0 %3689
      %3691 = vrot.lane.b32.xlu0 %v3241, 96
      %v3692 = vpop.permute.xlu0 %3691
      %3693 = vrot.lane.b32.xlu0 %v3255, 96
      %v3694 = vpop.permute.xlu0 %3693
      %3695 = vrot.lane.b32.xlu0 %v3269, 96
      %v3696 = vpop.permute.xlu0 %3695
      %3697 = vrot.lane.b32.xlu0 %v3283, 96
      %v3698 = vpop.permute.xlu0 %3697
      %3699 = vrot.lane.b32.xlu0 %v3297, 96
      %v3700 = vpop.permute.xlu0 %3699
      %3701 = vrot.lane.b32.xlu0 %v3311, 96
      %v3702 = vpop.permute.xlu0 %3701
      %3703 = vrot.lane.b32.xlu0 %v3325, 96
      %v3704 = vpop.permute.xlu0 %3703
      %3705 = vrot.lane.b32.xlu0 %v3339, 96
      %v3706 = vpop.permute.xlu0 %3705
      %3707 = vrot.lane.b32.xlu0 %v3353, 96
      %v3708 = vpop.permute.xlu0 %3707
      %3709 = vrot.lane.b32.xlu0 %v3367, 96
      %v3710 = vpop.permute.xlu0 %3709
      %3711 = vrot.lane.b32.xlu0 %v3381, 96
      %v3712 = vpop.permute.xlu0 %3711
      %3713 = vrot.lane.b32.xlu0 %v3395, 96
      %v3714 = vpop.permute.xlu0 %3713
      %3715 = vrot.lane.b32.xlu0 %v3409, 96
      %v3716 = vpop.permute.xlu0 %3715
      %3717 = vrot.lane.b32.xlu0 %v3423, 96
      %v3718 = vpop.permute.xlu0 %3717
      %3719 = vrot.lane.b32.xlu0 %v3437, 96
      %v3720 = vpop.permute.xlu0 %3719
      %3721 = vrot.lane.b32.xlu0 %v3451, 96
      %v3722 = vpop.permute.xlu0 %3721
      %3723 = vrot.lane.b32.xlu0 %v3465, 96
      %v3724 = vpop.permute.xlu0 %3723
      %3725 = vrot.lane.b32.xlu0 %v3479, 96
      %v3726 = vpop.permute.xlu0 %3725
      %3727 = vrot.lane.b32.xlu0 %v3493, 96
      %v3728 = vpop.permute.xlu0 %3727
      %3729 = vrot.lane.b32.xlu0 %v3507, 96
      %v3730 = vpop.permute.xlu0 %3729
      %3731 = vrot.lane.b32.xlu0 %v3521, 96
      %v3732 = vpop.permute.xlu0 %3731
      %3733 = vrot.lane.b32.xlu0 %v3535, 96
      %v3734 = vpop.permute.xlu0 %3733
      %3735 = vrot.lane.b32.xlu0 %v3549, 96
      %v3736 = vpop.permute.xlu0 %3735
      %3737 = vrot.lane.b32.xlu0 %v3563, 96
      %v3738 = vpop.permute.xlu0 %3737
      %3739 = vrot.lane.b32.xlu0 %v3577, 96
      %v3740 = vpop.permute.xlu0 %3739
      %3741 = vrot.lane.b32.xlu0 %v3591, 96
      %v3742 = vpop.permute.xlu0 %3741
      %3743 = vrot.lane.b32.xlu0 %v3605, 96
      %v3744 = vpop.permute.xlu0 %3743
      %3745 = vrot.lane.b32.xlu0 %v3619, 96
      %v3746 = vpop.permute.xlu0 %3745
      %3747 = vrot.lane.b32.xlu0 %v3633, 96
      %v3748 = vpop.permute.xlu0 %3747
      %3749 = vrot.lane.b32.xlu0 %v3647, 96
      %v3750 = vpop.permute.xlu0 %3749
      %3783 = vrot.lane.b32.xlu0 %v2968, 96
      %v3784 = vpop.permute.xlu0 %3783
      %3785 = vrot.lane.b32.xlu0 %v2972, 96
      %v3786 = vpop.permute.xlu0 %3785
      %3787 = vrot.lane.b32.xlu0 %v2978, 96
      %v3788 = vpop.permute.xlu0 %3787
      %3789 = vrot.lane.b32.xlu0 %v2982, 96
      %v3790 = vpop.permute.xlu0 %3789
      %3791 = vrot.lane.b32.xlu0 %v2988, 96
      %v3792 = vpop.permute.xlu0 %3791
      %3793 = vrot.lane.b32.xlu0 %v2992, 96
      %v3794 = vpop.permute.xlu0 %3793
      %3795 = vrot.lane.b32.xlu0 %v2998, 96
      %v3796 = vpop.permute.xlu0 %3795
      %3797 = vrot.lane.b32.xlu0 %v3002, 96
      %v3798 = vpop.permute.xlu0 %3797
      %3799 = vrot.lane.b32.xlu0 %v3008, 96
      %v3800 = vpop.permute.xlu0 %3799
      %3801 = vrot.lane.b32.xlu0 %v3012, 96
      %v3802 = vpop.permute.xlu0 %3801
      %3803 = vrot.lane.b32.xlu0 %v3018, 96
      %v3804 = vpop.permute.xlu0 %3803
      %3805 = vrot.lane.b32.xlu0 %v3022, 96
      %v3806 = vpop.permute.xlu0 %3805
      %3807 = vrot.lane.b32.xlu0 %v3028, 96
      %v3808 = vpop.permute.xlu0 %3807
      %3809 = vrot.lane.b32.xlu0 %v3032, 96
      %v3810 = vpop.permute.xlu0 %3809
      %3811 = vrot.lane.b32.xlu0 %v3038, 96
      %v3812 = vpop.permute.xlu0 %3811
      %3813 = vrot.lane.b32.xlu0 %v3042, 96
      %v3814 = vpop.permute.xlu0 %3813
      %3831 = vrot.lane.b32.xlu0 %v2970, 96
      %v3832 = vpop.permute.xlu0 %3831
      %3833 = vrot.lane.b32.xlu0 %v2974, 96
      %v3834 = vpop.permute.xlu0 %3833
      %3835 = vrot.lane.b32.xlu0 %v2980, 96
      %v3836 = vpop.permute.xlu0 %3835
      %3837 = vrot.lane.b32.xlu0 %v2984, 96
      %v3838 = vpop.permute.xlu0 %3837
      %3839 = vrot.lane.b32.xlu0 %v2990, 96
      %v3840 = vpop.permute.xlu0 %3839
      %3841 = vrot.lane.b32.xlu0 %v2994, 96
      %v3842 = vpop.permute.xlu0 %3841
      %3843 = vrot.lane.b32.xlu0 %v3000, 96
      %v3844 = vpop.permute.xlu0 %3843
      %3845 = vrot.lane.b32.xlu0 %v3004, 96
      %v3846 = vpop.permute.xlu0 %3845
      %3847 = vrot.lane.b32.xlu0 %v3010, 96
      %v3848 = vpop.permute.xlu0 %3847
      %3849 = vrot.lane.b32.xlu0 %v3014, 96
      %v3850 = vpop.permute.xlu0 %3849
      %3851 = vrot.lane.b32.xlu0 %v3020, 96
      %v3852 = vpop.permute.xlu0 %3851
      %3853 = vrot.lane.b32.xlu0 %v3024, 96
      %v3854 = vpop.permute.xlu0 %3853
      %3855 = vrot.lane.b32.xlu0 %v3030, 96
      %v3856 = vpop.permute.xlu0 %3855
      %3857 = vrot.lane.b32.xlu0 %v3034, 96
      %v3858 = vpop.permute.xlu0 %3857
      %3859 = vrot.lane.b32.xlu0 %v3040, 96
      %v3860 = vpop.permute.xlu0 %3859
      %3861 = vrot.lane.b32.xlu0 %v3044, 96
      %v3862 = vpop.permute.xlu0 %3861
      %v3879 = vpack.c.bf16 %v3213, %v3213
      %v3880 = vpack.c.bf16 %v3227, %v3227
      %v3881 = vpack.c.bf16 %v3241, %v3241
      %v3882 = vpack.c.bf16 %v3255, %v3255
      %v3883 = vpack.c.bf16 %v3269, %v3269
      %v3884 = vpack.c.bf16 %v3283, %v3283
      %v3885 = vpack.c.bf16 %v3297, %v3297
      %v3886 = vpack.c.bf16 %v3311, %v3311
      %v3887 = vpack.c.bf16 %v3325, %v3325
      %v3888 = vpack.c.bf16 %v3339, %v3339
      %v3889 = vpack.c.bf16 %v3353, %v3353
      %v3890 = vpack.c.bf16 %v3367, %v3367
      %v3891 = vpack.c.bf16 %v3381, %v3381
      %v3892 = vpack.c.bf16 %v3395, %v3395
      %v3893 = vpack.c.bf16 %v3409, %v3409
      %v3894 = vpack.c.bf16 %v3423, %v3423
      %v3895 = vpack.c.bf16 %v3437, %v3437
      %v3896 = vpack.c.bf16 %v3451, %v3451
      %v3897 = vpack.c.bf16 %v3465, %v3465
      %v3898 = vpack.c.bf16 %v3479, %v3479
      %v3899 = vpack.c.bf16 %v3493, %v3493
      %v3900 = vpack.c.bf16 %v3507, %v3507
      %v3901 = vpack.c.bf16 %v3521, %v3521
      %v3902 = vpack.c.bf16 %v3535, %v3535
      %v3903 = vpack.c.bf16 %v3549, %v3549
      %v3904 = vpack.c.bf16 %v3563, %v3563
      %v3905 = vpack.c.bf16 %v3577, %v3577
      %v3906 = vpack.c.bf16 %v3591, %v3591
      %v3907 = vpack.c.bf16 %v3605, %v3605
      %v3908 = vpack.c.bf16 %v3619, %v3619
      %v3909 = vpack.c.bf16 %v3633, %v3633
      %v3910 = vpack.c.bf16 %v3647, %v3647
      %v3911 = vpack.c.bf16 %v3688, %v3688
      %v3912 = vpack.c.bf16 %v3690, %v3690
      %v3913 = vpack.c.bf16 %v3692, %v3692
      %v3914 = vpack.c.bf16 %v3694, %v3694
      %v3915 = vpack.c.bf16 %v3696, %v3696
      %v3916 = vpack.c.bf16 %v3698, %v3698
      %v3917 = vpack.c.bf16 %v3700, %v3700
      %v3918 = vpack.c.bf16 %v3702, %v3702
      %v3919 = vpack.c.bf16 %v3704, %v3704
      %v3920 = vpack.c.bf16 %v3706, %v3706
      %v3921 = vpack.c.bf16 %v3708, %v3708
      %v3922 = vpack.c.bf16 %v3710, %v3710
      %v3923 = vpack.c.bf16 %v3712, %v3712
      %v3924 = vpack.c.bf16 %v3714, %v3714
      %v3925 = vpack.c.bf16 %v3716, %v3716
      %v3926 = vpack.c.bf16 %v3718, %v3718
      %v3927 = vpack.c.bf16 %v3720, %v3720
      %v3928 = vpack.c.bf16 %v3722, %v3722
      %v3929 = vpack.c.bf16 %v3724, %v3724
      %v3930 = vpack.c.bf16 %v3726, %v3726
      %v3931 = vpack.c.bf16 %v3728, %v3728
      %v3932 = vpack.c.bf16 %v3730, %v3730
      %v3933 = vpack.c.bf16 %v3732, %v3732
      %v3934 = vpack.c.bf16 %v3734, %v3734
      %v3935 = vpack.c.bf16 %v3736, %v3736
      %v3936 = vpack.c.bf16 %v3738, %v3738
      %v3937 = vpack.c.bf16 %v3740, %v3740
      %v3938 = vpack.c.bf16 %v3742, %v3742
      %v3939 = vpack.c.bf16 %v3744, %v3744
      %v3940 = vpack.c.bf16 %v3746, %v3746
      %v3941 = vpack.c.bf16 %v3748, %v3748
      %v3942 = vpack.c.bf16 %v3750, %v3750
      %v3943 = vpack.c.bf16 %v2972, %v2968
      %v3944 = vpack.c.bf16 %v2982, %v2978
      %v3945 = vpack.c.bf16 %v2992, %v2988
      %v3946 = vpack.c.bf16 %v3002, %v2998
      %v3947 = vpack.c.bf16 %v3012, %v3008
      %v3948 = vpack.c.bf16 %v3022, %v3018
      %v3949 = vpack.c.bf16 %v3032, %v3028
      %v3950 = vpack.c.bf16 %v3042, %v3038
      %v3951 = vpack.c.bf16 %v3786, %v3784
      %v3952 = vpack.c.bf16 %v3790, %v3788
      %v3953 = vpack.c.bf16 %v3794, %v3792
      %v3954 = vpack.c.bf16 %v3798, %v3796
      %v3955 = vpack.c.bf16 %v3802, %v3800
      %v3956 = vpack.c.bf16 %v3806, %v3804
      %v3957 = vpack.c.bf16 %v3810, %v3808
      %v3958 = vpack.c.bf16 %v3814, %v3812
      %v3975 = vunpack.c.l.b16 %v3879
      %v3976 = vunpack.c.l.b16 %v3880
      %v3977 = vunpack.c.l.b16 %v3881
      %v3978 = vunpack.c.l.b16 %v3882
      %v3979 = vunpack.c.l.b16 %v3883
      %v3980 = vunpack.c.l.b16 %v3884
      %v3981 = vunpack.c.l.b16 %v3885
      %v3982 = vunpack.c.l.b16 %v3886
      %v3983 = vunpack.c.l.b16 %v3887
      %v3984 = vunpack.c.l.b16 %v3888
      %v3985 = vunpack.c.l.b16 %v3889
      %v3986 = vunpack.c.l.b16 %v3890
      %v3987 = vunpack.c.l.b16 %v3891
      %v3988 = vunpack.c.l.b16 %v3892
      %v3989 = vunpack.c.l.b16 %v3893
      %v3990 = vunpack.c.l.b16 %v3894
      %v3991 = vrot.slane %v3976, 7
      %vm3992 = vcmask 1041409
      %v3993 = vsel %vm3992, %v3991, %v3975
      %v3994 = vrot.slane %v3977, 6
      %vm3995 = vcmask 1042434
      %v3996 = vsel %vm3995, %v3994, %v3993
      %v3997 = vrot.slane %v3978, 5
      %vm3998 = vcmask 1043459
      %v3999 = vsel %vm3998, %v3997, %v3996
      %v4000 = vrot.slane %v3979, 4
      %vm4001 = vcmask 1044484
      %v4002 = vsel %vm4001, %v4000, %v3999
      %v4003 = vrot.slane %v3980, 3
      %vm4004 = vcmask 1045509
      %v4005 = vsel %vm4004, %v4003, %v4002
      %v4006 = vrot.slane %v3981, 2
      %vm4007 = vcmask 1046534
      %v4008 = vsel %vm4007, %v4006, %v4005
      %v4009 = vrot.slane %v3982, 1
      %vm4010 = vcmask 1047559
      %v4011 = vsel %vm4010, %v4009, %v4008
      %v4012 = vrot.slane %v3984, 7
      %v4013 = vsel %vm3992, %v4012, %v3983
      %v4014 = vrot.slane %v3985, 6
      %v4015 = vsel %vm3995, %v4014, %v4013
      %v4016 = vrot.slane %v3986, 5
      %v4017 = vsel %vm3998, %v4016, %v4015
      %v4018 = vrot.slane %v3987, 4
      %v4019 = vsel %vm4001, %v4018, %v4017
      %v4020 = vrot.slane %v3988, 3
      %v4021 = vsel %vm4004, %v4020, %v4019
      %v4022 = vrot.slane %v3989, 2
      %v4023 = vsel %vm4007, %v4022, %v4021
      %v4024 = vrot.slane %v3990, 1
      %v4025 = vsel %vm4010, %v4024, %v4023
      %v4026 = vpack.c.b16 %v4025, %v4011
      %4031 = vrot.lane.b32.xlu0 %v3943, 64
      %v4032 = vpop.permute.xlu0 %4031
      %4033 = vrot.lane.b32.xlu0 %v3944, 64
      %v4034 = vpop.permute.xlu0 %4033
      %4035 = vrot.lane.b32.xlu0 %v3945, 64
      %v4036 = vpop.permute.xlu0 %4035
      %4037 = vrot.lane.b32.xlu0 %v3946, 64
      %v4038 = vpop.permute.xlu0 %4037
      %v4040 = vsel %vm706, %v4026, 0
      %v4043 = vsel %vm706, %v4032, 0
      %v4046 = vsel %vm706, %v4034, 0
      %v4049 = vsel %vm706, %v4036, 0
      %v4052 = vsel %vm706, %v4038, 0
      %4054 = vmatprep.subr.bf16.mxu0 0
      %4055 = vmatpush1.bf16.xpose.msra.mxu0 %v4043
      %4056 = vmatprep.subr.bf16.mxu0 0
      %4057 = vmatpush1.bf16.xpose.msra.mxu0 %v4046
      %4058 = vmatprep.subr.bf16.mxu0 0
      %4059 = vmatpush1.bf16.xpose.msra.mxu0 %v4049
      %4060 = vmatprep.subr.bf16.mxu0 0
      %4061 = vmatpush1.bf16.xpose.msra.mxu0 %v4052
      %4062 = vmatprep.subr.bf16.mxu0 0
      %4063 = vmatpush1.bf16.xpose.msra.mxu0 0
      %4064 = vmatprep.subr.bf16.mxu0 0
      %4065 = vmatpush1.bf16.xpose.msra.mxu0 0
      %4066 = vmatprep.subr.bf16.mxu0 0
      %4067 = vmatpush1.bf16.xpose.msra.mxu0 0
      %4068 = vmatprep.subr.bf16.mxu0 0
      %4069 = vmatpush1.bf16.xpose.msra.mxu0 0
      %4070 = vmatprep.subr.bf16.mxu0 0
      %4071 = vmatpush1.bf16.xpose.msra.mxu0 0
      %4072 = vmatprep.subr.bf16.mxu0 0
      %4073 = vmatpush1.bf16.xpose.msra.mxu0 0
      %4074 = vmatprep.subr.bf16.mxu0 0
      %4075 = vmatpush1.bf16.xpose.msra.mxu0 0
      %4076 = vmatprep.subr.bf16.mxu0 0
      %4077 = vmatpush1.bf16.xpose.msra.mxu0 0
      %4078 = vmatprep.subr.bf16.mxu0 0
      %4079 = vmatpush1.bf16.xpose.msra.mxu0 0
      %4080 = vmatprep.subr.bf16.mxu0 0
      %4081 = vmatpush1.bf16.xpose.msra.mxu0 0
      %4082 = vmatprep.subr.bf16.mxu0 0
      %4083 = vmatpush1.bf16.xpose.msra.mxu0 0
      %4084 = vmatprep.subr.bf16.mxu0 0
      %4085 = vmatpush1.bf16.xpose.msra.mxu0 0
      %4086 = vmatprep.mubr.bf16.mxu0 0
      %4087 = vmatmul.mubr.bf16.gmra.mrb[0].mxu0 %v4040
      %v4088 = vpop.f32.mrb[0].mxu0
      %v4089 = vadd.f32 0.0, %v4088
      %v4090 = vpop.f32.mrb[0].mxu0
      %v4091 = vpop.f32.mrb[0].mxu0
      %v4092 = vadd.f32 0.0, %v4091
      %v4093 = vpop.f32.mrb[0].mxu0
      %4094 = vdwg.mxu0
      %v4111 = vunpack.c.l.b16 %v3895
      %v4112 = vunpack.c.l.b16 %v3896
      %v4113 = vunpack.c.l.b16 %v3897
      %v4114 = vunpack.c.l.b16 %v3898
      %v4115 = vunpack.c.l.b16 %v3899
      %v4116 = vunpack.c.l.b16 %v3900
      %v4117 = vunpack.c.l.b16 %v3901
      %v4118 = vunpack.c.l.b16 %v3902
      %v4119 = vunpack.c.l.b16 %v3903
      %v4120 = vunpack.c.l.b16 %v3904
      %v4121 = vunpack.c.l.b16 %v3905
      %v4122 = vunpack.c.l.b16 %v3906
      %v4123 = vunpack.c.l.b16 %v3907
      %v4124 = vunpack.c.l.b16 %v3908
      %v4125 = vunpack.c.l.b16 %v3909
      %v4126 = vunpack.c.l.b16 %v3910
      %v4127 = vrot.slane %v4112, 7
      %v4128 = vsel %vm3992, %v4127, %v4111
      %v4129 = vrot.slane %v4113, 6
      %v4130 = vsel %vm3995, %v4129, %v4128
      %v4131 = vrot.slane %v4114, 5
      %v4132 = vsel %vm3998, %v4131, %v4130
      %v4133 = vrot.slane %v4115, 4
      %v4134 = vsel %vm4001, %v4133, %v4132
      %v4135 = vrot.slane %v4116, 3
      %v4136 = vsel %vm4004, %v4135, %v4134
      %v4137 = vrot.slane %v4117, 2
      %v4138 = vsel %vm4007, %v4137, %v4136
      %v4139 = vrot.slane %v4118, 1
      %v4140 = vsel %vm4010, %v4139, %v4138
      %v4141 = vrot.slane %v4120, 7
      %v4142 = vsel %vm3992, %v4141, %v4119
      %v4143 = vrot.slane %v4121, 6
      %v4144 = vsel %vm3995, %v4143, %v4142
      %v4145 = vrot.slane %v4122, 5
      %v4146 = vsel %vm3998, %v4145, %v4144
      %v4147 = vrot.slane %v4123, 4
      %v4148 = vsel %vm4001, %v4147, %v4146
      %v4149 = vrot.slane %v4124, 3
      %v4150 = vsel %vm4004, %v4149, %v4148
      %v4151 = vrot.slane %v4125, 2
      %v4152 = vsel %vm4007, %v4151, %v4150
      %v4153 = vrot.slane %v4126, 1
      %v4154 = vsel %vm4010, %v4153, %v4152
      %v4155 = vpack.c.b16 %v4154, %v4140
      %4160 = vrot.lane.b32.xlu0 %v3947, 64
      %v4161 = vpop.permute.xlu0 %4160
      %4162 = vrot.lane.b32.xlu0 %v3948, 64
      %v4163 = vpop.permute.xlu0 %4162
      %4164 = vrot.lane.b32.xlu0 %v3949, 64
      %v4165 = vpop.permute.xlu0 %4164
      %4166 = vrot.lane.b32.xlu0 %v3950, 64
      %v4167 = vpop.permute.xlu0 %4166
      %v4169 = vsel %vm706, %v4155, 0
      %v4172 = vsel %vm706, %v4161, 0
      %v4175 = vsel %vm706, %v4163, 0
      %v4178 = vsel %vm706, %v4165, 0
      %v4181 = vsel %vm706, %v4167, 0
      %4183 = vmatprep.subr.bf16.mxu0 0
      %4184 = vmatpush1.bf16.xpose.msra.mxu0 %v4172
      %4185 = vmatprep.subr.bf16.mxu0 0
      %4186 = vmatpush1.bf16.xpose.msra.mxu0 %v4175
      %4187 = vmatprep.subr.bf16.mxu0 0
      %4188 = vmatpush1.bf16.xpose.msra.mxu0 %v4178
      %4189 = vmatprep.subr.bf16.mxu0 0
      %4190 = vmatpush1.bf16.xpose.msra.mxu0 %v4181
      %4191 = vmatprep.subr.bf16.mxu0 0
      %4192 = vmatpush1.bf16.xpose.msra.mxu0 0
      %4193 = vmatprep.subr.bf16.mxu0 0
      %4194 = vmatpush1.bf16.xpose.msra.mxu0 0
      %4195 = vmatprep.subr.bf16.mxu0 0
      %4196 = vmatpush1.bf16.xpose.msra.mxu0 0
      %4197 = vmatprep.subr.bf16.mxu0 0
      %4198 = vmatpush1.bf16.xpose.msra.mxu0 0
      %4199 = vmatprep.subr.bf16.mxu0 0
      %4200 = vmatpush1.bf16.xpose.msra.mxu0 0
      %4201 = vmatprep.subr.bf16.mxu0 0
      %4202 = vmatpush1.bf16.xpose.msra.mxu0 0
      %4203 = vmatprep.subr.bf16.mxu0 0
      %4204 = vmatpush1.bf16.xpose.msra.mxu0 0
      %4205 = vmatprep.subr.bf16.mxu0 0
      %4206 = vmatpush1.bf16.xpose.msra.mxu0 0
      %4207 = vmatprep.subr.bf16.mxu0 0
      %4208 = vmatpush1.bf16.xpose.msra.mxu0 0
      %4209 = vmatprep.subr.bf16.mxu0 0
      %4210 = vmatpush1.bf16.xpose.msra.mxu0 0
      %4211 = vmatprep.subr.bf16.mxu0 0
      %4212 = vmatpush1.bf16.xpose.msra.mxu0 0
      %4213 = vmatprep.subr.bf16.mxu0 0
      %4214 = vmatpush1.bf16.xpose.msra.mxu0 0
      %4215 = vmatprep.mubr.bf16.mxu0 0
      %4216 = vmatmul.mubr.bf16.gmra.mrb[0].mxu0 %v4169
      %v4217 = vpop.f32.mrb[0].mxu0
      %v4218 = vadd.f32 0.0, %v4217
      %v4219 = vpop.f32.mrb[0].mxu0
      %v4220 = vpop.f32.mrb[0].mxu0
      %v4221 = vadd.f32 0.0, %v4220
      %v4222 = vpop.f32.mrb[0].mxu0
      %4223 = vdwg.mxu0
      %v4240 = vunpack.c.l.b16 %v3911
      %v4241 = vunpack.c.l.b16 %v3912
      %v4242 = vunpack.c.l.b16 %v3913
      %v4243 = vunpack.c.l.b16 %v3914
      %v4244 = vunpack.c.l.b16 %v3915
      %v4245 = vunpack.c.l.b16 %v3916
      %v4246 = vunpack.c.l.b16 %v3917
      %v4247 = vunpack.c.l.b16 %v3918
      %v4248 = vunpack.c.l.b16 %v3919
      %v4249 = vunpack.c.l.b16 %v3920
      %v4250 = vunpack.c.l.b16 %v3921
      %v4251 = vunpack.c.l.b16 %v3922
      %v4252 = vunpack.c.l.b16 %v3923
      %v4253 = vunpack.c.l.b16 %v3924
      %v4254 = vunpack.c.l.b16 %v3925
      %v4255 = vunpack.c.l.b16 %v3926
      %v4256 = vrot.slane %v4241, 7
      %v4257 = vsel %vm3992, %v4256, %v4240
      %v4258 = vrot.slane %v4242, 6
      %v4259 = vsel %vm3995, %v4258, %v4257
      %v4260 = vrot.slane %v4243, 5
      %v4261 = vsel %vm3998, %v4260, %v4259
      %v4262 = vrot.slane %v4244, 4
      %v4263 = vsel %vm4001, %v4262, %v4261
      %v4264 = vrot.slane %v4245, 3
      %v4265 = vsel %vm4004, %v4264, %v4263
      %v4266 = vrot.slane %v4246, 2
      %v4267 = vsel %vm4007, %v4266, %v4265
      %v4268 = vrot.slane %v4247, 1
      %v4269 = vsel %vm4010, %v4268, %v4267
      %v4270 = vrot.slane %v4249, 7
      %v4271 = vsel %vm3992, %v4270, %v4248
      %v4272 = vrot.slane %v4250, 6
      %v4273 = vsel %vm3995, %v4272, %v4271
      %v4274 = vrot.slane %v4251, 5
      %v4275 = vsel %vm3998, %v4274, %v4273
      %v4276 = vrot.slane %v4252, 4
      %v4277 = vsel %vm4001, %v4276, %v4275
      %v4278 = vrot.slane %v4253, 3
      %v4279 = vsel %vm4004, %v4278, %v4277
      %v4280 = vrot.slane %v4254, 2
      %v4281 = vsel %vm4007, %v4280, %v4279
      %v4282 = vrot.slane %v4255, 1
      %v4283 = vsel %vm4010, %v4282, %v4281
      %v4284 = vpack.c.b16 %v4283, %v4269
      %4289 = vrot.lane.b32.xlu0 %v3951, 64
      %v4290 = vpop.permute.xlu0 %4289
      %4291 = vrot.lane.b32.xlu0 %v3952, 64
      %v4292 = vpop.permute.xlu0 %4291
      %4293 = vrot.lane.b32.xlu0 %v3953, 64
      %v4294 = vpop.permute.xlu0 %4293
      %4295 = vrot.lane.b32.xlu0 %v3954, 64
      %v4296 = vpop.permute.xlu0 %4295
      %v4298 = vsel %vm706, %v4284, 0
      %v4301 = vsel %vm706, %v4290, 0
      %v4304 = vsel %vm706, %v4292, 0
      %v4307 = vsel %vm706, %v4294, 0
      %v4310 = vsel %vm706, %v4296, 0
      %4312 = vmatprep.subr.bf16.mxu0 0
      %4313 = vmatpush1.bf16.xpose.msra.mxu0 %v4301
      %4314 = vmatprep.subr.bf16.mxu0 0
      %4315 = vmatpush1.bf16.xpose.msra.mxu0 %v4304
      %4316 = vmatprep.subr.bf16.mxu0 0
      %4317 = vmatpush1.bf16.xpose.msra.mxu0 %v4307
      %4318 = vmatprep.subr.bf16.mxu0 0
      %4319 = vmatpush1.bf16.xpose.msra.mxu0 %v4310
      %4320 = vmatprep.subr.bf16.mxu0 0
      %4321 = vmatpush1.bf16.xpose.msra.mxu0 0
      %4322 = vmatprep.subr.bf16.mxu0 0
      %4323 = vmatpush1.bf16.xpose.msra.mxu0 0
      %4324 = vmatprep.subr.bf16.mxu0 0
      %4325 = vmatpush1.bf16.xpose.msra.mxu0 0
      %4326 = vmatprep.subr.bf16.mxu0 0
      %4327 = vmatpush1.bf16.xpose.msra.mxu0 0
      %4328 = vmatprep.subr.bf16.mxu0 0
      %4329 = vmatpush1.bf16.xpose.msra.mxu0 0
      %4330 = vmatprep.subr.bf16.mxu0 0
      %4331 = vmatpush1.bf16.xpose.msra.mxu0 0
      %4332 = vmatprep.subr.bf16.mxu0 0
      %4333 = vmatpush1.bf16.xpose.msra.mxu0 0
      %4334 = vmatprep.subr.bf16.mxu0 0
      %4335 = vmatpush1.bf16.xpose.msra.mxu0 0
      %4336 = vmatprep.subr.bf16.mxu0 0
      %4337 = vmatpush1.bf16.xpose.msra.mxu0 0
      %4338 = vmatprep.subr.bf16.mxu0 0
      %4339 = vmatpush1.bf16.xpose.msra.mxu0 0
      %4340 = vmatprep.subr.bf16.mxu0 0
      %4341 = vmatpush1.bf16.xpose.msra.mxu0 0
      %4342 = vmatprep.subr.bf16.mxu0 0
      %4343 = vmatpush1.bf16.xpose.msra.mxu0 0
      %4344 = vmatprep.mubr.bf16.mxu0 0
      %4345 = vmatmul.mubr.bf16.gmra.mrb[0].mxu0 %v4298
      %v4346 = vpop.f32.mrb[0].mxu0
      %v4347 = vadd.f32 0.0, %v4346
      %v4348 = vpop.f32.mrb[0].mxu0
      %v4349 = vpop.f32.mrb[0].mxu0
      %v4350 = vadd.f32 0.0, %v4349
      %v4351 = vpop.f32.mrb[0].mxu0
      %4352 = vdwg.mxu0
      %v4369 = vunpack.c.l.b16 %v3927
      %v4370 = vunpack.c.l.b16 %v3928
      %v4371 = vunpack.c.l.b16 %v3929
      %v4372 = vunpack.c.l.b16 %v3930
      %v4373 = vunpack.c.l.b16 %v3931
      %v4374 = vunpack.c.l.b16 %v3932
      %v4375 = vunpack.c.l.b16 %v3933
      %v4376 = vunpack.c.l.b16 %v3934
      %v4377 = vunpack.c.l.b16 %v3935
      %v4378 = vunpack.c.l.b16 %v3936
      %v4379 = vunpack.c.l.b16 %v3937
      %v4380 = vunpack.c.l.b16 %v3938
      %v4381 = vunpack.c.l.b16 %v3939
      %v4382 = vunpack.c.l.b16 %v3940
      %v4383 = vunpack.c.l.b16 %v3941
      %v4384 = vunpack.c.l.b16 %v3942
      %v4385 = vrot.slane %v4370, 7
      %v4386 = vsel %vm3992, %v4385, %v4369
      %v4387 = vrot.slane %v4371, 6
      %v4388 = vsel %vm3995, %v4387, %v4386
      %v4389 = vrot.slane %v4372, 5
      %v4390 = vsel %vm3998, %v4389, %v4388
      %v4391 = vrot.slane %v4373, 4
      %v4392 = vsel %vm4001, %v4391, %v4390
      %v4393 = vrot.slane %v4374, 3
      %v4394 = vsel %vm4004, %v4393, %v4392
      %v4395 = vrot.slane %v4375, 2
      %v4396 = vsel %vm4007, %v4395, %v4394
      %v4397 = vrot.slane %v4376, 1
      %v4398 = vsel %vm4010, %v4397, %v4396
      %v4399 = vrot.slane %v4378, 7
      %v4400 = vsel %vm3992, %v4399, %v4377
      %v4401 = vrot.slane %v4379, 6
      %v4402 = vsel %vm3995, %v4401, %v4400
      %v4403 = vrot.slane %v4380, 5
      %v4404 = vsel %vm3998, %v4403, %v4402
      %v4405 = vrot.slane %v4381, 4
      %v4406 = vsel %vm4001, %v4405, %v4404
      %v4407 = vrot.slane %v4382, 3
      %v4408 = vsel %vm4004, %v4407, %v4406
      %v4409 = vrot.slane %v4383, 2
      %v4410 = vsel %vm4007, %v4409, %v4408
      %v4411 = vrot.slane %v4384, 1
      %v4412 = vsel %vm4010, %v4411, %v4410
      %v4413 = vpack.c.b16 %v4412, %v4398
      %4418 = vrot.lane.b32.xlu0 %v3955, 64
      %v4419 = vpop.permute.xlu0 %4418
      %4420 = vrot.lane.b32.xlu0 %v3956, 64
      %v4421 = vpop.permute.xlu0 %4420
      %4422 = vrot.lane.b32.xlu0 %v3957, 64
      %v4423 = vpop.permute.xlu0 %4422
      %4424 = vrot.lane.b32.xlu0 %v3958, 64
      %v4425 = vpop.permute.xlu0 %4424
      %v4427 = vsel %vm706, %v4413, 0
      %v4430 = vsel %vm706, %v4419, 0
      %v4433 = vsel %vm706, %v4421, 0
      %v4436 = vsel %vm706, %v4423, 0
      %v4439 = vsel %vm706, %v4425, 0
      %4441 = vmatprep.subr.bf16.mxu0 0
      %4442 = vmatpush1.bf16.xpose.msra.mxu0 %v4430
      %4443 = vmatprep.subr.bf16.mxu0 0
      %4444 = vmatpush1.bf16.xpose.msra.mxu0 %v4433
      %4445 = vmatprep.subr.bf16.mxu0 0
      %4446 = vmatpush1.bf16.xpose.msra.mxu0 %v4436
      %4447 = vmatprep.subr.bf16.mxu0 0
      %4448 = vmatpush1.bf16.xpose.msra.mxu0 %v4439
      %4449 = vmatprep.subr.bf16.mxu0 0
      %4450 = vmatpush1.bf16.xpose.msra.mxu0 0
      %4451 = vmatprep.subr.bf16.mxu0 0
      %4452 = vmatpush1.bf16.xpose.msra.mxu0 0
      %4453 = vmatprep.subr.bf16.mxu0 0
      %4454 = vmatpush1.bf16.xpose.msra.mxu0 0
      %4455 = vmatprep.subr.bf16.mxu0 0
      %4456 = vmatpush1.bf16.xpose.msra.mxu0 0
      %4457 = vmatprep.subr.bf16.mxu0 0
      %4458 = vmatpush1.bf16.xpose.msra.mxu0 0
      %4459 = vmatprep.subr.bf16.mxu0 0
      %4460 = vmatpush1.bf16.xpose.msra.mxu0 0
      %4461 = vmatprep.subr.bf16.mxu0 0
      %4462 = vmatpush1.bf16.xpose.msra.mxu0 0
      %4463 = vmatprep.subr.bf16.mxu0 0
      %4464 = vmatpush1.bf16.xpose.msra.mxu0 0
      %4465 = vmatprep.subr.bf16.mxu0 0
      %4466 = vmatpush1.bf16.xpose.msra.mxu0 0
      %4467 = vmatprep.subr.bf16.mxu0 0
      %4468 = vmatpush1.bf16.xpose.msra.mxu0 0
      %4469 = vmatprep.subr.bf16.mxu0 0
      %4470 = vmatpush1.bf16.xpose.msra.mxu0 0
      %4471 = vmatprep.subr.bf16.mxu0 0
      %4472 = vmatpush1.bf16.xpose.msra.mxu0 0
      %4473 = vmatprep.mubr.bf16.mxu0 0
      %4474 = vmatmul.mubr.bf16.gmra.mrb[0].mxu0 %v4427
      %v4475 = vpop.f32.mrb[0].mxu0
      %v4476 = vadd.f32 0.0, %v4475
      %v4477 = vpop.f32.mrb[0].mxu0
      %v4478 = vpop.f32.mrb[0].mxu0
      %v4479 = vadd.f32 0.0, %v4478
      %v4480 = vpop.f32.mrb[0].mxu0
      %4481 = vdwg.mxu0
      %v4482 = vmul.f32 %v4089, 0.17677669
      %v4483 = vmul.f32 %v4092, 0.17677669
      %v4484 = vmul.f32 %v4218, 0.17677669
      %v4485 = vmul.f32 %v4221, 0.17677669
      %v4486 = vmul.f32 %v4347, 0.17677669
      %v4487 = vmul.f32 %v4350, 0.17677669
      %v4488 = vmul.f32 %v4476, 0.17677669
      %v4489 = vmul.f32 %v4479, 0.17677669
      %v4490 = vsel %vm1331, %v4482, -inf
      %4491 = vmax.xlane.f32.xlu0 %v4490
      %v4492 = vpop.xlane.xlu0 %4491
      %v4493 = vsel %vm1331, %v4483, -inf
      %4494 = vmax.xlane.f32.xlu0 %v4493
      %v4495 = vpop.xlane.xlu0 %4494
      %v4496 = vsel %vm1331, %v4484, -inf
      %4497 = vmax.xlane.f32.xlu0 %v4496
      %v4498 = vpop.xlane.xlu0 %4497
      %v4499 = vsel %vm1331, %v4485, -inf
      %4500 = vmax.xlane.f32.xlu0 %v4499
      %v4501 = vpop.xlane.xlu0 %4500
      %v4502 = vsel %vm1331, %v4486, -inf
      %4503 = vmax.xlane.f32.xlu0 %v4502
      %v4504 = vpop.xlane.xlu0 %4503
      %v4505 = vsel %vm1331, %v4487, -inf
      %4506 = vmax.xlane.f32.xlu0 %v4505
      %v4507 = vpop.xlane.xlu0 %4506
      %v4508 = vsel %vm1331, %v4488, -inf
      %4509 = vmax.xlane.f32.xlu0 %v4508
      %v4510 = vpop.xlane.xlu0 %4509
      %v4511 = vsel %vm1331, %v4489, -inf
      %4512 = vmax.xlane.f32.xlu0 %v4511
      %v4513 = vpop.xlane.xlu0 %4512
      %v4514 = vsub.f32 %v4482, %v4492
      %v4515 = vsub.f32 %v4483, %v4495
      %v4516 = vsub.f32 %v4484, %v4498
      %v4517 = vsub.f32 %v4485, %v4501
      %v4518 = vsub.f32 %v4486, %v4504
      %v4519 = vsub.f32 %v4487, %v4507
      %v4520 = vsub.f32 %v4488, %v4510
      %v4521 = vsub.f32 %v4489, %v4513
      %v4522 = vmul.f32 %v4514, 1.442695
      %v4523 = vpow.pop %v4522
      %v4524 = vmul.f32 %v4515, 1.442695
      %v4525 = vpow.pop %v4524
      %v4526 = vmul.f32 %v4516, 1.442695
      %v4527 = vpow.pop %v4526
      %v4528 = vmul.f32 %v4517, 1.442695
      %v4529 = vpow.pop %v4528
      %v4530 = vmul.f32 %v4518, 1.442695
      %v4531 = vpow.pop %v4530
      %v4532 = vmul.f32 %v4519, 1.442695
      %v4533 = vpow.pop %v4532
      %v4534 = vmul.f32 %v4520, 1.442695
      %v4535 = vpow.pop %v4534
      %v4536 = vmul.f32 %v4521, 1.442695
      %v4537 = vpow.pop %v4536
      %v4538 = vsel %vm1331, %v4523, 0.0
      %4539 = vadd.xlane.f32.xlu0 %v4538
      %v4540 = vpop.xlane.xlu0 %4539
      %v4541 = vsel %vm1331, %v4525, 0.0
      %4542 = vadd.xlane.f32.xlu0 %v4541
      %v4543 = vpop.xlane.xlu0 %4542
      %v4544 = vsel %vm1331, %v4527, 0.0
      %4545 = vadd.xlane.f32.xlu0 %v4544
      %v4546 = vpop.xlane.xlu0 %4545
      %v4547 = vsel %vm1331, %v4529, 0.0
      %4548 = vadd.xlane.f32.xlu0 %v4547
      %v4549 = vpop.xlane.xlu0 %4548
      %v4550 = vsel %vm1331, %v4531, 0.0
      %4551 = vadd.xlane.f32.xlu0 %v4550
      %v4552 = vpop.xlane.xlu0 %4551
      %v4553 = vsel %vm1331, %v4533, 0.0
      %4554 = vadd.xlane.f32.xlu0 %v4553
      %v4555 = vpop.xlane.xlu0 %4554
      %v4556 = vsel %vm1331, %v4535, 0.0
      %4557 = vadd.xlane.f32.xlu0 %v4556
      %v4558 = vpop.xlane.xlu0 %4557
      %v4559 = vsel %vm1331, %v4537, 0.0
      %4560 = vadd.xlane.f32.xlu0 %v4559
      %v4561 = vpop.xlane.xlu0 %4560
      %v4562 = vrcp.pop %v4540
      %v4563 = vrcp.pop %v4543
      %v4564 = vrcp.pop %v4546
      %v4565 = vrcp.pop %v4549
      %v4566 = vrcp.pop %v4552
      %v4567 = vrcp.pop %v4555
      %v4568 = vrcp.pop %v4558
      %v4569 = vrcp.pop %v4561
      %v4570 = vmul.f32 %v4523, %v4562
      %v4571 = vmul.f32 %v4525, %v4563
      %v4572 = vmul.f32 %v4527, %v4564
      %v4573 = vmul.f32 %v4529, %v4565
      %v4574 = vmul.f32 %v4531, %v4566
      %v4575 = vmul.f32 %v4533, %v4567
      %v4576 = vmul.f32 %v4535, %v4568
      %v4577 = vmul.f32 %v4537, %v4569
      %v4578 = vpack.c.bf16 %v4571, %v4570
      %v4579 = vpack.c.bf16 %v4573, %v4572
      %v4580 = vpack.c.bf16 %v4575, %v4574
      %v4581 = vpack.c.bf16 %v4577, %v4576
      %v4582 = vpack.c.bf16 %v2974, %v2970
      %v4583 = vpack.c.bf16 %v2984, %v2980
      %v4584 = vpack.c.bf16 %v2994, %v2990
      %v4585 = vpack.c.bf16 %v3004, %v3000
      %v4586 = vpack.c.bf16 %v3014, %v3010
      %v4587 = vpack.c.bf16 %v3024, %v3020
      %v4588 = vpack.c.bf16 %v3034, %v3030
      %v4589 = vpack.c.bf16 %v3044, %v3040
      %v4590 = vpack.c.bf16 %v3834, %v3832
      %v4591 = vpack.c.bf16 %v3838, %v3836
      %v4592 = vpack.c.bf16 %v3842, %v3840
      %v4593 = vpack.c.bf16 %v3846, %v3844
      %v4594 = vpack.c.bf16 %v3850, %v3848
      %v4595 = vpack.c.bf16 %v3854, %v3852
      %v4596 = vpack.c.bf16 %v3858, %v3856
      %v4597 = vpack.c.bf16 %v3862, %v3860
      %v4599 = vsel %vm1331, %v4578, 0
      %4601 = vmatprep.subr.bf16.mxu0 0
      %4602 = vmatpush1.bf16.msra.mxu0 %v4582
      %4603 = vmatprep.subr.bf16.mxu0 0
      %4604 = vmatpush1.bf16.msra.mxu0 %v4583
      %4605 = vmatprep.subr.bf16.mxu0 0
      %4606 = vmatpush1.bf16.msra.mxu0 %v4584
      %4607 = vmatprep.subr.bf16.mxu0 0
      %4608 = vmatpush1.bf16.msra.mxu0 %v4585
      %4609 = vmatprep.subr.bf16.mxu0 0
      %4610 = vmatpush1.bf16.msra.mxu0 0
      %4611 = vmatprep.subr.bf16.mxu0 0
      %4612 = vmatpush1.bf16.msra.mxu0 0
      %4613 = vmatprep.subr.bf16.mxu0 0
      %4614 = vmatpush1.bf16.msra.mxu0 0
      %4615 = vmatprep.subr.bf16.mxu0 0
      %4616 = vmatpush1.bf16.msra.mxu0 0
      %4617 = vmatprep.subr.bf16.mxu0 0
      %4618 = vmatpush1.bf16.msra.mxu0 0
      %4619 = vmatprep.subr.bf16.mxu0 0
      %4620 = vmatpush1.bf16.msra.mxu0 0
      %4621 = vmatprep.subr.bf16.mxu0 0
      %4622 = vmatpush1.bf16.msra.mxu0 0
      %4623 = vmatprep.subr.bf16.mxu0 0
      %4624 = vmatpush1.bf16.msra.mxu0 0
      %4625 = vmatprep.subr.bf16.mxu0 0
      %4626 = vmatpush1.bf16.msra.mxu0 0
      %4627 = vmatprep.subr.bf16.mxu0 0
      %4628 = vmatpush1.bf16.msra.mxu0 0
      %4629 = vmatprep.subr.bf16.mxu0 0
      %4630 = vmatpush1.bf16.msra.mxu0 0
      %4631 = vmatprep.subr.bf16.mxu0 0
      %4632 = vmatpush1.bf16.msra.mxu0 0
      %4633 = vmatprep.mubr.bf16.mxu0 0
      %4634 = vmatmul.mubr.bf16.gmra.mrb[0].mxu0 %v4599
      %v4635 = vpop.f32.mrb[0].mxu0
      %v4636 = vadd.f32 0.0, %v4635
      %v4637 = vpop.f32.mrb[0].mxu0
      %v4638 = vpop.f32.mrb[0].mxu0
      %v4639 = vadd.f32 0.0, %v4638
      %v4640 = vpop.f32.mrb[0].mxu0
      %4641 = vdwg.mxu0
      %v4643 = vsel %vm1331, %v4579, 0
      %4645 = vmatprep.subr.bf16.mxu0 0
      %4646 = vmatpush1.bf16.msra.mxu0 %v4586
      %4647 = vmatprep.subr.bf16.mxu0 0
      %4648 = vmatpush1.bf16.msra.mxu0 %v4587
      %4649 = vmatprep.subr.bf16.mxu0 0
      %4650 = vmatpush1.bf16.msra.mxu0 %v4588
      %4651 = vmatprep.subr.bf16.mxu0 0
      %4652 = vmatpush1.bf16.msra.mxu0 %v4589
      %4653 = vmatprep.subr.bf16.mxu0 0
      %4654 = vmatpush1.bf16.msra.mxu0 0
      %4655 = vmatprep.subr.bf16.mxu0 0
      %4656 = vmatpush1.bf16.msra.mxu0 0
      %4657 = vmatprep.subr.bf16.mxu0 0
      %4658 = vmatpush1.bf16.msra.mxu0 0
      %4659 = vmatprep.subr.bf16.mxu0 0
      %4660 = vmatpush1.bf16.msra.mxu0 0
      %4661 = vmatprep.subr.bf16.mxu0 0
      %4662 = vmatpush1.bf16.msra.mxu0 0
      %4663 = vmatprep.subr.bf16.mxu0 0
      %4664 = vmatpush1.bf16.msra.mxu0 0
      %4665 = vmatprep.subr.bf16.mxu0 0
      %4666 = vmatpush1.bf16.msra.mxu0 0
      %4667 = vmatprep.subr.bf16.mxu0 0
      %4668 = vmatpush1.bf16.msra.mxu0 0
      %4669 = vmatprep.subr.bf16.mxu0 0
      %4670 = vmatpush1.bf16.msra.mxu0 0
      %4671 = vmatprep.subr.bf16.mxu0 0
      %4672 = vmatpush1.bf16.msra.mxu0 0
      %4673 = vmatprep.subr.bf16.mxu0 0
      %4674 = vmatpush1.bf16.msra.mxu0 0
      %4675 = vmatprep.subr.bf16.mxu0 0
      %4676 = vmatpush1.bf16.msra.mxu0 0
      %4677 = vmatprep.mubr.bf16.mxu0 0
      %4678 = vmatmul.mubr.bf16.gmra.mrb[0].mxu0 %v4643
      %v4679 = vpop.f32.mrb[0].mxu0
      %v4680 = vadd.f32 0.0, %v4679
      %v4681 = vpop.f32.mrb[0].mxu0
      %v4682 = vpop.f32.mrb[0].mxu0
      %v4683 = vadd.f32 0.0, %v4682
      %v4684 = vpop.f32.mrb[0].mxu0
      %4685 = vdwg.mxu0
      %v4687 = vsel %vm1331, %v4580, 0
      %4689 = vmatprep.subr.bf16.mxu0 0
      %4690 = vmatpush1.bf16.msra.mxu0 %v4590
      %4691 = vmatprep.subr.bf16.mxu0 0
      %4692 = vmatpush1.bf16.msra.mxu0 %v4591
      %4693 = vmatprep.subr.bf16.mxu0 0
      %4694 = vmatpush1.bf16.msra.mxu0 %v4592
      %4695 = vmatprep.subr.bf16.mxu0 0
      %4696 = vmatpush1.bf16.msra.mxu0 %v4593
      %4697 = vmatprep.subr.bf16.mxu0 0
      %4698 = vmatpush1.bf16.msra.mxu0 0
      %4699 = vmatprep.subr.bf16.mxu0 0
      %4700 = vmatpush1.bf16.msra.mxu0 0
      %4701 = vmatprep.subr.bf16.mxu0 0
      %4702 = vmatpush1.bf16.msra.mxu0 0
      %4703 = vmatprep.subr.bf16.mxu0 0
      %4704 = vmatpush1.bf16.msra.mxu0 0
      %4705 = vmatprep.subr.bf16.mxu0 0
      %4706 = vmatpush1.bf16.msra.mxu0 0
      %4707 = vmatprep.subr.bf16.mxu0 0
      %4708 = vmatpush1.bf16.msra.mxu0 0
      %4709 = vmatprep.subr.bf16.mxu0 0
      %4710 = vmatpush1.bf16.msra.mxu0 0
      %4711 = vmatprep.subr.bf16.mxu0 0
      %4712 = vmatpush1.bf16.msra.mxu0 0
      %4713 = vmatprep.subr.bf16.mxu0 0
      %4714 = vmatpush1.bf16.msra.mxu0 0
      %4715 = vmatprep.subr.bf16.mxu0 0
      %4716 = vmatpush1.bf16.msra.mxu0 0
      %4717 = vmatprep.subr.bf16.mxu0 0
      %4718 = vmatpush1.bf16.msra.mxu0 0
      %4719 = vmatprep.subr.bf16.mxu0 0
      %4720 = vmatpush1.bf16.msra.mxu0 0
      %4721 = vmatprep.mubr.bf16.mxu0 0
      %4722 = vmatmul.mubr.bf16.gmra.mrb[0].mxu0 %v4687
      %v4723 = vpop.f32.mrb[0].mxu0
      %v4724 = vadd.f32 0.0, %v4723
      %v4725 = vpop.f32.mrb[0].mxu0
      %v4726 = vpop.f32.mrb[0].mxu0
      %v4727 = vadd.f32 0.0, %v4726
      %v4728 = vpop.f32.mrb[0].mxu0
      %4729 = vdwg.mxu0
      %v4731 = vsel %vm1331, %v4581, 0
      %4733 = vmatprep.subr.bf16.mxu0 0
      %4734 = vmatpush1.bf16.msra.mxu0 %v4594
      %4735 = vmatprep.subr.bf16.mxu0 0
      %4736 = vmatpush1.bf16.msra.mxu0 %v4595
      %4737 = vmatprep.subr.bf16.mxu0 0
      %4738 = vmatpush1.bf16.msra.mxu0 %v4596
      %4739 = vmatprep.subr.bf16.mxu0 0
      %4740 = vmatpush1.bf16.msra.mxu0 %v4597
      %4741 = vmatprep.subr.bf16.mxu0 0
      %4742 = vmatpush1.bf16.msra.mxu0 0
      %4743 = vmatprep.subr.bf16.mxu0 0
      %4744 = vmatpush1.bf16.msra.mxu0 0
      %4745 = vmatprep.subr.bf16.mxu0 0
      %4746 = vmatpush1.bf16.msra.mxu0 0
      %4747 = vmatprep.subr.bf16.mxu0 0
      %4748 = vmatpush1.bf16.msra.mxu0 0
      %4749 = vmatprep.subr.bf16.mxu0 0
      %4750 = vmatpush1.bf16.msra.mxu0 0
      %4751 = vmatprep.subr.bf16.mxu0 0
      %4752 = vmatpush1.bf16.msra.mxu0 0
      %4753 = vmatprep.subr.bf16.mxu0 0
      %4754 = vmatpush1.bf16.msra.mxu0 0
      %4755 = vmatprep.subr.bf16.mxu0 0
      %4756 = vmatpush1.bf16.msra.mxu0 0
      %4757 = vmatprep.subr.bf16.mxu0 0
      %4758 = vmatpush1.bf16.msra.mxu0 0
      %4759 = vmatprep.subr.bf16.mxu0 0
      %4760 = vmatpush1.bf16.msra.mxu0 0
      %4761 = vmatprep.subr.bf16.mxu0 0
      %4762 = vmatpush1.bf16.msra.mxu0 0
      %4763 = vmatprep.subr.bf16.mxu0 0
      %4764 = vmatpush1.bf16.msra.mxu0 0
      %4765 = vmatprep.mubr.bf16.mxu0 0
      %4766 = vmatmul.mubr.bf16.gmra.mrb[0].mxu0 %v4731
      %v4767 = vpop.f32.mrb[0].mxu0
      %v4768 = vadd.f32 0.0, %v4767
      %v4769 = vpop.f32.mrb[0].mxu0
      %v4770 = vpop.f32.mrb[0].mxu0
      %v4771 = vadd.f32 0.0, %v4770
      %v4772 = vpop.f32.mrb[0].mxu0
      %4773 = vdwg.mxu0
      %v4774 = vpack.c.bf16 %v4639, %v4636
      %v4775 = vpack.c.bf16 %v4683, %v4680
      %v4776 = vld [vmem:[%s9] sm:$0xf]
      %v4777 = vld [vmem:[%s9 + $0x4] sm:$0xf]
      %v4778 = vld [vmem:[%s9 + $0x8] sm:$0xf]
      %v4779 = vld [vmem:[%s9 + $0xc] sm:$0xf]
      %v4784 = vunpack.c.l.b16 %v4776
      %v4785 = vunpack.c.l.b16 %v4777
      %v4786 = vunpack.c.l.b16 %v4778
      %v4787 = vunpack.c.l.b16 %v4779
      %v4788 = vpack.c.b16 %v4785, %v4784
      %v4789 = vpack.c.b16 %v4787, %v4786
      %v4793 = vsel %vm706, %v4774, 0
      %v4796 = vsel %vm706, %v4775, 0
      %4798 = vmatprep.subr.bf16.mxu0 0
      %4799 = vmatpush1.bf16.msra.mxu0 %v4788
      %4800 = vmatprep.subr.bf16.mxu0 0
      %4801 = vmatpush1.bf16.msra.mxu0 %v4789
      %4802 = vmatprep.subr.bf16.mxu0 0
      %4803 = vmatpush1.bf16.msra.mxu0 0
      %4804 = vmatprep.subr.bf16.mxu0 0
      %4805 = vmatpush1.bf16.msra.mxu0 0
      %4806 = vmatprep.subr.bf16.mxu0 0
      %4807 = vmatpush1.bf16.msra.mxu0 0
      %4808 = vmatprep.subr.bf16.mxu0 0
      %4809 = vmatpush1.bf16.msra.mxu0 0
      %4810 = vmatprep.subr.bf16.mxu0 0
      %4811 = vmatpush1.bf16.msra.mxu0 0
      %4812 = vmatprep.subr.bf16.mxu0 0
      %4813 = vmatpush1.bf16.msra.mxu0 0
      %4814 = vmatprep.subr.bf16.mxu0 0
      %4815 = vmatpush1.bf16.msra.mxu0 0
      %4816 = vmatprep.subr.bf16.mxu0 0
      %4817 = vmatpush1.bf16.msra.mxu0 0
      %4818 = vmatprep.subr.bf16.mxu0 0
      %4819 = vmatpush1.bf16.msra.mxu0 0
      %4820 = vmatprep.subr.bf16.mxu0 0
      %4821 = vmatpush1.bf16.msra.mxu0 0
      %4822 = vmatprep.subr.bf16.mxu0 0
      %4823 = vmatpush1.bf16.msra.mxu0 0
      %4824 = vmatprep.subr.bf16.mxu0 0
      %4825 = vmatpush1.bf16.msra.mxu0 0
      %4826 = vmatprep.subr.bf16.mxu0 0
      %4827 = vmatpush1.bf16.msra.mxu0 0
      %4828 = vmatprep.subr.bf16.mxu0 0
      %4829 = vmatpush1.bf16.msra.mxu0 0
      %4830 = vmatprep.mubr.bf16.mxu0 0
      %4831 = vmatmul.mubr.bf16.gmra.mrb[0].mxu0 %v4793
      %v4832 = vpop.f32.mrb[0].mxu0
      %v4833 = vadd.f32 0.0, %v4832
      %v4834 = vpop.f32.mrb[0].mxu0
      %v4835 = vpop.f32.mrb[0].mxu0
      %v4836 = vadd.f32 0.0, %v4835
      %v4837 = vpop.f32.mrb[0].mxu0
      %4838 = vmatprep.mubr.bf16.mxu0 0
      %4839 = vmatmul.mubr.bf16.gmra.mrb[0].mxu0 %v4796
      %v4840 = vpop.f32.mrb[0].mxu0
      %v4841 = vadd.f32 0.0, %v4840
      %v4842 = vpop.f32.mrb[0].mxu0
      %v4843 = vpop.f32.mrb[0].mxu0
      %v4844 = vadd.f32 0.0, %v4843
      %v4845 = vpop.f32.mrb[0].mxu0
      %4846 = vdwg.mxu0
      %v4847 = vlaneseq
      %v4848 = vshrl.u32 %v4847, 7
      %v4849 = vsub.s32 4, %v4848
      %v4850 = vrot.slane %v446, %v4849
      %v4851 = vadd.f32 %v4850, %v4833
      %v4852 = vadd.f32 %v4850, %v4836
      %v4853 = vadd.f32 %v4850, %v4841
      %v4854 = vadd.f32 %v4850, %v4844
      %v4855 = vpack.c.bf16 %v4727, %v4724
      %v4856 = vpack.c.bf16 %v4771, %v4768
      %s4857 = scalar_lea.vmem %s9, 16
      %v4858 = vld [vmem:[%s4857] sm:$0xf]
      %v4859 = vld [vmem:[%s4857 + $0x4] sm:$0xf]
      %v4860 = vld [vmem:[%s4857 + $0x8] sm:$0xf]
      %v4861 = vld [vmem:[%s4857 + $0xc] sm:$0xf]
      %v4866 = vunpack.c.l.b16 %v4858
      %v4867 = vunpack.c.l.b16 %v4859
      %v4868 = vunpack.c.l.b16 %v4860
      %v4869 = vunpack.c.l.b16 %v4861
      %v4870 = vpack.c.b16 %v4867, %v4866
      %v4871 = vpack.c.b16 %v4869, %v4868
      %v4875 = vsel %vm706, %v4855, 0
      %v4878 = vsel %vm706, %v4856, 0
      %4880 = vmatprep.subr.bf16.mxu0 0
      %4881 = vmatpush1.bf16.msra.mxu0 %v4870
      %4882 = vmatprep.subr.bf16.mxu0 0
      %4883 = vmatpush1.bf16.msra.mxu0 %v4871
      %4884 = vmatprep.subr.bf16.mxu0 0
      %4885 = vmatpush1.bf16.msra.mxu0 0
      %4886 = vmatprep.subr.bf16.mxu0 0
      %4887 = vmatpush1.bf16.msra.mxu0 0
      %4888 = vmatprep.subr.bf16.mxu0 0
      %4889 = vmatpush1.bf16.msra.mxu0 0
      %4890 = vmatprep.subr.bf16.mxu0 0
      %4891 = vmatpush1.bf16.msra.mxu0 0
      %4892 = vmatprep.subr.bf16.mxu0 0
      %4893 = vmatpush1.bf16.msra.mxu0 0
      %4894 = vmatprep.subr.bf16.mxu0 0
      %4895 = vmatpush1.bf16.msra.mxu0 0
      %4896 = vmatprep.subr.bf16.mxu0 0
      %4897 = vmatpush1.bf16.msra.mxu0 0
      %4898 = vmatprep.subr.bf16.mxu0 0
      %4899 = vmatpush1.bf16.msra.mxu0 0
      %4900 = vmatprep.subr.bf16.mxu0 0
      %4901 = vmatpush1.bf16.msra.mxu0 0
      %4902 = vmatprep.subr.bf16.mxu0 0
      %4903 = vmatpush1.bf16.msra.mxu0 0
      %4904 = vmatprep.subr.bf16.mxu0 0
      %4905 = vmatpush1.bf16.msra.mxu0 0
      %4906 = vmatprep.subr.bf16.mxu0 0
      %4907 = vmatpush1.bf16.msra.mxu0 0
      %4908 = vmatprep.subr.bf16.mxu0 0
      %4909 = vmatpush1.bf16.msra.mxu0 0
      %4910 = vmatprep.subr.bf16.mxu0 0
      %4911 = vmatpush1.bf16.msra.mxu0 0
      %4912 = vmatprep.mubr.bf16.mxu0 0
      %4913 = vmatmul.mubr.bf16.gmra.mrb[0].mxu0 %v4875
      %v4914 = vpop.f32.mrb[0].mxu0
      %v4915 = vadd.f32 0.0, %v4914
      %v4916 = vpop.f32.mrb[0].mxu0
      %v4917 = vpop.f32.mrb[0].mxu0
      %v4918 = vadd.f32 0.0, %v4917
      %v4919 = vpop.f32.mrb[0].mxu0
      %4920 = vmatprep.mubr.bf16.mxu0 0
      %4921 = vmatmul.mubr.bf16.gmra.mrb[0].mxu0 %v4878
      %v4922 = vpop.f32.mrb[0].mxu0
      %v4923 = vadd.f32 0.0, %v4922
      %v4924 = vpop.f32.mrb[0].mxu0
      %v4925 = vpop.f32.mrb[0].mxu0
      %v4926 = vadd.f32 0.0, %v4925
      %v4927 = vpop.f32.mrb[0].mxu0
      %4928 = vdwg.mxu0
      %v4929 = vadd.f32 %v4851, %v4915
      %v4930 = vadd.f32 %v4852, %v4918
      %v4931 = vadd.f32 %v4853, %v4923
      %v4932 = vadd.f32 %v4854, %v4926
      %v4937 = vrot.slane %v4929, 1
      %v4938 = vrot.slane %v4929, 2
      %v4939 = vrot.slane %v4929, 3
      %v4940 = vrot.slane %v4929, 4
      %v4941 = vrot.slane %v4929, 5
      %v4942 = vrot.slane %v4929, 6
      %v4943 = vrot.slane %v4929, 7
      %v4944 = vrot.slane %v4930, 1
      %v4945 = vrot.slane %v4930, 2
      %v4946 = vrot.slane %v4930, 3
      %v4947 = vrot.slane %v4930, 4
      %v4948 = vrot.slane %v4930, 5
      %v4949 = vrot.slane %v4930, 6
      %v4950 = vrot.slane %v4930, 7
      %v4951 = vrot.slane %v4931, 1
      %v4952 = vrot.slane %v4931, 2
      %v4953 = vrot.slane %v4931, 3
      %v4954 = vrot.slane %v4931, 4
      %v4955 = vrot.slane %v4931, 5
      %v4956 = vrot.slane %v4931, 6
      %v4957 = vrot.slane %v4931, 7
      %v4958 = vrot.slane %v4932, 1
      %v4959 = vrot.slane %v4932, 2
      %v4960 = vrot.slane %v4932, 3
      %v4961 = vrot.slane %v4932, 4
      %v4962 = vrot.slane %v4932, 5
      %v4963 = vrot.slane %v4932, 6
      %v4964 = vrot.slane %v4932, 7
      %4965 = vrot.lane.b32.xlu0 %v4929, 64
      %v4966 = vpop.permute.xlu0 %4965
      %4967 = vrot.lane.b32.xlu0 %v4937, 64
      %v4968 = vpop.permute.xlu0 %4967
      %4969 = vrot.lane.b32.xlu0 %v4938, 64
      %v4970 = vpop.permute.xlu0 %4969
      %4971 = vrot.lane.b32.xlu0 %v4939, 64
      %v4972 = vpop.permute.xlu0 %4971
      %4973 = vrot.lane.b32.xlu0 %v4940, 64
      %v4974 = vpop.permute.xlu0 %4973
      %4975 = vrot.lane.b32.xlu0 %v4941, 64
      %v4976 = vpop.permute.xlu0 %4975
      %4977 = vrot.lane.b32.xlu0 %v4942, 64
      %v4978 = vpop.permute.xlu0 %4977
      %4979 = vrot.lane.b32.xlu0 %v4943, 64
      %v4980 = vpop.permute.xlu0 %4979
      %4981 = vrot.lane.b32.xlu0 %v4930, 64
      %v4982 = vpop.permute.xlu0 %4981
      %4983 = vrot.lane.b32.xlu0 %v4944, 64
      %v4984 = vpop.permute.xlu0 %4983
      %4985 = vrot.lane.b32.xlu0 %v4945, 64
      %v4986 = vpop.permute.xlu0 %4985
      %4987 = vrot.lane.b32.xlu0 %v4946, 64
      %v4988 = vpop.permute.xlu0 %4987
      %4989 = vrot.lane.b32.xlu0 %v4947, 64
      %v4990 = vpop.permute.xlu0 %4989
      %4991 = vrot.lane.b32.xlu0 %v4948, 64
      %v4992 = vpop.permute.xlu0 %4991
      %4993 = vrot.lane.b32.xlu0 %v4949, 64
      %v4994 = vpop.permute.xlu0 %4993
      %4995 = vrot.lane.b32.xlu0 %v4950, 64
      %v4996 = vpop.permute.xlu0 %4995
      %4997 = vrot.lane.b32.xlu0 %v4931, 64
      %v4998 = vpop.permute.xlu0 %4997
      %4999 = vrot.lane.b32.xlu0 %v4951, 64
      %v5000 = vpop.permute.xlu0 %4999
      %5001 = vrot.lane.b32.xlu0 %v4952, 64
      %v5002 = vpop.permute.xlu0 %5001
      %5003 = vrot.lane.b32.xlu0 %v4953, 64
      %v5004 = vpop.permute.xlu0 %5003
      %5005 = vrot.lane.b32.xlu0 %v4954, 64
      %v5006 = vpop.permute.xlu0 %5005
      %5007 = vrot.lane.b32.xlu0 %v4955, 64
      %v5008 = vpop.permute.xlu0 %5007
      %5009 = vrot.lane.b32.xlu0 %v4956, 64
      %v5010 = vpop.permute.xlu0 %5009
      %5011 = vrot.lane.b32.xlu0 %v4957, 64
      %v5012 = vpop.permute.xlu0 %5011
      %5013 = vrot.lane.b32.xlu0 %v4932, 64
      %v5014 = vpop.permute.xlu0 %5013
      %5015 = vrot.lane.b32.xlu0 %v4958, 64
      %v5016 = vpop.permute.xlu0 %5015
      %5017 = vrot.lane.b32.xlu0 %v4959, 64
      %v5018 = vpop.permute.xlu0 %5017
      %5019 = vrot.lane.b32.xlu0 %v4960, 64
      %v5020 = vpop.permute.xlu0 %5019
      %5021 = vrot.lane.b32.xlu0 %v4961, 64
      %v5022 = vpop.permute.xlu0 %5021
      %5023 = vrot.lane.b32.xlu0 %v4962, 64
      %v5024 = vpop.permute.xlu0 %5023
      %5025 = vrot.lane.b32.xlu0 %v4963, 64
      %v5026 = vpop.permute.xlu0 %5025
      %5027 = vrot.lane.b32.xlu0 %v4964, 64
      %v5028 = vpop.permute.xlu0 %5027
      %v5061 = vadd.f32 %v3220, %v4966
      %v5062 = vadd.f32 %v3234, %v4968
      %v5063 = vadd.f32 %v3248, %v4970
      %v5064 = vadd.f32 %v3262, %v4972
      %v5065 = vadd.f32 %v3276, %v4974
      %v5066 = vadd.f32 %v3290, %v4976
      %v5067 = vadd.f32 %v3304, %v4978
      %v5068 = vadd.f32 %v3318, %v4980
      %v5069 = vadd.f32 %v3332, %v4982
      %v5070 = vadd.f32 %v3346, %v4984
      %v5071 = vadd.f32 %v3360, %v4986
      %v5072 = vadd.f32 %v3374, %v4988
      %v5073 = vadd.f32 %v3388, %v4990
      %v5074 = vadd.f32 %v3402, %v4992
      %v5075 = vadd.f32 %v3416, %v4994
      %v5076 = vadd.f32 %v3430, %v4996
      %v5077 = vadd.f32 %v3444, %v4998
      %v5078 = vadd.f32 %v3458, %v5000
      %v5079 = vadd.f32 %v3472, %v5002
      %v5080 = vadd.f32 %v3486, %v5004
      %v5081 = vadd.f32 %v3500, %v5006
      %v5082 = vadd.f32 %v3514, %v5008
      %v5083 = vadd.f32 %v3528, %v5010
      %v5084 = vadd.f32 %v3542, %v5012
      %v5085 = vadd.f32 %v3556, %v5014
      %v5086 = vadd.f32 %v3570, %v5016
      %v5087 = vadd.f32 %v3584, %v5018
      %v5088 = vadd.f32 %v3598, %v5020
      %v5089 = vadd.f32 %v3612, %v5022
      %v5090 = vadd.f32 %v3626, %v5024
      %v5091 = vadd.f32 %v3640, %v5026
      %v5092 = vadd.f32 %v3654, %v5028
      %v5125 = vrot.slane %v5062, 7
      %v5126 = vsel %vm3992, %v5125, %v5061
      %v5127 = vrot.slane %v5063, 6
      %v5128 = vsel %vm3995, %v5127, %v5126
      %v5129 = vrot.slane %v5064, 5
      %v5130 = vsel %vm3998, %v5129, %v5128
      %v5131 = vrot.slane %v5065, 4
      %v5132 = vsel %vm4001, %v5131, %v5130
      %v5133 = vrot.slane %v5066, 3
      %v5134 = vsel %vm4004, %v5133, %v5132
      %v5135 = vrot.slane %v5067, 2
      %v5136 = vsel %vm4007, %v5135, %v5134
      %v5137 = vrot.slane %v5068, 1
      %v5138 = vsel %vm4010, %v5137, %v5136
      %v5139 = vrot.slane %v5070, 7
      %v5140 = vsel %vm3992, %v5139, %v5069
      %v5141 = vrot.slane %v5071, 6
      %v5142 = vsel %vm3995, %v5141, %v5140
      %v5143 = vrot.slane %v5072, 5
      %v5144 = vsel %vm3998, %v5143, %v5142
      %v5145 = vrot.slane %v5073, 4
      %v5146 = vsel %vm4001, %v5145, %v5144
      %v5147 = vrot.slane %v5074, 3
      %v5148 = vsel %vm4004, %v5147, %v5146
      %v5149 = vrot.slane %v5075, 2
      %v5150 = vsel %vm4007, %v5149, %v5148
      %v5151 = vrot.slane %v5076, 1
      %v5152 = vsel %vm4010, %v5151, %v5150
      %v5153 = vrot.slane %v5078, 7
      %v5154 = vsel %vm3992, %v5153, %v5077
      %v5155 = vrot.slane %v5079, 6
      %v5156 = vsel %vm3995, %v5155, %v5154
      %v5157 = vrot.slane %v5080, 5
      %v5158 = vsel %vm3998, %v5157, %v5156
      %v5159 = vrot.slane %v5081, 4
      %v5160 = vsel %vm4001, %v5159, %v5158
      %v5161 = vrot.slane %v5082, 3
      %v5162 = vsel %vm4004, %v5161, %v5160
      %v5163 = vrot.slane %v5083, 2
      %v5164 = vsel %vm4007, %v5163, %v5162
      %v5165 = vrot.slane %v5084, 1
      %v5166 = vsel %vm4010, %v5165, %v5164
      %v5167 = vrot.slane %v5086, 7
      %v5168 = vsel %vm3992, %v5167, %v5085
      %v5169 = vrot.slane %v5087, 6
      %v5170 = vsel %vm3995, %v5169, %v5168
      %v5171 = vrot.slane %v5088, 5
      %v5172 = vsel %vm3998, %v5171, %v5170
      %v5173 = vrot.slane %v5089, 4
      %v5174 = vsel %vm4001, %v5173, %v5172
      %v5175 = vrot.slane %v5090, 3
      %v5176 = vsel %vm4004, %v5175, %v5174
      %v5177 = vrot.slane %v5091, 2
      %v5178 = vsel %vm4007, %v5177, %v5176
      %v5179 = vrot.slane %v5092, 1
      %v5180 = vsel %vm4010, %v5179, %v5178
      %5181 = vrot.lane.b32.xlu0 %v5138, 64
      %v5182 = vpop.permute.xlu0 %5181
      %5183 = vrot.lane.b32.xlu0 %v5152, 64
      %v5184 = vpop.permute.xlu0 %5183
      %5185 = vrot.lane.b32.xlu0 %v5166, 64
      %v5186 = vpop.permute.xlu0 %5185
      %5187 = vrot.lane.b32.xlu0 %v5180, 64
      %v5188 = vpop.permute.xlu0 %5187
      %v5193 = vsel %vm1331, %v5182, 0.0
      %5194 = vadd.xlane.f32.xlu0 %v5193
      %v5195 = vpop.xlane.xlu0 %5194
      %v5196 = vsel %vm1331, %v5184, 0.0
      %5197 = vadd.xlane.f32.xlu0 %v5196
      %v5198 = vpop.xlane.xlu0 %5197
      %v5199 = vsel %vm1331, %v5186, 0.0
      %5200 = vadd.xlane.f32.xlu0 %v5199
      %v5201 = vpop.xlane.xlu0 %5200
      %v5202 = vsel %vm1331, %v5188, 0.0
      %5203 = vadd.xlane.f32.xlu0 %v5202
      %v5204 = vpop.xlane.xlu0 %5203
      %v5205 = vrcp.pop 64.0
      %v5206 = vmul.f32 %v5195, %v5205
      %v5207 = vmul.f32 %v5198, %v5205
      %v5208 = vmul.f32 %v5201, %v5205
      %v5209 = vmul.f32 %v5204, %v5205
      %v5214 = vrot.slane %v5206, 1
      %v5215 = vrot.slane %v5206, 2
      %v5216 = vrot.slane %v5206, 3
      %v5217 = vrot.slane %v5206, 4
      %v5218 = vrot.slane %v5206, 5
      %v5219 = vrot.slane %v5206, 6
      %v5220 = vrot.slane %v5206, 7
      %v5221 = vrot.slane %v5207, 1
      %v5222 = vrot.slane %v5207, 2
      %v5223 = vrot.slane %v5207, 3
      %v5224 = vrot.slane %v5207, 4
      %v5225 = vrot.slane %v5207, 5
      %v5226 = vrot.slane %v5207, 6
      %v5227 = vrot.slane %v5207, 7
      %v5228 = vrot.slane %v5208, 1
      %v5229 = vrot.slane %v5208, 2
      %v5230 = vrot.slane %v5208, 3
      %v5231 = vrot.slane %v5208, 4
      %v5232 = vrot.slane %v5208, 5
      %v5233 = vrot.slane %v5208, 6
      %v5234 = vrot.slane %v5208, 7
      %v5235 = vrot.slane %v5209, 1
      %v5236 = vrot.slane %v5209, 2
      %v5237 = vrot.slane %v5209, 3
      %v5238 = vrot.slane %v5209, 4
      %v5239 = vrot.slane %v5209, 5
      %v5240 = vrot.slane %v5209, 6
      %v5241 = vrot.slane %v5209, 7
      %v5274 = vsub.f32 %v5061, %v5206
      %v5275 = vsub.f32 %v5062, %v5214
      %v5276 = vsub.f32 %v5063, %v5215
      %v5277 = vsub.f32 %v5064, %v5216
      %v5278 = vsub.f32 %v5065, %v5217
      %v5279 = vsub.f32 %v5066, %v5218
      %v5280 = vsub.f32 %v5067, %v5219
      %v5281 = vsub.f32 %v5068, %v5220
      %v5282 = vsub.f32 %v5069, %v5207
      %v5283 = vsub.f32 %v5070, %v5221
      %v5284 = vsub.f32 %v5071, %v5222
      %v5285 = vsub.f32 %v5072, %v5223
      %v5286 = vsub.f32 %v5073, %v5224
      %v5287 = vsub.f32 %v5074, %v5225
      %v5288 = vsub.f32 %v5075, %v5226
      %v5289 = vsub.f32 %v5076, %v5227
      %v5290 = vsub.f32 %v5077, %v5208
      %v5291 = vsub.f32 %v5078, %v5228
      %v5292 = vsub.f32 %v5079, %v5229
      %v5293 = vsub.f32 %v5080, %v5230
      %v5294 = vsub.f32 %v5081, %v5231
      %v5295 = vsub.f32 %v5082, %v5232
      %v5296 = vsub.f32 %v5083, %v5233
      %v5297 = vsub.f32 %v5084, %v5234
      %v5298 = vsub.f32 %v5085, %v5209
      %v5299 = vsub.f32 %v5086, %v5235
      %v5300 = vsub.f32 %v5087, %v5236
      %v5301 = vsub.f32 %v5088, %v5237
      %v5302 = vsub.f32 %v5089, %v5238
      %v5303 = vsub.f32 %v5090, %v5239
      %v5304 = vsub.f32 %v5091, %v5240
      %v5305 = vsub.f32 %v5092, %v5241
      %v5306 = vmul.f32 %v5274, %v5274
      %v5307 = vmul.f32 %v5275, %v5275
      %v5308 = vmul.f32 %v5276, %v5276
      %v5309 = vmul.f32 %v5277, %v5277
      %v5310 = vmul.f32 %v5278, %v5278
      %v5311 = vmul.f32 %v5279, %v5279
      %v5312 = vmul.f32 %v5280, %v5280
      %v5313 = vmul.f32 %v5281, %v5281
      %v5314 = vmul.f32 %v5282, %v5282
      %v5315 = vmul.f32 %v5283, %v5283
      %v5316 = vmul.f32 %v5284, %v5284
      %v5317 = vmul.f32 %v5285, %v5285
      %v5318 = vmul.f32 %v5286, %v5286
      %v5319 = vmul.f32 %v5287, %v5287
      %v5320 = vmul.f32 %v5288, %v5288
      %v5321 = vmul.f32 %v5289, %v5289
      %v5322 = vmul.f32 %v5290, %v5290
      %v5323 = vmul.f32 %v5291, %v5291
      %v5324 = vmul.f32 %v5292, %v5292
      %v5325 = vmul.f32 %v5293, %v5293
      %v5326 = vmul.f32 %v5294, %v5294
      %v5327 = vmul.f32 %v5295, %v5295
      %v5328 = vmul.f32 %v5296, %v5296
      %v5329 = vmul.f32 %v5297, %v5297
      %v5330 = vmul.f32 %v5298, %v5298
      %v5331 = vmul.f32 %v5299, %v5299
      %v5332 = vmul.f32 %v5300, %v5300
      %v5333 = vmul.f32 %v5301, %v5301
      %v5334 = vmul.f32 %v5302, %v5302
      %v5335 = vmul.f32 %v5303, %v5303
      %v5336 = vmul.f32 %v5304, %v5304
      %v5337 = vmul.f32 %v5305, %v5305
      %v5370 = vrot.slane %v5307, 7
      %v5371 = vsel %vm3992, %v5370, %v5306
      %v5372 = vrot.slane %v5308, 6
      %v5373 = vsel %vm3995, %v5372, %v5371
      %v5374 = vrot.slane %v5309, 5
      %v5375 = vsel %vm3998, %v5374, %v5373
      %v5376 = vrot.slane %v5310, 4
      %v5377 = vsel %vm4001, %v5376, %v5375
      %v5378 = vrot.slane %v5311, 3
      %v5379 = vsel %vm4004, %v5378, %v5377
      %v5380 = vrot.slane %v5312, 2
      %v5381 = vsel %vm4007, %v5380, %v5379
      %v5382 = vrot.slane %v5313, 1
      %v5383 = vsel %vm4010, %v5382, %v5381
      %v5384 = vrot.slane %v5315, 7
      %v5385 = vsel %vm3992, %v5384, %v5314
      %v5386 = vrot.slane %v5316, 6
      %v5387 = vsel %vm3995, %v5386, %v5385
      %v5388 = vrot.slane %v5317, 5
      %v5389 = vsel %vm3998, %v5388, %v5387
      %v5390 = vrot.slane %v5318, 4
      %v5391 = vsel %vm4001, %v5390, %v5389
      %v5392 = vrot.slane %v5319, 3
      %v5393 = vsel %vm4004, %v5392, %v5391
      %v5394 = vrot.slane %v5320, 2
      %v5395 = vsel %vm4007, %v5394, %v5393
      %v5396 = vrot.slane %v5321, 1
      %v5397 = vsel %vm4010, %v5396, %v5395
      %v5398 = vrot.slane %v5323, 7
      %v5399 = vsel %vm3992, %v5398, %v5322
      %v5400 = vrot.slane %v5324, 6
      %v5401 = vsel %vm3995, %v5400, %v5399
      %v5402 = vrot.slane %v5325, 5
      %v5403 = vsel %vm3998, %v5402, %v5401
      %v5404 = vrot.slane %v5326, 4
      %v5405 = vsel %vm4001, %v5404, %v5403
      %v5406 = vrot.slane %v5327, 3
      %v5407 = vsel %vm4004, %v5406, %v5405
      %v5408 = vrot.slane %v5328, 2
      %v5409 = vsel %vm4007, %v5408, %v5407
      %v5410 = vrot.slane %v5329, 1
      %v5411 = vsel %vm4010, %v5410, %v5409
      %v5412 = vrot.slane %v5331, 7
      %v5413 = vsel %vm3992, %v5412, %v5330
      %v5414 = vrot.slane %v5332, 6
      %v5415 = vsel %vm3995, %v5414, %v5413
      %v5416 = vrot.slane %v5333, 5
      %v5417 = vsel %vm3998, %v5416, %v5415
      %v5418 = vrot.slane %v5334, 4
      %v5419 = vsel %vm4001, %v5418, %v5417
      %v5420 = vrot.slane %v5335, 3
      %v5421 = vsel %vm4004, %v5420, %v5419
      %v5422 = vrot.slane %v5336, 2
      %v5423 = vsel %vm4007, %v5422, %v5421
      %v5424 = vrot.slane %v5337, 1
      %v5425 = vsel %vm4010, %v5424, %v5423
      %5426 = vrot.lane.b32.xlu0 %v5383, 64
      %v5427 = vpop.permute.xlu0 %5426
      %5428 = vrot.lane.b32.xlu0 %v5397, 64
      %v5429 = vpop.permute.xlu0 %5428
      %5430 = vrot.lane.b32.xlu0 %v5411, 64
      %v5431 = vpop.permute.xlu0 %5430
      %5432 = vrot.lane.b32.xlu0 %v5425, 64
      %v5433 = vpop.permute.xlu0 %5432
      %v5438 = vsel %vm1331, %v5427, 0.0
      %5439 = vadd.xlane.f32.xlu0 %v5438
      %v5440 = vpop.xlane.xlu0 %5439
      %v5441 = vsel %vm1331, %v5429, 0.0
      %5442 = vadd.xlane.f32.xlu0 %v5441
      %v5443 = vpop.xlane.xlu0 %5442
      %v5444 = vsel %vm1331, %v5431, 0.0
      %5445 = vadd.xlane.f32.xlu0 %v5444
      %v5446 = vpop.xlane.xlu0 %5445
      %v5447 = vsel %vm1331, %v5433, 0.0
      %5448 = vadd.xlane.f32.xlu0 %v5447
      %v5449 = vpop.xlane.xlu0 %5448
      %v5450 = vmul.f32 %v5440, %v5205
      %v5451 = vmul.f32 %v5443, %v5205
      %v5452 = vmul.f32 %v5446, %v5205
      %v5453 = vmul.f32 %v5449, %v5205
      %v5454 = vadd.f32 %v5450, 1e-06
      %v5455 = vadd.f32 %v5451, 1e-06
      %v5456 = vadd.f32 %v5452, 1e-06
      %v5457 = vadd.f32 %v5453, 1e-06
      %v5458 = vrsqrt.pop %v5454
      %v5459 = vrsqrt.pop %v5455
      %v5460 = vrsqrt.pop %v5456
      %v5461 = vrsqrt.pop %v5457
      %v5466 = vrot.slane %v5458, 1
      %v5467 = vrot.slane %v5458, 2
      %v5468 = vrot.slane %v5458, 3
      %v5469 = vrot.slane %v5458, 4
      %v5470 = vrot.slane %v5458, 5
      %v5471 = vrot.slane %v5458, 6
      %v5472 = vrot.slane %v5458, 7
      %v5473 = vrot.slane %v5459, 1
      %v5474 = vrot.slane %v5459, 2
      %v5475 = vrot.slane %v5459, 3
      %v5476 = vrot.slane %v5459, 4
      %v5477 = vrot.slane %v5459, 5
      %v5478 = vrot.slane %v5459, 6
      %v5479 = vrot.slane %v5459, 7
      %v5480 = vrot.slane %v5460, 1
      %v5481 = vrot.slane %v5460, 2
      %v5482 = vrot.slane %v5460, 3
      %v5483 = vrot.slane %v5460, 4
      %v5484 = vrot.slane %v5460, 5
      %v5485 = vrot.slane %v5460, 6
      %v5486 = vrot.slane %v5460, 7
      %v5487 = vrot.slane %v5461, 1
      %v5488 = vrot.slane %v5461, 2
      %v5489 = vrot.slane %v5461, 3
      %v5490 = vrot.slane %v5461, 4
      %v5491 = vrot.slane %v5461, 5
      %v5492 = vrot.slane %v5461, 6
      %v5493 = vrot.slane %v5461, 7
      %v5526 = vmul.f32 %v5274, %v5458
      %v5527 = vmul.f32 %v5275, %v5466
      %v5528 = vmul.f32 %v5276, %v5467
      %v5529 = vmul.f32 %v5277, %v5468
      %v5530 = vmul.f32 %v5278, %v5469
      %v5531 = vmul.f32 %v5279, %v5470
      %v5532 = vmul.f32 %v5280, %v5471
      %v5533 = vmul.f32 %v5281, %v5472
      %v5534 = vmul.f32 %v5282, %v5459
      %v5535 = vmul.f32 %v5283, %v5473
      %v5536 = vmul.f32 %v5284, %v5474
      %v5537 = vmul.f32 %v5285, %v5475
      %v5538 = vmul.f32 %v5286, %v5476
      %v5539 = vmul.f32 %v5287, %v5477
      %v5540 = vmul.f32 %v5288, %v5478
      %v5541 = vmul.f32 %v5289, %v5479
      %v5542 = vmul.f32 %v5290, %v5460
      %v5543 = vmul.f32 %v5291, %v5480
      %v5544 = vmul.f32 %v5292, %v5481
      %v5545 = vmul.f32 %v5293, %v5482
      %v5546 = vmul.f32 %v5294, %v5483
      %v5547 = vmul.f32 %v5295, %v5484
      %v5548 = vmul.f32 %v5296, %v5485
      %v5549 = vmul.f32 %v5297, %v5486
      %v5550 = vmul.f32 %v5298, %v5461
      %v5551 = vmul.f32 %v5299, %v5487
      %v5552 = vmul.f32 %v5300, %v5488
      %v5553 = vmul.f32 %v5301, %v5489
      %v5554 = vmul.f32 %v5302, %v5490
      %v5555 = vmul.f32 %v5303, %v5491
      %v5556 = vmul.f32 %v5304, %v5492
      %v5557 = vmul.f32 %v5305, %v5493
      %v5558 = vlaneseq
      %v5559 = vshrl.u32 %v5558, 7
      %v5560 = vsub.s32 5, %v5559
      %v5561 = vrot.slane %v446, %v5560
      %5563 = vrot.lane.b32.xlu0 %v5561, 64
      %v5564 = vpop.permute.xlu0 %5563
      %v5566 = vmul.f32 %v5526, %v5564
      %v5567 = vmul.f32 %v5527, %v5564
      %v5568 = vmul.f32 %v5528, %v5564
      %v5569 = vmul.f32 %v5529, %v5564
      %v5570 = vmul.f32 %v5530, %v5564
      %v5571 = vmul.f32 %v5531, %v5564
      %v5572 = vmul.f32 %v5532, %v5564
      %v5573 = vmul.f32 %v5533, %v5564
      %v5574 = vmul.f32 %v5534, %v5564
      %v5575 = vmul.f32 %v5535, %v5564
      %v5576 = vmul.f32 %v5536, %v5564
      %v5577 = vmul.f32 %v5537, %v5564
      %v5578 = vmul.f32 %v5538, %v5564
      %v5579 = vmul.f32 %v5539, %v5564
      %v5580 = vmul.f32 %v5540, %v5564
      %v5581 = vmul.f32 %v5541, %v5564
      %v5582 = vmul.f32 %v5542, %v5564
      %v5583 = vmul.f32 %v5543, %v5564
      %v5584 = vmul.f32 %v5544, %v5564
      %v5585 = vmul.f32 %v5545, %v5564
      %v5586 = vmul.f32 %v5546, %v5564
      %v5587 = vmul.f32 %v5547, %v5564
      %v5588 = vmul.f32 %v5548, %v5564
      %v5589 = vmul.f32 %v5549, %v5564
      %v5590 = vmul.f32 %v5550, %v5564
      %v5591 = vmul.f32 %v5551, %v5564
      %v5592 = vmul.f32 %v5552, %v5564
      %v5593 = vmul.f32 %v5553, %v5564
      %v5594 = vmul.f32 %v5554, %v5564
      %v5595 = vmul.f32 %v5555, %v5564
      %v5596 = vmul.f32 %v5556, %v5564
      %v5597 = vmul.f32 %v5557, %v5564
      %v5598 = vlaneseq
      %v5599 = vshrl.u32 %v5598, 7
      %v5600 = vsub.s32 6, %v5599
      %v5601 = vrot.slane %v446, %v5600
      %5603 = vrot.lane.b32.xlu0 %v5601, 64
      %v5604 = vpop.permute.xlu0 %5603
      %v5606 = vadd.f32 %v5566, %v5604
      %v5607 = vadd.f32 %v5567, %v5604
      %v5608 = vadd.f32 %v5568, %v5604
      %v5609 = vadd.f32 %v5569, %v5604
      %v5610 = vadd.f32 %v5570, %v5604
      %v5611 = vadd.f32 %v5571, %v5604
      %v5612 = vadd.f32 %v5572, %v5604
      %v5613 = vadd.f32 %v5573, %v5604
      %v5614 = vadd.f32 %v5574, %v5604
      %v5615 = vadd.f32 %v5575, %v5604
      %v5616 = vadd.f32 %v5576, %v5604
      %v5617 = vadd.f32 %v5577, %v5604
      %v5618 = vadd.f32 %v5578, %v5604
      %v5619 = vadd.f32 %v5579, %v5604
      %v5620 = vadd.f32 %v5580, %v5604
      %v5621 = vadd.f32 %v5581, %v5604
      %v5622 = vadd.f32 %v5582, %v5604
      %v5623 = vadd.f32 %v5583, %v5604
      %v5624 = vadd.f32 %v5584, %v5604
      %v5625 = vadd.f32 %v5585, %v5604
      %v5626 = vadd.f32 %v5586, %v5604
      %v5627 = vadd.f32 %v5587, %v5604
      %v5628 = vadd.f32 %v5588, %v5604
      %v5629 = vadd.f32 %v5589, %v5604
      %v5630 = vadd.f32 %v5590, %v5604
      %v5631 = vadd.f32 %v5591, %v5604
      %v5632 = vadd.f32 %v5592, %v5604
      %v5633 = vadd.f32 %v5593, %v5604
      %v5634 = vadd.f32 %v5594, %v5604
      %v5635 = vadd.f32 %v5595, %v5604
      %v5636 = vadd.f32 %v5596, %v5604
      %v5637 = vadd.f32 %v5597, %v5604
      %v5638 = vld [vmem:[%s10] sm:$0xff]
      %v5639 = vld [vmem:[%s10 + $0x8] sm:$0xff]
      %v5640 = vld [vmem:[%s10 + $0x10] sm:$0xff]
      %v5641 = vld [vmem:[%s10 + $0x18] sm:$0xff]
      %v5642 = vld [vmem:[%s10 + $0x20] sm:$0xff]
      %v5643 = vld [vmem:[%s10 + $0x28] sm:$0xff]
      %v5644 = vld [vmem:[%s10 + $0x30] sm:$0xff]
      %v5645 = vld [vmem:[%s10 + $0x38] sm:$0xff]
      %v5646 = vpack.c.bf16 %v5606, %v5606
      %v5647 = vpack.c.bf16 %v5607, %v5607
      %v5648 = vpack.c.bf16 %v5608, %v5608
      %v5649 = vpack.c.bf16 %v5609, %v5609
      %v5650 = vpack.c.bf16 %v5610, %v5610
      %v5651 = vpack.c.bf16 %v5611, %v5611
      %v5652 = vpack.c.bf16 %v5612, %v5612
      %v5653 = vpack.c.bf16 %v5613, %v5613
      %v5654 = vpack.c.bf16 %v5614, %v5614
      %v5655 = vpack.c.bf16 %v5615, %v5615
      %v5656 = vpack.c.bf16 %v5616, %v5616
      %v5657 = vpack.c.bf16 %v5617, %v5617
      %v5658 = vpack.c.bf16 %v5618, %v5618
      %v5659 = vpack.c.bf16 %v5619, %v5619
      %v5660 = vpack.c.bf16 %v5620, %v5620
      %v5661 = vpack.c.bf16 %v5621, %v5621
      %v5662 = vpack.c.bf16 %v5622, %v5622
      %v5663 = vpack.c.bf16 %v5623, %v5623
      %v5664 = vpack.c.bf16 %v5624, %v5624
      %v5665 = vpack.c.bf16 %v5625, %v5625
      %v5666 = vpack.c.bf16 %v5626, %v5626
      %v5667 = vpack.c.bf16 %v5627, %v5627
      %v5668 = vpack.c.bf16 %v5628, %v5628
      %v5669 = vpack.c.bf16 %v5629, %v5629
      %v5670 = vpack.c.bf16 %v5630, %v5630
      %v5671 = vpack.c.bf16 %v5631, %v5631
      %v5672 = vpack.c.bf16 %v5632, %v5632
      %v5673 = vpack.c.bf16 %v5633, %v5633
      %v5674 = vpack.c.bf16 %v5634, %v5634
      %v5675 = vpack.c.bf16 %v5635, %v5635
      %v5676 = vpack.c.bf16 %v5636, %v5636
      %v5677 = vpack.c.bf16 %v5637, %v5637
      %v5678 = vlaneseq
      %v5679 = vshrl.u32 %v5678, 7
      %v5680 = vsub.s32 7, %v5679
      %v5681 = vrot.slane %v446, %v5680
      %v5682 = vlaneseq
      %v5683 = vshrl.u32 %v5682, 7
      %v5684 = vsub.s32 7, %v5683
      %v5685 = vrot.slane %v447, %v5684
      %v5718 = vunpack.c.l.b16 %v5646
      %v5719 = vunpack.c.l.b16 %v5647
      %v5720 = vunpack.c.l.b16 %v5648
      %v5721 = vunpack.c.l.b16 %v5649
      %v5722 = vunpack.c.l.b16 %v5650
      %v5723 = vunpack.c.l.b16 %v5651
      %v5724 = vunpack.c.l.b16 %v5652
      %v5725 = vunpack.c.l.b16 %v5653
      %v5726 = vunpack.c.l.b16 %v5654
      %v5727 = vunpack.c.l.b16 %v5655
      %v5728 = vunpack.c.l.b16 %v5656
      %v5729 = vunpack.c.l.b16 %v5657
      %v5730 = vunpack.c.l.b16 %v5658
      %v5731 = vunpack.c.l.b16 %v5659
      %v5732 = vunpack.c.l.b16 %v5660
      %v5733 = vunpack.c.l.b16 %v5661
      %v5734 = vunpack.c.l.b16 %v5662
      %v5735 = vunpack.c.l.b16 %v5663
      %v5736 = vunpack.c.l.b16 %v5664
      %v5737 = vunpack.c.l.b16 %v5665
      %v5738 = vunpack.c.l.b16 %v5666
      %v5739 = vunpack.c.l.b16 %v5667
      %v5740 = vunpack.c.l.b16 %v5668
      %v5741 = vunpack.c.l.b16 %v5669
      %v5742 = vunpack.c.l.b16 %v5670
      %v5743 = vunpack.c.l.b16 %v5671
      %v5744 = vunpack.c.l.b16 %v5672
      %v5745 = vunpack.c.l.b16 %v5673
      %v5746 = vunpack.c.l.b16 %v5674
      %v5747 = vunpack.c.l.b16 %v5675
      %v5748 = vunpack.c.l.b16 %v5676
      %v5749 = vunpack.c.l.b16 %v5677
      %v5750 = vrot.slane %v5719, 7
      %v5751 = vsel %vm3992, %v5750, %v5718
      %v5752 = vrot.slane %v5720, 6
      %v5753 = vsel %vm3995, %v5752, %v5751
      %v5754 = vrot.slane %v5721, 5
      %v5755 = vsel %vm3998, %v5754, %v5753
      %v5756 = vrot.slane %v5722, 4
      %v5757 = vsel %vm4001, %v5756, %v5755
      %v5758 = vrot.slane %v5723, 3
      %v5759 = vsel %vm4004, %v5758, %v5757
      %v5760 = vrot.slane %v5724, 2
      %v5761 = vsel %vm4007, %v5760, %v5759
      %v5762 = vrot.slane %v5725, 1
      %v5763 = vsel %vm4010, %v5762, %v5761
      %v5764 = vrot.slane %v5727, 7
      %v5765 = vsel %vm3992, %v5764, %v5726
      %v5766 = vrot.slane %v5728, 6
      %v5767 = vsel %vm3995, %v5766, %v5765
      %v5768 = vrot.slane %v5729, 5
      %v5769 = vsel %vm3998, %v5768, %v5767
      %v5770 = vrot.slane %v5730, 4
      %v5771 = vsel %vm4001, %v5770, %v5769
      %v5772 = vrot.slane %v5731, 3
      %v5773 = vsel %vm4004, %v5772, %v5771
      %v5774 = vrot.slane %v5732, 2
      %v5775 = vsel %vm4007, %v5774, %v5773
      %v5776 = vrot.slane %v5733, 1
      %v5777 = vsel %vm4010, %v5776, %v5775
      %v5778 = vrot.slane %v5735, 7
      %v5779 = vsel %vm3992, %v5778, %v5734
      %v5780 = vrot.slane %v5736, 6
      %v5781 = vsel %vm3995, %v5780, %v5779
      %v5782 = vrot.slane %v5737, 5
      %v5783 = vsel %vm3998, %v5782, %v5781
      %v5784 = vrot.slane %v5738, 4
      %v5785 = vsel %vm4001, %v5784, %v5783
      %v5786 = vrot.slane %v5739, 3
      %v5787 = vsel %vm4004, %v5786, %v5785
      %v5788 = vrot.slane %v5740, 2
      %v5789 = vsel %vm4007, %v5788, %v5787
      %v5790 = vrot.slane %v5741, 1
      %v5791 = vsel %vm4010, %v5790, %v5789
      %v5792 = vrot.slane %v5743, 7
      %v5793 = vsel %vm3992, %v5792, %v5742
      %v5794 = vrot.slane %v5744, 6
      %v5795 = vsel %vm3995, %v5794, %v5793
      %v5796 = vrot.slane %v5745, 5
      %v5797 = vsel %vm3998, %v5796, %v5795
      %v5798 = vrot.slane %v5746, 4
      %v5799 = vsel %vm4001, %v5798, %v5797
      %v5800 = vrot.slane %v5747, 3
      %v5801 = vsel %vm4004, %v5800, %v5799
      %v5802 = vrot.slane %v5748, 2
      %v5803 = vsel %vm4007, %v5802, %v5801
      %v5804 = vrot.slane %v5749, 1
      %v5805 = vsel %vm4010, %v5804, %v5803
      %v5806 = vpack.c.b16 %v5777, %v5763
      %v5807 = vpack.c.b16 %v5805, %v5791
      %5808 = vrot.lane.b32.xlu0 %v5806, 64
      %v5809 = vpop.permute.xlu0 %5808
      %5810 = vrot.lane.b32.xlu0 %v5807, 64
      %v5811 = vpop.permute.xlu0 %5810
      %v5820 = vunpack.c.l.b16 %v5638
      %v5821 = vunpack.c.h.b16 %v5638
      %v5822 = vunpack.c.l.b16 %v5639
      %v5823 = vunpack.c.h.b16 %v5639
      %v5824 = vunpack.c.l.b16 %v5640
      %v5825 = vunpack.c.h.b16 %v5640
      %v5826 = vunpack.c.l.b16 %v5641
      %v5827 = vunpack.c.h.b16 %v5641
      %v5828 = vunpack.c.l.b16 %v5642
      %v5829 = vunpack.c.h.b16 %v5642
      %v5830 = vunpack.c.l.b16 %v5643
      %v5831 = vunpack.c.h.b16 %v5643
      %v5832 = vunpack.c.l.b16 %v5644
      %v5833 = vunpack.c.h.b16 %v5644
      %v5834 = vunpack.c.l.b16 %v5645
      %v5835 = vunpack.c.h.b16 %v5645
      %v5836 = vpack.c.b16 %v5822, %v5820
      %v5837 = vpack.c.b16 %v5823, %v5821
      %v5838 = vpack.c.b16 %v5826, %v5824
      %v5839 = vpack.c.b16 %v5827, %v5825
      %v5840 = vpack.c.b16 %v5830, %v5828
      %v5841 = vpack.c.b16 %v5831, %v5829
      %v5842 = vpack.c.b16 %v5834, %v5832
      %v5843 = vpack.c.b16 %v5835, %v5833
      %v5853 = vsel %vm1331, %v5809, 0
      %v5856 = vsel %vm1331, %v5811, 0
      %5858 = vmatprep.subr.bf16.mxu0 %v5837
      %5859 = vmatpush1.bf16.msra.mxu0 %v5836
      %5860 = vmatprep.subr.bf16.mxu0 %v5839
      %5861 = vmatpush1.bf16.msra.mxu0 %v5838
      %5862 = vmatprep.subr.bf16.mxu0 %v5841
      %5863 = vmatpush1.bf16.msra.mxu0 %v5840
      %5864 = vmatprep.subr.bf16.mxu0 %v5843
      %5865 = vmatpush1.bf16.msra.mxu0 %v5842
      %5866 = vmatprep.subr.bf16.mxu0 0
      %5867 = vmatpush1.bf16.msra.mxu0 0
      %5868 = vmatprep.subr.bf16.mxu0 0
      %5869 = vmatpush1.bf16.msra.mxu0 0
      %5870 = vmatprep.subr.bf16.mxu0 0
      %5871 = vmatpush1.bf16.msra.mxu0 0
      %5872 = vmatprep.subr.bf16.mxu0 0
      %5873 = vmatpush1.bf16.msra.mxu0 0
      %5874 = vmatprep.subr.bf16.mxu0 0
      %5875 = vmatpush1.bf16.msra.mxu0 0
      %5876 = vmatprep.subr.bf16.mxu0 0
      %5877 = vmatpush1.bf16.msra.mxu0 0
      %5878 = vmatprep.subr.bf16.mxu0 0
      %5879 = vmatpush1.bf16.msra.mxu0 0
      %5880 = vmatprep.subr.bf16.mxu0 0
      %5881 = vmatpush1.bf16.msra.mxu0 0
      %5882 = vmatprep.subr.bf16.mxu0 0
      %5883 = vmatpush1.bf16.msra.mxu0 0
      %5884 = vmatprep.subr.bf16.mxu0 0
      %5885 = vmatpush1.bf16.msra.mxu0 0
      %5886 = vmatprep.subr.bf16.mxu0 0
      %5887 = vmatpush1.bf16.msra.mxu0 0
      %5888 = vmatprep.subr.bf16.mxu0 0
      %5889 = vmatpush1.bf16.msra.mxu0 0
      %5890 = vmatprep.mubr.bf16.mxu0 0
      %5891 = vmatmul.mubr.bf16.gmra.mrb[0].mxu0 %v5853
      %v5892 = vpop.f32.mrb[0].mxu0
      %v5893 = vadd.f32 %v5681, %v5892
      %v5894 = vpop.f32.mrb[0].mxu0
      %v5895 = vadd.f32 %v5685, %v5894
      %v5896 = vpop.f32.mrb[0].mxu0
      %v5897 = vadd.f32 %v5681, %v5896
      %v5898 = vpop.f32.mrb[0].mxu0
      %v5899 = vadd.f32 %v5685, %v5898
      %5900 = vmatprep.mubr.bf16.mxu0 0
      %5901 = vmatmul.mubr.bf16.gmra.mrb[0].mxu0 %v5856
      %v5902 = vpop.f32.mrb[0].mxu0
      %v5903 = vadd.f32 %v5681, %v5902
      %v5904 = vpop.f32.mrb[0].mxu0
      %v5905 = vadd.f32 %v5685, %v5904
      %v5906 = vpop.f32.mrb[0].mxu0
      %v5907 = vadd.f32 %v5681, %v5906
      %v5908 = vpop.f32.mrb[0].mxu0
      %v5909 = vadd.f32 %v5685, %v5908
      %5910 = vdwg.mxu0
      %v5911 = vmul.f32 %v5893, %v5893
      %v5912 = vmul.f32 %v5895, %v5895
      %v5913 = vmul.f32 %v5897, %v5897
      %v5914 = vmul.f32 %v5899, %v5899
      %v5915 = vmul.f32 %v5903, %v5903
      %v5916 = vmul.f32 %v5905, %v5905
      %v5917 = vmul.f32 %v5907, %v5907
      %v5918 = vmul.f32 %v5909, %v5909
      %v5919 = vmul.f32 %v5893, %v5911
      %v5920 = vmul.f32 %v5895, %v5912
      %v5921 = vmul.f32 %v5897, %v5913
      %v5922 = vmul.f32 %v5899, %v5914
      %v5923 = vmul.f32 %v5903, %v5915
      %v5924 = vmul.f32 %v5905, %v5916
      %v5925 = vmul.f32 %v5907, %v5917
      %v5926 = vmul.f32 %v5909, %v5918
      %v5927 = vmul.f32 %v5919, 0.044715
      %v5928 = vmul.f32 %v5920, 0.044715
      %v5929 = vmul.f32 %v5921, 0.044715
      %v5930 = vmul.f32 %v5922, 0.044715
      %v5931 = vmul.f32 %v5923, 0.044715
      %v5932 = vmul.f32 %v5924, 0.044715
      %v5933 = vmul.f32 %v5925, 0.044715
      %v5934 = vmul.f32 %v5926, 0.044715
      %v5935 = vadd.f32 %v5893, %v5927
      %v5936 = vadd.f32 %v5895, %v5928
      %v5937 = vadd.f32 %v5897, %v5929
      %v5938 = vadd.f32 %v5899, %v5930
      %v5939 = vadd.f32 %v5903, %v5931
      %v5940 = vadd.f32 %v5905, %v5932
      %v5941 = vadd.f32 %v5907, %v5933
      %v5942 = vadd.f32 %v5909, %v5934
      %v5943 = vmul.f32 %v5935, 0.7978846
      %v5944 = vmul.f32 %v5936, 0.7978846
      %v5945 = vmul.f32 %v5937, 0.7978846
      %v5946 = vmul.f32 %v5938, 0.7978846
      %v5947 = vmul.f32 %v5939, 0.7978846
      %v5948 = vmul.f32 %v5940, 0.7978846
      %v5949 = vmul.f32 %v5941, 0.7978846
      %v5950 = vmul.f32 %v5942, 0.7978846
      %v5951 = vtanh.pop %v5943
      %v5952 = vtanh.pop %v5944
      %v5953 = vtanh.pop %v5945
      %v5954 = vtanh.pop %v5946
      %v5955 = vtanh.pop %v5947
      %v5956 = vtanh.pop %v5948
      %v5957 = vtanh.pop %v5949
      %v5958 = vtanh.pop %v5950
      %v5959 = vadd.f32 %v5951, 1.0
      %v5960 = vadd.f32 %v5952, 1.0
      %v5961 = vadd.f32 %v5953, 1.0
      %v5962 = vadd.f32 %v5954, 1.0
      %v5963 = vadd.f32 %v5955, 1.0
      %v5964 = vadd.f32 %v5956, 1.0
      %v5965 = vadd.f32 %v5957, 1.0
      %v5966 = vadd.f32 %v5958, 1.0
      %v5967 = vmul.f32 %v5959, 0.5
      %v5968 = vmul.f32 %v5960, 0.5
      %v5969 = vmul.f32 %v5961, 0.5
      %v5970 = vmul.f32 %v5962, 0.5
      %v5971 = vmul.f32 %v5963, 0.5
      %v5972 = vmul.f32 %v5964, 0.5
      %v5973 = vmul.f32 %v5965, 0.5
      %v5974 = vmul.f32 %v5966, 0.5
      %v5975 = vmul.f32 %v5893, %v5967
      %v5976 = vmul.f32 %v5895, %v5968
      %v5977 = vmul.f32 %v5897, %v5969
      %v5978 = vmul.f32 %v5899, %v5970
      %v5979 = vmul.f32 %v5903, %v5971
      %v5980 = vmul.f32 %v5905, %v5972
      %v5981 = vmul.f32 %v5907, %v5973
      %v5982 = vmul.f32 %v5909, %v5974
      %v5983 = vld [vmem:[%s11] sm:$0xf]
      %v5984 = vld [vmem:[%s11 + $0x4] sm:$0xf]
      %v5985 = vld [vmem:[%s11 + $0x8] sm:$0xf]
      %v5986 = vld [vmem:[%s11 + $0xc] sm:$0xf]
      %v5987 = vld [vmem:[%s11 + $0x10] sm:$0xf]
      %v5988 = vld [vmem:[%s11 + $0x14] sm:$0xf]
      %v5989 = vld [vmem:[%s11 + $0x18] sm:$0xf]
      %v5990 = vld [vmem:[%s11 + $0x1c] sm:$0xf]
      %v5991 = vld [vmem:[%s11 + $0x20] sm:$0xf]
      %v5992 = vld [vmem:[%s11 + $0x24] sm:$0xf]
      %v5993 = vld [vmem:[%s11 + $0x28] sm:$0xf]
      %v5994 = vld [vmem:[%s11 + $0x2c] sm:$0xf]
      %v5995 = vld [vmem:[%s11 + $0x30] sm:$0xf]
      %v5996 = vld [vmem:[%s11 + $0x34] sm:$0xf]
      %v5997 = vld [vmem:[%s11 + $0x38] sm:$0xf]
      %v5998 = vld [vmem:[%s11 + $0x3c] sm:$0xf]
      %v5999 = vld [vmem:[%s11 + $0x40] sm:$0xf]
      %v6000 = vld [vmem:[%s11 + $0x44] sm:$0xf]
      %v6001 = vld [vmem:[%s11 + $0x48] sm:$0xf]
      %v6002 = vld [vmem:[%s11 + $0x4c] sm:$0xf]
      %v6003 = vld [vmem:[%s11 + $0x50] sm:$0xf]
      %v6004 = vld [vmem:[%s11 + $0x54] sm:$0xf]
      %v6005 = vld [vmem:[%s11 + $0x58] sm:$0xf]
      %v6006 = vld [vmem:[%s11 + $0x5c] sm:$0xf]
      %v6007 = vld [vmem:[%s11 + $0x60] sm:$0xf]
      %v6008 = vld [vmem:[%s11 + $0x64] sm:$0xf]
      %v6009 = vld [vmem:[%s11 + $0x68] sm:$0xf]
      %v6010 = vld [vmem:[%s11 + $0x6c] sm:$0xf]
      %v6011 = vld [vmem:[%s11 + $0x70] sm:$0xf]
      %v6012 = vld [vmem:[%s11 + $0x74] sm:$0xf]
      %v6013 = vld [vmem:[%s11 + $0x78] sm:$0xf]
      %v6014 = vld [vmem:[%s11 + $0x7c] sm:$0xf]
      %v6015 = vpack.c.bf16 %v5977, %v5975
      %v6016 = vpack.c.bf16 %v5978, %v5976
      %v6017 = vpack.c.bf16 %v5981, %v5979
      %v6018 = vpack.c.bf16 %v5982, %v5980
      %v6051 = vunpack.c.l.b16 %v5983
      %v6052 = vunpack.c.l.b16 %v5984
      %v6053 = vunpack.c.l.b16 %v5985
      %v6054 = vunpack.c.l.b16 %v5986
      %v6055 = vunpack.c.l.b16 %v5987
      %v6056 = vunpack.c.l.b16 %v5988
      %v6057 = vunpack.c.l.b16 %v5989
      %v6058 = vunpack.c.l.b16 %v5990
      %v6059 = vunpack.c.l.b16 %v5991
      %v6060 = vunpack.c.l.b16 %v5992
      %v6061 = vunpack.c.l.b16 %v5993
      %v6062 = vunpack.c.l.b16 %v5994
      %v6063 = vunpack.c.l.b16 %v5995
      %v6064 = vunpack.c.l.b16 %v5996
      %v6065 = vunpack.c.l.b16 %v5997
      %v6066 = vunpack.c.l.b16 %v5998
      %v6067 = vunpack.c.l.b16 %v5999
      %v6068 = vunpack.c.l.b16 %v6000
      %v6069 = vunpack.c.l.b16 %v6001
      %v6070 = vunpack.c.l.b16 %v6002
      %v6071 = vunpack.c.l.b16 %v6003
      %v6072 = vunpack.c.l.b16 %v6004
      %v6073 = vunpack.c.l.b16 %v6005
      %v6074 = vunpack.c.l.b16 %v6006
      %v6075 = vunpack.c.l.b16 %v6007
      %v6076 = vunpack.c.l.b16 %v6008
      %v6077 = vunpack.c.l.b16 %v6009
      %v6078 = vunpack.c.l.b16 %v6010
      %v6079 = vunpack.c.l.b16 %v6011
      %v6080 = vunpack.c.l.b16 %v6012
      %v6081 = vunpack.c.l.b16 %v6013
      %v6082 = vunpack.c.l.b16 %v6014
      %v6083 = vpack.c.b16 %v6052, %v6051
      %v6084 = vpack.c.b16 %v6054, %v6053
      %v6085 = vpack.c.b16 %v6056, %v6055
      %v6086 = vpack.c.b16 %v6058, %v6057
      %v6087 = vpack.c.b16 %v6060, %v6059
      %v6088 = vpack.c.b16 %v6062, %v6061
      %v6089 = vpack.c.b16 %v6064, %v6063
      %v6090 = vpack.c.b16 %v6066, %v6065
      %v6091 = vpack.c.b16 %v6068, %v6067
      %v6092 = vpack.c.b16 %v6070, %v6069
      %v6093 = vpack.c.b16 %v6072, %v6071
      %v6094 = vpack.c.b16 %v6074, %v6073
      %v6095 = vpack.c.b16 %v6076, %v6075
      %v6096 = vpack.c.b16 %v6078, %v6077
      %v6097 = vpack.c.b16 %v6080, %v6079
      %v6098 = vpack.c.b16 %v6082, %v6081
      %6115 = vmatprep.subr.bf16.mxu0 0
      %6116 = vmatpush1.bf16.msra.mxu0 %v6083
      %6117 = vmatprep.subr.bf16.mxu0 0
      %6118 = vmatpush1.bf16.msra.mxu0 %v6084
      %6119 = vmatprep.subr.bf16.mxu0 0
      %6120 = vmatpush1.bf16.msra.mxu0 %v6085
      %6121 = vmatprep.subr.bf16.mxu0 0
      %6122 = vmatpush1.bf16.msra.mxu0 %v6086
      %6123 = vmatprep.subr.bf16.mxu0 0
      %6124 = vmatpush1.bf16.msra.mxu0 %v6087
      %6125 = vmatprep.subr.bf16.mxu0 0
      %6126 = vmatpush1.bf16.msra.mxu0 %v6088
      %6127 = vmatprep.subr.bf16.mxu0 0
      %6128 = vmatpush1.bf16.msra.mxu0 %v6089
      %6129 = vmatprep.subr.bf16.mxu0 0
      %6130 = vmatpush1.bf16.msra.mxu0 %v6090
      %6131 = vmatprep.subr.bf16.mxu0 0
      %6132 = vmatpush1.bf16.msra.mxu0 %v6091
      %6133 = vmatprep.subr.bf16.mxu0 0
      %6134 = vmatpush1.bf16.msra.mxu0 %v6092
      %6135 = vmatprep.subr.bf16.mxu0 0
      %6136 = vmatpush1.bf16.msra.mxu0 %v6093
      %6137 = vmatprep.subr.bf16.mxu0 0
      %6138 = vmatpush1.bf16.msra.mxu0 %v6094
      %6139 = vmatprep.subr.bf16.mxu0 0
      %6140 = vmatpush1.bf16.msra.mxu0 %v6095
      %6141 = vmatprep.subr.bf16.mxu0 0
      %6142 = vmatpush1.bf16.msra.mxu0 %v6096
      %6143 = vmatprep.subr.bf16.mxu0 0
      %6144 = vmatpush1.bf16.msra.mxu0 %v6097
      %6145 = vmatprep.subr.bf16.mxu0 0
      %6146 = vmatpush1.bf16.msra.mxu0 %v6098
      %6147 = vmatprep.mubr.bf16.mxu0 %v6016
      %6148 = vmatmul.mubr.bf16.gmra.mrb[0].mxu0 %v6015
      %v6149 = vpop.f32.mrb[0].mxu0
      %v6150 = vadd.f32 0.0, %v6149
      %v6151 = vpop.f32.mrb[0].mxu0
      %v6152 = vpop.f32.mrb[0].mxu0
      %v6153 = vadd.f32 0.0, %v6152
      %v6154 = vpop.f32.mrb[0].mxu0
      %6155 = vmatprep.mubr.bf16.mxu0 %v6018
      %6156 = vmatmul.mubr.bf16.gmra.mrb[0].mxu0 %v6017
      %v6157 = vpop.f32.mrb[0].mxu0
      %v6158 = vadd.f32 0.0, %v6157
      %v6159 = vpop.f32.mrb[0].mxu0
      %v6160 = vpop.f32.mrb[0].mxu0
      %v6161 = vadd.f32 0.0, %v6160
      %v6162 = vpop.f32.mrb[0].mxu0
      %6163 = vdwg.mxu0
      %v6168 = vrot.slane %v6150, 1
      %v6169 = vrot.slane %v6150, 2
      %v6170 = vrot.slane %v6150, 3
      %v6171 = vrot.slane %v6150, 4
      %v6172 = vrot.slane %v6150, 5
      %v6173 = vrot.slane %v6150, 6
      %v6174 = vrot.slane %v6150, 7
      %v6175 = vrot.slane %v6153, 1
      %v6176 = vrot.slane %v6153, 2
      %v6177 = vrot.slane %v6153, 3
      %v6178 = vrot.slane %v6153, 4
      %v6179 = vrot.slane %v6153, 5
      %v6180 = vrot.slane %v6153, 6
      %v6181 = vrot.slane %v6153, 7
      %v6182 = vrot.slane %v6158, 1
      %v6183 = vrot.slane %v6158, 2
      %v6184 = vrot.slane %v6158, 3
      %v6185 = vrot.slane %v6158, 4
      %v6186 = vrot.slane %v6158, 5
      %v6187 = vrot.slane %v6158, 6
      %v6188 = vrot.slane %v6158, 7
      %v6189 = vrot.slane %v6161, 1
      %v6190 = vrot.slane %v6161, 2
      %v6191 = vrot.slane %v6161, 3
      %v6192 = vrot.slane %v6161, 4
      %v6193 = vrot.slane %v6161, 5
      %v6194 = vrot.slane %v6161, 6
      %v6195 = vrot.slane %v6161, 7
      %6196 = vrot.lane.b32.xlu0 %v6150, 64
      %v6197 = vpop.permute.xlu0 %6196
      %6198 = vrot.lane.b32.xlu0 %v6168, 64
      %v6199 = vpop.permute.xlu0 %6198
      %6200 = vrot.lane.b32.xlu0 %v6169, 64
      %v6201 = vpop.permute.xlu0 %6200
      %6202 = vrot.lane.b32.xlu0 %v6170, 64
      %v6203 = vpop.permute.xlu0 %6202
      %6204 = vrot.lane.b32.xlu0 %v6171, 64
      %v6205 = vpop.permute.xlu0 %6204
      %6206 = vrot.lane.b32.xlu0 %v6172, 64
      %v6207 = vpop.permute.xlu0 %6206
      %6208 = vrot.lane.b32.xlu0 %v6173, 64
      %v6209 = vpop.permute.xlu0 %6208
      %6210 = vrot.lane.b32.xlu0 %v6174, 64
      %v6211 = vpop.permute.xlu0 %6210
      %6212 = vrot.lane.b32.xlu0 %v6153, 64
      %v6213 = vpop.permute.xlu0 %6212
      %6214 = vrot.lane.b32.xlu0 %v6175, 64
      %v6215 = vpop.permute.xlu0 %6214
      %6216 = vrot.lane.b32.xlu0 %v6176, 64
      %v6217 = vpop.permute.xlu0 %6216
      %6218 = vrot.lane.b32.xlu0 %v6177, 64
      %v6219 = vpop.permute.xlu0 %6218
      %6220 = vrot.lane.b32.xlu0 %v6178, 64
      %v6221 = vpop.permute.xlu0 %6220
      %6222 = vrot.lane.b32.xlu0 %v6179, 64
      %v6223 = vpop.permute.xlu0 %6222
      %6224 = vrot.lane.b32.xlu0 %v6180, 64
      %v6225 = vpop.permute.xlu0 %6224
      %6226 = vrot.lane.b32.xlu0 %v6181, 64
      %v6227 = vpop.permute.xlu0 %6226
      %6228 = vrot.lane.b32.xlu0 %v6158, 64
      %v6229 = vpop.permute.xlu0 %6228
      %6230 = vrot.lane.b32.xlu0 %v6182, 64
      %v6231 = vpop.permute.xlu0 %6230
      %6232 = vrot.lane.b32.xlu0 %v6183, 64
      %v6233 = vpop.permute.xlu0 %6232
      %6234 = vrot.lane.b32.xlu0 %v6184, 64
      %v6235 = vpop.permute.xlu0 %6234
      %6236 = vrot.lane.b32.xlu0 %v6185, 64
      %v6237 = vpop.permute.xlu0 %6236
      %6238 = vrot.lane.b32.xlu0 %v6186, 64
      %v6239 = vpop.permute.xlu0 %6238
      %6240 = vrot.lane.b32.xlu0 %v6187, 64
      %v6241 = vpop.permute.xlu0 %6240
      %6242 = vrot.lane.b32.xlu0 %v6188, 64
      %v6243 = vpop.permute.xlu0 %6242
      %6244 = vrot.lane.b32.xlu0 %v6161, 64
      %v6245 = vpop.permute.xlu0 %6244
      %6246 = vrot.lane.b32.xlu0 %v6189, 64
      %v6247 = vpop.permute.xlu0 %6246
      %6248 = vrot.lane.b32.xlu0 %v6190, 64
      %v6249 = vpop.permute.xlu0 %6248
      %6250 = vrot.lane.b32.xlu0 %v6191, 64
      %v6251 = vpop.permute.xlu0 %6250
      %6252 = vrot.lane.b32.xlu0 %v6192, 64
      %v6253 = vpop.permute.xlu0 %6252
      %6254 = vrot.lane.b32.xlu0 %v6193, 64
      %v6255 = vpop.permute.xlu0 %6254
      %6256 = vrot.lane.b32.xlu0 %v6194, 64
      %v6257 = vpop.permute.xlu0 %6256
      %6258 = vrot.lane.b32.xlu0 %v6195, 64
      %v6259 = vpop.permute.xlu0 %6258
      %v6292 = vadd.f32 %v5061, %v6197
      %v6293 = vadd.f32 %v5062, %v6199
      %v6294 = vadd.f32 %v5063, %v6201
      %v6295 = vadd.f32 %v5064, %v6203
      %v6296 = vadd.f32 %v5065, %v6205
      %v6297 = vadd.f32 %v5066, %v6207
      %v6298 = vadd.f32 %v5067, %v6209
      %v6299 = vadd.f32 %v5068, %v6211
      %v6300 = vadd.f32 %v5069, %v6213
      %v6301 = vadd.f32 %v5070, %v6215
      %v6302 = vadd.f32 %v5071, %v6217
      %v6303 = vadd.f32 %v5072, %v6219
      %v6304 = vadd.f32 %v5073, %v6221
      %v6305 = vadd.f32 %v5074, %v6223
      %v6306 = vadd.f32 %v5075, %v6225
      %v6307 = vadd.f32 %v5076, %v6227
      %v6308 = vadd.f32 %v5077, %v6229
      %v6309 = vadd.f32 %v5078, %v6231
      %v6310 = vadd.f32 %v5079, %v6233
      %v6311 = vadd.f32 %v5080, %v6235
      %v6312 = vadd.f32 %v5081, %v6237
      %v6313 = vadd.f32 %v5082, %v6239
      %v6314 = vadd.f32 %v5083, %v6241
      %v6315 = vadd.f32 %v5084, %v6243
      %v6316 = vadd.f32 %v5085, %v6245
      %v6317 = vadd.f32 %v5086, %v6247
      %v6318 = vadd.f32 %v5087, %v6249
      %v6319 = vadd.f32 %v5088, %v6251
      %v6320 = vadd.f32 %v5089, %v6253
      %v6321 = vadd.f32 %v5090, %v6255
      %v6322 = vadd.f32 %v5091, %v6257
      %v6323 = vadd.f32 %v5092, %v6259
      %v6324 = vlaneseq
      %v6325 = vshrl.u32 %v6324, 7
      %v6326 = vsub.s32 0, %v6325
      %v6327 = vrot.slane %v448, %v6326
      %6329 = vrot.lane.b32.xlu0 %v6327, 64
      %v6330 = vpop.permute.xlu0 %6329
      %v6332 = vadd.f32 %v6292, %v6330
      %v6333 = vadd.f32 %v6293, %v6330
      %v6334 = vadd.f32 %v6294, %v6330
      %v6335 = vadd.f32 %v6295, %v6330
      %v6336 = vadd.f32 %v6296, %v6330
      %v6337 = vadd.f32 %v6297, %v6330
      %v6338 = vadd.f32 %v6298, %v6330
      %v6339 = vadd.f32 %v6299, %v6330
      %v6340 = vadd.f32 %v6300, %v6330
      %v6341 = vadd.f32 %v6301, %v6330
      %v6342 = vadd.f32 %v6302, %v6330
      %v6343 = vadd.f32 %v6303, %v6330
      %v6344 = vadd.f32 %v6304, %v6330
      %v6345 = vadd.f32 %v6305, %v6330
      %v6346 = vadd.f32 %v6306, %v6330
      %v6347 = vadd.f32 %v6307, %v6330
      %v6348 = vadd.f32 %v6308, %v6330
      %v6349 = vadd.f32 %v6309, %v6330
      %v6350 = vadd.f32 %v6310, %v6330
      %v6351 = vadd.f32 %v6311, %v6330
      %v6352 = vadd.f32 %v6312, %v6330
      %v6353 = vadd.f32 %v6313, %v6330
      %v6354 = vadd.f32 %v6314, %v6330
      %v6355 = vadd.f32 %v6315, %v6330
      %v6356 = vadd.f32 %v6316, %v6330
      %v6357 = vadd.f32 %v6317, %v6330
      %v6358 = vadd.f32 %v6318, %v6330
      %v6359 = vadd.f32 %v6319, %v6330
      %v6360 = vadd.f32 %v6320, %v6330
      %v6361 = vadd.f32 %v6321, %v6330
      %v6362 = vadd.f32 %v6322, %v6330
      %v6363 = vadd.f32 %v6323, %v6330
      %v6364 = vsub.f32 %v6332, %v6348
      %v6365 = vsub.f32 %v6333, %v6349
      %v6366 = vsub.f32 %v6334, %v6350
      %v6367 = vsub.f32 %v6335, %v6351
      %v6368 = vsub.f32 %v6336, %v6352
      %v6369 = vsub.f32 %v6337, %v6353
      %v6370 = vsub.f32 %v6338, %v6354
      %v6371 = vsub.f32 %v6339, %v6355
      %v6372 = vsub.f32 %v6340, %v6356
      %v6373 = vsub.f32 %v6341, %v6357
      %v6374 = vsub.f32 %v6342, %v6358
      %v6375 = vsub.f32 %v6343, %v6359
      %v6376 = vsub.f32 %v6344, %v6360
      %v6377 = vsub.f32 %v6345, %v6361
      %v6378 = vsub.f32 %v6346, %v6362
      %v6379 = vsub.f32 %v6347, %v6363
      %v6380 = vand.u32 2147483647, %v6364
      %v6381 = vand.u32 2147483647, %v6365
      %v6382 = vand.u32 2147483647, %v6366
      %v6383 = vand.u32 2147483647, %v6367
      %v6384 = vand.u32 2147483647, %v6368
      %v6385 = vand.u32 2147483647, %v6369
      %v6386 = vand.u32 2147483647, %v6370
      %v6387 = vand.u32 2147483647, %v6371
      %v6388 = vand.u32 2147483647, %v6372
      %v6389 = vand.u32 2147483647, %v6373
      %v6390 = vand.u32 2147483647, %v6374
      %v6391 = vand.u32 2147483647, %v6375
      %v6392 = vand.u32 2147483647, %v6376
      %v6393 = vand.u32 2147483647, %v6377
      %v6394 = vand.u32 2147483647, %v6378
      %v6395 = vand.u32 2147483647, %v6379
      %v6412 = vrot.slane %v6381, 7
      %v6413 = vsel %vm3992, %v6412, %v6380
      %v6414 = vrot.slane %v6382, 6
      %v6415 = vsel %vm3995, %v6414, %v6413
      %v6416 = vrot.slane %v6383, 5
      %v6417 = vsel %vm3998, %v6416, %v6415
      %v6418 = vrot.slane %v6384, 4
      %v6419 = vsel %vm4001, %v6418, %v6417
      %v6420 = vrot.slane %v6385, 3
      %v6421 = vsel %vm4004, %v6420, %v6419
      %v6422 = vrot.slane %v6386, 2
      %v6423 = vsel %vm4007, %v6422, %v6421
      %v6424 = vrot.slane %v6387, 1
      %v6425 = vsel %vm4010, %v6424, %v6423
      %v6426 = vrot.slane %v6389, 7
      %v6427 = vsel %vm3992, %v6426, %v6388
      %v6428 = vrot.slane %v6390, 6
      %v6429 = vsel %vm3995, %v6428, %v6427
      %v6430 = vrot.slane %v6391, 5
      %v6431 = vsel %vm3998, %v6430, %v6429
      %v6432 = vrot.slane %v6392, 4
      %v6433 = vsel %vm4001, %v6432, %v6431
      %v6434 = vrot.slane %v6393, 3
      %v6435 = vsel %vm4004, %v6434, %v6433
      %v6436 = vrot.slane %v6394, 2
      %v6437 = vsel %vm4007, %v6436, %v6435
      %v6438 = vrot.slane %v6395, 1
      %v6439 = vsel %vm4010, %v6438, %v6437
      %6440 = vrot.lane.b32.xlu0 %v6425, 64
      %v6441 = vpop.permute.xlu0 %6440
      %6442 = vrot.lane.b32.xlu0 %v6439, 64
      %v6443 = vpop.permute.xlu0 %6442
      %v6446 = vsel %vm1331, %v6441, 0.0
      %v6447 = vsel %vm1331, %v6443, 0.0
      %v6448 = vadd.f32 %v6446, %v6447
      %6449 = vadd.xlane.f32.xlu0 %v6448
      %v6450 = vpop.xlane.xlu0 %6449
      %v6451 = vrot.slane %v6450, 4
      %v6452 = vadd.f32 %v6450, %v6451
      %v6453 = vrot.slane %v6452, 2
      %v6454 = vadd.f32 %v6452, %v6453
      %v6455 = vrot.slane %v6454, 1
      %v6456 = vadd.f32 %v6454, %v6455
      %s6457 = vtos %v6456
      %v6458 = vstv %s6457
      %6459 = vst [vmem:[%s411] sm:$0xff] %v6458
      %p6460 = scmp.lt.s32.totalorder %s23, 1
      %s6461 = scalar_select %p6460, %s23, 1
      %s6462 = smul.addr %s6461, 8
      %s6463 = scalar_lea.vmem %s12, %s6462
      // Predicated region
      $region69: #{hiera_perceptual_loss.1} parent=67 // pred_check
        %p6464 = pneg %p298
      $region70: #{hiera_perceptual_loss.1} parent=67 // pred_check_branch
        %6466 = sbr.rel (%p6464) target = $region72
      $region71: #{hiera_perceptual_loss.1} parent=67 // pred_region
        _
      $region72: #{hiera_perceptual_loss.1} parent=67 // pred_fallthru
        _
    $region68: #{hiera_perceptual_loss.1} parent=5 // pred_fallthru
      _
    %p6467 = scmp.le.s32.totalorder 2, %s18
    // Predicated region
    $region73: #{hiera_perceptual_loss.1} parent=5 // pred_check
      %p6468 = pneg %p6467
    $region74: #{hiera_perceptual_loss.1} parent=5 // pred_check_branch
      %6470 = sbr.rel (%p6468) target = $region76
    $region75: #{hiera_perceptual_loss.1} parent=5 // pred_region
      %s6471 = ssub.s32 %s18, 2
      // Predicated region
      $region77: #{hiera_perceptual_loss.1} parent=75 // pred_check
        %p6472 = pneg %p304
      $region78: #{hiera_perceptual_loss.1} parent=75 // pred_check_branch
        %6474 = sbr.rel (%p6472) target = $region80
      $region79: #{hiera_perceptual_loss.1} parent=75 // pred_region
        %p6475 = scmp.lt.s32.totalorder %s24, 1
        %s6476 = scalar_select %p6475, %s24, 1
        %s6477 = smul.addr %s6476, 8
        %s6478 = scalar_lea.vmem %s12, %s6477
      $region80: #{hiera_perceptual_loss.1} parent=75 // pred_fallthru
        _
    $region76: #{hiera_perceptual_loss.1} parent=5 // pred_fallthru
      _
  $region6: #{hiera_perceptual_loss.1} parent=0 // loop_footer
    %s22 = sadd.s32 1, %s18
  $region7: #{hiera_perceptual_loss.1} parent=0 // loop_footer_branch
    %17 = sbr.rel target = $region3
  $region8: #{hiera_perceptual_loss.1} parent=0 // loop_exit
    _

</llo_original>
